<compile_context>
chip_gen: v7x
topology: tpu7x:2x2x1
jax: 0.10.0
libtpu: 0.0.40
codegen_flags: <defaults>
</compile_context>

<pallas_src>
import functools

import jax
import jax.numpy as jnp
from jax import lax, random
from jax.experimental import pallas as pl
from jax.experimental.pallas import tpu as pltpu


# ----------------------------------------------------------------------------
# Pallas kernel: whole CEBlock for a (b_tile, C, H*W) block (grid = (N/b_tile,))
# ----------------------------------------------------------------------------
def ce_block_kernel(x_ref,      # (b_tile, C, HW) f32 input block (channel-major)
                    bn_ref,     # (8, C) f32 packed rows: bn1s,bn1t,bn2s,bn2t,bn3s,bn3t,0,0
                    wg_ref,     # (C, C)  f32 1x1 conv weight, (Cin, Cout)
                    w3_ref,     # (3C, 3C) bf16 packed 3x3 weight [ky*C+cin, kx*C+cout]
                    out_ref,    # (b_tile, C, HW) f32 output block
                    yslab_ref,  # (b_tile, HW+2W, C) bf16 scratch slab (zero dy halos)
                    *, img_w):
    b_tile, C, HW = x_ref.shape
    W = img_w

    # ---- hoisted constants (loaded/built once per grid step) ----------------
    bn = bn_ref[...]
    bn1s, bn1t = bn[0:1, :], bn[1:2, :]
    bn2s, bn2t = bn[2:3, :], bn[3:4, :]
    bn3s, bn3t = bn[4:5, :], bn[5:6, :]

    w3 = w3_ref[...]
    w3_top = w3[0:C, :]          # ky = 0  (dy = -1)
    w3_mid = w3[C:2 * C, :]      # ky = 1  (dy =  0)
    w3_bot = w3[2 * C:3 * C, :]  # ky = 2  (dy = +1)

    # Column-boundary masks for the +/-1 (dx) shifts, flat row r = h*W + w.
    col = lax.broadcasted_iota(jnp.int32, (HW, 1), 0) % W
    left_ok = col != 0           # (w-1) neighbour exists
    right_ok = col != (W - 1)    # (w+1) neighbour exists

    # ---- batched GAP + BN1 + conv_gap (1x1) + BN2 + ReLU ---------------------
    # Mean over the spatial (lane) axis for all batch elements at once, then a
    # single (b_tile, C) @ (C, C) matmul instead of b_tile tiny M=1 matmuls.
    means = jnp.mean(x_ref[...], axis=2)                               # (b_tile, C) f32
    m1 = means * bn1s + bn1t
    g_all = jnp.maximum(
        jnp.dot(m1, wg_ref[...], preferred_element_type=jnp.float32) * bn2s + bn2t,
        0.0)                                                           # (b_tile, C) f32

    # ---- re-zero the slab halo rows (every step: cheap, and correct no matter
    #      how grid steps are sharded across TensorCores) ----------------------
    zeros_halo = jnp.zeros((b_tile, W, C), jnp.bfloat16)
    yslab_ref[:, 0:W, :] = zeros_halo
    yslab_ref[:, W + HW:W + HW + W, :] = zeros_halo

    # ---- per-batch-element loop (small static unroll; big data goes through
    #      the slab, so per-iteration live temporaries stay modest) ------------
    for b in range(b_tile):
        # In-kernel layout change: (C, HW) -> (HW, C) so C=128 rides the lanes.
        xt = x_ref[b].T                                                # (HW, C) f32
        y = (xt + g_all[b:b + 1, :]).astype(jnp.bfloat16)              # residual add
        yslab_ref[b, pl.ds(W, HW), :] = y                              # slab interior

        # 3x3 SAME conv: three accumulating bf16 MXU dots over dy-shifted,
        # tile-aligned row windows of the slab (f32 accumulation).
        top = yslab_ref[b, pl.ds(0, HW), :]        # y[h-1, w] (zero halo at h=0)
        bot = yslab_ref[b, pl.ds(2 * W, HW), :]    # y[h+1, w] (zero halo at h=H-1)
        p = (jnp.dot(y, w3_mid, preferred_element_type=jnp.float32)
             + jnp.dot(top, w3_top, preferred_element_type=jnp.float32)
             + jnp.dot(bot, w3_bot, preferred_element_type=jnp.float32))  # (HW, 3C)

        p_m1 = p[:, 0:C]          # kx = 0 partial sums (need y at w-1)
        p_0 = p[:, C:2 * C]       # kx = 1
        p_p1 = p[:, 2 * C:3 * C]  # kx = 2 (need y at w+1)

        # dx shifts via sublane rotation (XLU slot) + boundary masks.
        # pltpu.roll requires non-negative shifts: HW-1 == -1 circularly.
        acc = p_0
        acc = acc + jnp.where(left_ok, pltpu.roll(p_m1, 1, axis=0), 0.0)
        acc = acc + jnp.where(right_ok, pltpu.roll(p_p1, HW - 1, axis=0), 0.0)

        # fused BN #3 (conv bias folded) + ReLU, then back to channel-major.
        out = jnp.maximum(acc * bn3s + bn3t, 0.0)                      # (HW, C) f32
        out_ref[b] = out.T                                             # (C, HW)


# ----------------------------------------------------------------------------
# Chip-aware batch sub-tile: amortize per-grid-step overhead on single-TC
# chips; prefer an even grid-step count when 2 TensorCores are present.
# ----------------------------------------------------------------------------
def _num_tensorcores():
    try:
        n = getattr(jax.devices()[0], "num_cores", 1)
        return max(int(n), 1)
    except Exception:
        return 1


def _pick_b_tile(n, num_cores, max_tile=4):
    divs = [d for d in range(1, min(max_tile, n) + 1) if n % d == 0]
    if num_cores >= 2:
        even = [d for d in divs if (n // d) % 2 == 0]
        if even:
            return max(even)
        multi = [d for d in divs if n // d >= 2]
        if multi:
            return max(multi)
    return max(divs)


# ----------------------------------------------------------------------------
# Wrapper: free contiguous reshape, weight packing, bias folding + pallas_call
# ----------------------------------------------------------------------------
def ce_block_forward(x_nchw, p, b_tile=None):
    N, C, H, W = x_nchw.shape
    HW = H * W
    # Contiguous merge of the two minor dims: metadata-only, no HBM transpose.
    x2 = x_nchw.reshape(N, C, HW).astype(jnp.float32)

    if b_tile is None:
        b_tile = _pick_b_tile(N, _num_tensorcores())
    assert N % b_tile == 0

    # Fold the conv biases into the fused BN shifts (trace-time glue).
    bn2_t = p["b_gap"] * p["bn2_s"] + p["bn2_t"]
    bn3_t = p["b_last"] * p["bn3_s"] + p["bn3_t"]

    # Pack the six per-channel vectors into one (8, C) operand.
    bn_pack = jnp.zeros((8, C), jnp.float32)
    bn_pack = bn_pack.at[0:6, :].set(
        jnp.stack([p["bn1_s"], p["bn1_t"], p["bn2_s"], bn2_t,
                   p["bn3_s"], bn3_t], axis=0).astype(jnp.float32))

    # Kernel-format weights.
    wg_k = p["w_gap"][:, :, 0, 0].T.astype(jnp.float32)                # (Cin, Cout)
    # (Cout,Cin,ky,kx) -> (ky,Cin,kx,Cout) -> (3C, 3C) bf16 packed slab.
    w3_k = jnp.transpose(p["w_last"], (2, 1, 3, 0)).reshape(3 * C, 3 * C)
    w3_k = w3_k.astype(jnp.bfloat16)

    kernel = functools.partial(ce_block_kernel, img_w=W)
    out2 = pl.pallas_call(
        kernel,
        out_shape=jax.ShapeDtypeStruct((N, C, HW), jnp.float32),
        grid_spec=pltpu.PrefetchScalarGridSpec(
            num_scalar_prefetch=0,
            grid=(N // b_tile,),
            in_specs=[
                pl.BlockSpec((b_tile, C, HW), lambda n: (n, 0, 0)),    # x
                pl.BlockSpec((8, C), lambda n: (0, 0)),                # packed BN
                pl.BlockSpec((C, C), lambda n: (0, 0)),                # wg
                pl.BlockSpec((3 * C, 3 * C), lambda n: (0, 0)),        # w3 packed
            ],
            out_specs=pl.BlockSpec((b_tile, C, HW), lambda n: (n, 0, 0)),
            scratch_shapes=[pltpu.VMEM((b_tile, HW + 2 * W, C), jnp.bfloat16)],
        ),
        compiler_params=pltpu.CompilerParams(
            dimension_semantics=("parallel",)),
    )(x2, bn_pack, wg_k, w3_k)

    return out2.reshape(N, C, H, W)


# ----------------------------------------------------------------------------
# Pure-JAX reference (NCHW, same math, full f32) for correctness check
# ----------------------------------------------------------------------------
def ce_block_ref(x, p):
    bc = lambda v: v[None, :, None, None]
    m = jnp.mean(x, axis=(2, 3), keepdims=True)
    m = m * bc(p["bn1_s"]) + bc(p["bn1_t"])
    g = lax.conv_general_dilated(m, p["w_gap"], (1, 1), "VALID",
                                 dimension_numbers=("NCHW", "OIHW", "NCHW"))
    g = g + bc(p["b_gap"])
    g = jnp.maximum(g * bc(p["bn2_s"]) + bc(p["bn2_t"]), 0.0)
    y = g + x
    z = lax.conv_general_dilated(y, p["w_last"], (1, 1), ((1, 1), (1, 1)),
                                 dimension_numbers=("NCHW", "OIHW", "NCHW"))
    z = z + bc(p["b_last"])
    z = jnp.maximum(z * bc(p["bn3_s"]) + bc(p["bn3_t"]), 0.0)
    return z


# ----------------------------------------------------------------------------
# Deterministic parameter init (shapes from CEBlock.__init__, C fixed at 128)
# ----------------------------------------------------------------------------
def make_params(key, C=128):
    ks = random.split(key, 16)

    def bn(k0, k1, k2, k3):
        gamma = 1.0 + 0.1 * random.normal(k0, (C,))
        beta = 0.1 * random.normal(k1, (C,))
        mean = 0.1 * random.normal(k2, (C,))
        var = random.uniform(k3, (C,), minval=0.5, maxval=1.5)
        s = gamma / jnp.sqrt(var + 1e-5)
        return s.astype(jnp.float32), (beta - mean * s).astype(jnp.float32)

    bn1_s, bn1_t = bn(ks[0], ks[1], ks[2], ks[3])
    bn2_s, bn2_t = bn(ks[6], ks[7], ks[8], ks[9])
    bn3_s, bn3_t = bn(ks[12], ks[13], ks[14], ks[15])
    return dict(
        bn1_s=bn1_s, bn1_t=bn1_t,
        w_gap=(0.05 * random.normal(ks[4], (C, C, 1, 1))).astype(jnp.float32),
        b_gap=(0.1 * random.normal(ks[5], (C,))).astype(jnp.float32),
        bn2_s=bn2_s, bn2_t=bn2_t,
        w_last=(0.05 * random.normal(ks[10], (C, C, 3, 3))).astype(jnp.float32),
        b_last=(0.1 * random.normal(ks[11], (C,))).astype(jnp.float32),
        bn3_s=bn3_s, bn3_t=bn3_t,
    )


if __name__ == "__main__":
    key = jax.random.PRNGKey(0)
    k_x, k_p = random.split(key)
    N, C, H, W = 2, 128, 16, 16            # C=128 is fixed by CEBlock
    x = random.normal(k_x, (N, C, H, W), dtype=jnp.float32)
    params = make_params(k_p, C)

    out = jax.block_until_ready(ce_block_forward(x, params))
    ref = jax.block_until_ready(ce_block_ref(x, params))

    assert out.shape == (N, C, H, W)
    # bf16 MXU operands with f32 accumulation -> expected max abs err ~1e-2.
    max_err = float(jnp.max(jnp.abs(out - ref)))
    assert max_err < 1e-1, f"mismatch vs reference: max abs err {max_err}"
    print("KERNEL_OK")
</pallas_src>

<mosaic_0001>
module attributes {stable_mosaic.version = 11 : i64} {
  func.func @ce_block_kernel(%arg0: i32, %arg1: memref<2x128x256xf32, #tpu.memory_space<vmem>>, %arg2: memref<8x128xf32, #tpu.memory_space<vmem>>, %arg3: memref<128x128xf32, #tpu.memory_space<vmem>>, %arg4: memref<384x384xbf16, #tpu.memory_space<vmem>>, %arg5: memref<2x128x256xf32, #tpu.memory_space<vmem>>, %arg6: memref<2x288x128xbf16, #tpu.memory_space<vmem>>) attributes {dimension_semantics = [#tpu.dimension_semantics<parallel>], iteration_bounds = array<i64: 1>, scalar_prefetch = 0 : i64, scratch_operands = 1 : i64, tpu.core_type = #tpu.core_type<tc>, window_params = [{transform_indices = @transform_0, window_bounds = array<i64: 2, 128, 256>}, {pipeline_mode = #tpu.pipeline_mode<synchronous>, transform_indices = @transform_1, window_bounds = array<i64: 8, 128>}, {pipeline_mode = #tpu.pipeline_mode<synchronous>, transform_indices = @transform_2, window_bounds = array<i64: 128, 128>}, {pipeline_mode = #tpu.pipeline_mode<synchronous>, transform_indices = @transform_3, window_bounds = array<i64: 384, 384>}, {transform_indices = @transform_4, window_bounds = array<i64: 2, 128, 256>}]} {
    %c0 = arith.constant 0 : index
    %c0_0 = arith.constant 0 : index
    %0 = vector.load %arg2[%c0, %c0_0] : memref<8x128xf32, #tpu.memory_space<vmem>>, vector<8x128xf32>
    %1 = vector.extract_strided_slice %0 {offsets = [0, 0], sizes = [1, 128], strides = [1, 1]} : vector<8x128xf32> to vector<1x128xf32>
    %2 = vector.extract_strided_slice %0 {offsets = [1, 0], sizes = [1, 128], strides = [1, 1]} : vector<8x128xf32> to vector<1x128xf32>
    %3 = vector.extract_strided_slice %0 {offsets = [2, 0], sizes = [1, 128], strides = [1, 1]} : vector<8x128xf32> to vector<1x128xf32>
    %4 = vector.extract_strided_slice %0 {offsets = [3, 0], sizes = [1, 128], strides = [1, 1]} : vector<8x128xf32> to vector<1x128xf32>
    %5 = vector.extract_strided_slice %0 {offsets = [4, 0], sizes = [1, 128], strides = [1, 1]} : vector<8x128xf32> to vector<1x128xf32>
    %6 = vector.extract_strided_slice %0 {offsets = [5, 0], sizes = [1, 128], strides = [1, 1]} : vector<8x128xf32> to vector<1x128xf32>
    %c0_1 = arith.constant 0 : index
    %c0_2 = arith.constant 0 : index
    %7 = vector.load %arg4[%c0_1, %c0_2] : memref<384x384xbf16, #tpu.memory_space<vmem>>, vector<384x384xbf16>
    %8 = vector.extract_strided_slice %7 {offsets = [0, 0], sizes = [128, 384], strides = [1, 1]} : vector<384x384xbf16> to vector<128x384xbf16>
    %9 = vector.extract_strided_slice %7 {offsets = [128, 0], sizes = [128, 384], strides = [1, 1]} : vector<384x384xbf16> to vector<128x384xbf16>
    %10 = vector.extract_strided_slice %7 {offsets = [256, 0], sizes = [128, 384], strides = [1, 1]} : vector<384x384xbf16> to vector<128x384xbf16>
    %11 = tpu.iota {dimensions = array<i32: 0>} : vector<256x1xi32>
    %c16_i32 = arith.constant 16 : i32
    %c0_i32 = arith.constant 0 : i32
    %12 = arith.cmpi eq, %c16_i32, %c0_i32 : i32
    %c1_i32 = arith.constant 1 : i32
    %13 = arith.select %12, %c1_i32, %c16_i32 : i32
    %14 = vector.broadcast %13 : i32 to vector<256x1xi32>
    %15 = arith.remsi %11, %14 : vector<256x1xi32>
    %c0_i32_3 = arith.constant 0 : i32
    %16 = vector.broadcast %c0_i32_3 : i32 to vector<256x1xi32>
    %17 = arith.cmpi ne, %15, %16 : vector<256x1xi32>
    %c0_i32_4 = arith.constant 0 : i32
    %18 = vector.broadcast %c0_i32_4 : i32 to vector<256x1xi32>
    %19 = arith.cmpi slt, %15, %18 : vector<256x1xi32>
    %c0_i32_5 = arith.constant 0 : i32
    %20 = arith.cmpi slt, %13, %c0_i32_5 : i32
    %21 = vector.broadcast %20 : i1 to vector<256x1xi1>
    %22 = vector.broadcast %21 : vector<256x1xi1> to vector<256x1xi1>
    %23 = arith.xori %19, %22 : vector<256x1xi1>
    %24 = arith.andi %23, %17 : vector<256x1xi1>
    %25 = vector.broadcast %13 : i32 to vector<256x1xi32>
    %26 = arith.addi %15, %25 : vector<256x1xi32>
    %27 = arith.select %24, %26, %15 : vector<256x1xi1>, vector<256x1xi32>
    %c0_i32_6 = arith.constant 0 : i32
    %28 = vector.broadcast %c0_i32_6 : i32 to vector<256x1xi32>
    %29 = arith.cmpi ne, %27, %28 : vector<256x1xi32>
    %c15_i32 = arith.constant 15 : i32
    %30 = vector.broadcast %c15_i32 : i32 to vector<256x1xi32>
    %31 = arith.cmpi ne, %27, %30 : vector<256x1xi32>
    %c0_7 = arith.constant 0 : index
    %c0_8 = arith.constant 0 : index
    %c0_9 = arith.constant 0 : index
    %32 = vector.load %arg1[%c0_7, %c0_8, %c0_9] : memref<2x128x256xf32, #tpu.memory_space<vmem>>, vector<2x128x256xf32>
    %cst = arith.constant dense<0.000000e+00> : vector<2x128xf32>
    %33 = vector.multi_reduction <add>, %32, %cst [2] : vector<2x128x256xf32> to vector<2x128xf32>
    %cst_10 = arith.constant 2.560000e+02 : f32
    %34 = vector.broadcast %cst_10 : f32 to vector<2x128xf32>
    %35 = arith.divf %33, %34 : vector<2x128xf32>
    %36 = vector.broadcast %1 : vector<1x128xf32> to vector<2x128xf32>
    %37 = arith.mulf %35, %36 : vector<2x128xf32>
    %38 = vector.broadcast %2 : vector<1x128xf32> to vector<2x128xf32>
    %39 = arith.addf %37, %38 : vector<2x128xf32>
    %c0_11 = arith.constant 0 : index
    %c0_12 = arith.constant 0 : index
    %40 = vector.load %arg3[%c0_11, %c0_12] : memref<128x128xf32, #tpu.memory_space<vmem>>, vector<128x128xf32>
    %cst_13 = arith.constant dense<0.000000e+00> : vector<2x128xf32>
    %41 = tpu.matmul %39, %40, %cst_13 {dimension_numbers = #tpu.dot_dimension_numbers<[1], [0], [0], [1], [0, 0, 1, 1], [], []>} : vector<2x128xf32>, vector<128x128xf32>, vector<2x128xf32> -> vector<2x128xf32>
    %42 = vector.broadcast %3 : vector<1x128xf32> to vector<2x128xf32>
    %43 = arith.mulf %41, %42 : vector<2x128xf32>
    %44 = vector.broadcast %4 : vector<1x128xf32> to vector<2x128xf32>
    %45 = arith.addf %43, %44 : vector<2x128xf32>
    %cst_14 = arith.constant 0.000000e+00 : f32
    %46 = vector.broadcast %cst_14 : f32 to vector<2x128xf32>
    %47 = arith.maximumf %45, %46 : vector<2x128xf32>
    %cst_15 = arith.constant 0.000000e+00 : bf16
    %48 = vector.broadcast %cst_15 : bf16 to vector<2x16x128xbf16>
    %c0_16 = arith.constant 0 : index
    %c0_17 = arith.constant 0 : index
    %c0_18 = arith.constant 0 : index
    %49 = vector.load %arg6[%c0_16, %c0_17, %c0_18] : memref<2x288x128xbf16, #tpu.memory_space<vmem>>, vector<2x16x128xbf16>
    tpu.vector_store %arg6[%c0_16, %c0_17, %c0_18], %48 {strides = array<i32>} : memref<2x288x128xbf16, #tpu.memory_space<vmem>>, vector<2x16x128xbf16>,
    %c0_19 = arith.constant 0 : index
    %c272 = arith.constant 272 : index
    %c0_20 = arith.constant 0 : index
    %50 = vector.load %arg6[%c0_19, %c272, %c0_20] : memref<2x288x128xbf16, #tpu.memory_space<vmem>>, vector<2x16x128xbf16>
    tpu.vector_store %arg6[%c0_19, %c272, %c0_20], %48 {strides = array<i32>} : memref<2x288x128xbf16, #tpu.memory_space<vmem>>, vector<2x16x128xbf16>,
    %c0_21 = arith.constant 0 : index
    %c0_22 = arith.constant 0 : index
    %c0_23 = arith.constant 0 : index
    %51 = vector.load %arg1[%c0_21, %c0_22, %c0_23] : memref<2x128x256xf32, #tpu.memory_space<vmem>>, vector<1x128x256xf32>
    %52 = vector.shape_cast %51 : vector<1x128x256xf32> to vector<128x256xf32>
    %53 = tpu.transpose %52, [1, 0] : vector<128x256xf32> -> vector<256x128xf32>
    %54 = vector.extract_strided_slice %47 {offsets = [0, 0], sizes = [1, 128], strides = [1, 1]} : vector<2x128xf32> to vector<1x128xf32>
    %55 = vector.broadcast %54 : vector<1x128xf32> to vector<256x128xf32>
    %56 = arith.addf %53, %55 : vector<256x128xf32>
    %57 = arith.truncf %56 : vector<256x128xf32> to vector<256x128xbf16>
    %c0_24 = arith.constant 0 : index
    %c16 = arith.constant 16 : index
    %c0_25 = arith.constant 0 : index
    %58 = vector.load %arg6[%c0_24, %c16, %c0_25] : memref<2x288x128xbf16, #tpu.memory_space<vmem>>, vector<1x256x128xbf16>
    %59 = vector.shape_cast %58 : vector<1x256x128xbf16> to vector<256x128xbf16>
    %60 = vector.shape_cast %57 : vector<256x128xbf16> to vector<1x256x128xbf16>
    tpu.vector_store %arg6[%c0_24, %c16, %c0_25], %60 {strides = array<i32>} : memref<2x288x128xbf16, #tpu.memory_space<vmem>>, vector<1x256x128xbf16>,
    %c0_26 = arith.constant 0 : index
    %c0_27 = arith.constant 0 : index
    %c0_28 = arith.constant 0 : index
    %61 = vector.load %arg6[%c0_26, %c0_27, %c0_28] : memref<2x288x128xbf16, #tpu.memory_space<vmem>>, vector<1x256x128xbf16>
    %62 = vector.shape_cast %61 : vector<1x256x128xbf16> to vector<256x128xbf16>
    %c0_29 = arith.constant 0 : index
    %c32 = arith.constant 32 : index
    %c0_30 = arith.constant 0 : index
    %63 = vector.load %arg6[%c0_29, %c32, %c0_30] : memref<2x288x128xbf16, #tpu.memory_space<vmem>>, vector<1x256x128xbf16>
    %64 = vector.shape_cast %63 : vector<1x256x128xbf16> to vector<256x128xbf16>
    %cst_31 = arith.constant dense<0.000000e+00> : vector<256x384xf32>
    %65 = tpu.matmul %57, %9, %cst_31 {dimension_numbers = #tpu.dot_dimension_numbers<[1], [0], [0], [1], [0, 0, 1, 1], [], []>} : vector<256x128xbf16>, vector<128x384xbf16>, vector<256x384xf32> -> vector<256x384xf32>
    %cst_32 = arith.constant dense<0.000000e+00> : vector<256x384xf32>
    %66 = tpu.matmul %62, %8, %cst_32 {dimension_numbers = #tpu.dot_dimension_numbers<[1], [0], [0], [1], [0, 0, 1, 1], [], []>} : vector<256x128xbf16>, vector<128x384xbf16>, vector<256x384xf32> -> vector<256x384xf32>
    %67 = arith.addf %65, %66 : vector<256x384xf32>
    %cst_33 = arith.constant dense<0.000000e+00> : vector<256x384xf32>
    %68 = tpu.matmul %64, %10, %cst_33 {dimension_numbers = #tpu.dot_dimension_numbers<[1], [0], [0], [1], [0, 0, 1, 1], [], []>} : vector<256x128xbf16>, vector<128x384xbf16>, vector<256x384xf32> -> vector<256x384xf32>
    %69 = arith.addf %67, %68 : vector<256x384xf32>
    %70 = vector.extract_strided_slice %69 {offsets = [0, 0], sizes = [256, 128], strides = [1, 1]} : vector<256x384xf32> to vector<256x128xf32>
    %71 = vector.extract_strided_slice %69 {offsets = [0, 128], sizes = [256, 128], strides = [1, 1]} : vector<256x384xf32> to vector<256x128xf32>
    %72 = vector.extract_strided_slice %69 {offsets = [0, 256], sizes = [256, 128], strides = [1, 1]} : vector<256x384xf32> to vector<256x128xf32>
    %c1_i32_34 = arith.constant 1 : i32
    %73 = tpu.dynamic_rotate %70 by %c1_i32_34 dim 0 : vector<256x128xf32>, i32 -> vector<256x128xf32>
    %cst_35 = arith.constant 0.000000e+00 : f32
    %74 = vector.shape_cast %29 : vector<256x1xi1> to vector<256x1xi1>
    %75 = vector.broadcast %74 : vector<256x1xi1> to vector<256x128xi1>
    %76 = vector.broadcast %cst_35 : f32 to vector<256x128xf32>
    %77 = arith.select %75, %73, %76 : vector<256x128xi1>, vector<256x128xf32>
    %78 = arith.addf %71, %77 : vector<256x128xf32>
    %c255_i32 = arith.constant 255 : i32
    %79 = tpu.dynamic_rotate %72 by %c255_i32 dim 0 : vector<256x128xf32>, i32 -> vector<256x128xf32>
    %cst_36 = arith.constant 0.000000e+00 : f32
    %80 = vector.shape_cast %31 : vector<256x1xi1> to vector<256x1xi1>
    %81 = vector.broadcast %80 : vector<256x1xi1> to vector<256x128xi1>
    %82 = vector.broadcast %cst_36 : f32 to vector<256x128xf32>
    %83 = arith.select %81, %79, %82 : vector<256x128xi1>, vector<256x128xf32>
    %84 = arith.addf %78, %83 : vector<256x128xf32>
    %85 = vector.broadcast %5 : vector<1x128xf32> to vector<256x128xf32>
    %86 = arith.mulf %84, %85 : vector<256x128xf32>
    %87 = vector.broadcast %6 : vector<1x128xf32> to vector<256x128xf32>
    %88 = arith.addf %86, %87 : vector<256x128xf32>
    %cst_37 = arith.constant 0.000000e+00 : f32
    %89 = vector.broadcast %cst_37 : f32 to vector<256x128xf32>
    %90 = arith.maximumf %88, %89 : vector<256x128xf32>
    %91 = tpu.transpose %90, [1, 0] : vector<256x128xf32> -> vector<128x256xf32>
    %c0_38 = arith.constant 0 : index
    %c0_39 = arith.constant 0 : index
    %c0_40 = arith.constant 0 : index
    %92 = vector.load %arg5[%c0_38, %c0_39, %c0_40] : memref<2x128x256xf32, #tpu.memory_space<vmem>>, vector<1x128x256xf32>
    %93 = vector.shape_cast %92 : vector<1x128x256xf32> to vector<128x256xf32>
    %94 = vector.shape_cast %91 : vector<128x256xf32> to vector<1x128x256xf32>
    tpu.vector_store %arg5[%c0_38, %c0_39, %c0_40], %94 {strides = array<i32>} : memref<2x128x256xf32, #tpu.memory_space<vmem>>, vector<1x128x256xf32>,
    %c1 = arith.constant 1 : index
    %c0_41 = arith.constant 0 : index
    %c0_42 = arith.constant 0 : index
    %95 = vector.load %arg1[%c1, %c0_41, %c0_42] : memref<2x128x256xf32, #tpu.memory_space<vmem>>, vector<1x128x256xf32>
    %96 = vector.shape_cast %95 : vector<1x128x256xf32> to vector<128x256xf32>
    %97 = tpu.transpose %96, [1, 0] : vector<128x256xf32> -> vector<256x128xf32>
    %98 = vector.extract_strided_slice %47 {offsets = [1, 0], sizes = [1, 128], strides = [1, 1]} : vector<2x128xf32> to vector<1x128xf32>
    %99 = vector.broadcast %98 : vector<1x128xf32> to vector<256x128xf32>
    %100 = arith.addf %97, %99 : vector<256x128xf32>
    %101 = arith.truncf %100 : vector<256x128xf32> to vector<256x128xbf16>
    %c1_43 = arith.constant 1 : index
    %c16_44 = arith.constant 16 : index
    %c0_45 = arith.constant 0 : index
    %102 = vector.load %arg6[%c1_43, %c16_44, %c0_45] : memref<2x288x128xbf16, #tpu.memory_space<vmem>>, vector<1x256x128xbf16>
    %103 = vector.shape_cast %102 : vector<1x256x128xbf16> to vector<256x128xbf16>
    %104 = vector.shape_cast %101 : vector<256x128xbf16> to vector<1x256x128xbf16>
    tpu.vector_store %arg6[%c1_43, %c16_44, %c0_45], %104 {strides = array<i32>} : memref<2x288x128xbf16, #tpu.memory_space<vmem>>, vector<1x256x128xbf16>,
    %c1_46 = arith.constant 1 : index
    %c0_47 = arith.constant 0 : index
    %c0_48 = arith.constant 0 : index
    %105 = vector.load %arg6[%c1_46, %c0_47, %c0_48] : memref<2x288x128xbf16, #tpu.memory_space<vmem>>, vector<1x256x128xbf16>
    %106 = vector.shape_cast %105 : vector<1x256x128xbf16> to vector<256x128xbf16>
    %c1_49 = arith.constant 1 : index
    %c32_50 = arith.constant 32 : index
    %c0_51 = arith.constant 0 : index
    %107 = vector.load %arg6[%c1_49, %c32_50, %c0_51] : memref<2x288x128xbf16, #tpu.memory_space<vmem>>, vector<1x256x128xbf16>
    %108 = vector.shape_cast %107 : vector<1x256x128xbf16> to vector<256x128xbf16>
    %cst_52 = arith.constant dense<0.000000e+00> : vector<256x384xf32>
    %109 = tpu.matmul %101, %9, %cst_52 {dimension_numbers = #tpu.dot_dimension_numbers<[1], [0], [0], [1], [0, 0, 1, 1], [], []>} : vector<256x128xbf16>, vector<128x384xbf16>, vector<256x384xf32> -> vector<256x384xf32>
    %cst_53 = arith.constant dense<0.000000e+00> : vector<256x384xf32>
    %110 = tpu.matmul %106, %8, %cst_53 {dimension_numbers = #tpu.dot_dimension_numbers<[1], [0], [0], [1], [0, 0, 1, 1], [], []>} : vector<256x128xbf16>, vector<128x384xbf16>, vector<256x384xf32> -> vector<256x384xf32>
    %111 = arith.addf %109, %110 : vector<256x384xf32>
    %cst_54 = arith.constant dense<0.000000e+00> : vector<256x384xf32>
    %112 = tpu.matmul %108, %10, %cst_54 {dimension_numbers = #tpu.dot_dimension_numbers<[1], [0], [0], [1], [0, 0, 1, 1], [], []>} : vector<256x128xbf16>, vector<128x384xbf16>, vector<256x384xf32> -> vector<256x384xf32>
    %113 = arith.addf %111, %112 : vector<256x384xf32>
    %114 = vector.extract_strided_slice %113 {offsets = [0, 0], sizes = [256, 128], strides = [1, 1]} : vector<256x384xf32> to vector<256x128xf32>
    %115 = vector.extract_strided_slice %113 {offsets = [0, 128], sizes = [256, 128], strides = [1, 1]} : vector<256x384xf32> to vector<256x128xf32>
    %116 = vector.extract_strided_slice %113 {offsets = [0, 256], sizes = [256, 128], strides = [1, 1]} : vector<256x384xf32> to vector<256x128xf32>
    %c1_i32_55 = arith.constant 1 : i32
    %117 = tpu.dynamic_rotate %114 by %c1_i32_55 dim 0 : vector<256x128xf32>, i32 -> vector<256x128xf32>
    %cst_56 = arith.constant 0.000000e+00 : f32
    %118 = vector.shape_cast %29 : vector<256x1xi1> to vector<256x1xi1>
    %119 = vector.broadcast %118 : vector<256x1xi1> to vector<256x128xi1>
    %120 = vector.broadcast %cst_56 : f32 to vector<256x128xf32>
    %121 = arith.select %119, %117, %120 : vector<256x128xi1>, vector<256x128xf32>
    %122 = arith.addf %115, %121 : vector<256x128xf32>
    %c255_i32_57 = arith.constant 255 : i32
    %123 = tpu.dynamic_rotate %116 by %c255_i32_57 dim 0 : vector<256x128xf32>, i32 -> vector<256x128xf32>
    %cst_58 = arith.constant 0.000000e+00 : f32
    %124 = vector.shape_cast %31 : vector<256x1xi1> to vector<256x1xi1>
    %125 = vector.broadcast %124 : vector<256x1xi1> to vector<256x128xi1>
    %126 = vector.broadcast %cst_58 : f32 to vector<256x128xf32>
    %127 = arith.select %125, %123, %126 : vector<256x128xi1>, vector<256x128xf32>
    %128 = arith.addf %122, %127 : vector<256x128xf32>
    %129 = vector.broadcast %5 : vector<1x128xf32> to vector<256x128xf32>
    %130 = arith.mulf %128, %129 : vector<256x128xf32>
    %131 = vector.broadcast %6 : vector<1x128xf32> to vector<256x128xf32>
    %132 = arith.addf %130, %131 : vector<256x128xf32>
    %cst_59 = arith.constant 0.000000e+00 : f32
    %133 = vector.broadcast %cst_59 : f32 to vector<256x128xf32>
    %134 = arith.maximumf %132, %133 : vector<256x128xf32>
    %135 = tpu.transpose %134, [1, 0] : vector<256x128xf32> -> vector<128x256xf32>
    %c1_60 = arith.constant 1 : index
    %c0_61 = arith.constant 0 : index
    %c0_62 = arith.constant 0 : index
    %136 = vector.load %arg5[%c1_60, %c0_61, %c0_62] : memref<2x128x256xf32, #tpu.memory_space<vmem>>, vector<1x128x256xf32>
    %137 = vector.shape_cast %136 : vector<1x128x256xf32> to vector<128x256xf32>
    %138 = vector.shape_cast %135 : vector<128x256xf32> to vector<1x128x256xf32>
    tpu.vector_store %arg5[%c1_60, %c0_61, %c0_62], %138 {strides = array<i32>} : memref<2x128x256xf32, #tpu.memory_space<vmem>>, vector<1x128x256xf32>,
    return
  }
  func.func @transform_0(%arg0: i32) -> (i32, i32, i32) {
    %c0_i32 = arith.constant 0 : i32
    %c0_i32_0 = arith.constant 0 : i32
    %c0_i32_1 = arith.constant 0 : i32
    return %arg0, %c0_i32, %c0_i32_0 : i32, i32, i32
  }
  func.func @transform_1(%arg0: i32) -> (i32, i32) {
    %c0_i32 = arith.constant 0 : i32
    %c0_i32_0 = arith.constant 0 : i32
    %c0_i32_1 = arith.constant 0 : i32
    return %c0_i32, %c0_i32_0 : i32, i32
  }
  func.func @transform_2(%arg0: i32) -> (i32, i32) {
    %c0_i32 = arith.constant 0 : i32
    %c0_i32_0 = arith.constant 0 : i32
    %c0_i32_1 = arith.constant 0 : i32
    return %c0_i32, %c0_i32_0 : i32, i32
  }
  func.func @transform_3(%arg0: i32) -> (i32, i32) {
    %c0_i32 = arith.constant 0 : i32
    %c0_i32_0 = arith.constant 0 : i32
    %c0_i32_1 = arith.constant 0 : i32
    return %c0_i32, %c0_i32_0 : i32, i32
  }
  func.func @transform_4(%arg0: i32) -> (i32, i32, i32) {
    %c0_i32 = arith.constant 0 : i32
    %c0_i32_0 = arith.constant 0 : i32
    %c0_i32_1 = arith.constant 0 : i32
    return %arg0, %c0_i32, %c0_i32_0 : i32, i32, i32
  }
}

</mosaic_0001>

<llo_original>
// kernel: tpu_custom_call.1
$region0: #{tpu_custom_call.1}
  #allocation0 [shape = 'u32[]', space=smem, size = 0x4, offset = 0x4, fixed_abs, tag = 'smem constant byte address 0x4 - core index']
  #allocation1 [shape = 'u32[144,128]{1,0:T(1,128)}', space=vmem, size = 0x12000, scoped, tag = 'internal scratch']
  #allocation2 [shape = 'bf16[2,288,128]{2,1,0:T(16,128)(2,1)}', space=vmem, size = 0x24000, scoped, tag = 'scratch operand']
  %s0 = inlined_call_operand.hbm [shape: f32[2,128,256], index: 0, kind: input, shape index: {}]
  %s1 = inlined_call_operand.hbm [shape: f32[8,128], index: 1, kind: input, shape index: {}]
  %s2 = inlined_call_operand.hbm [shape: f32[128,128], index: 2, kind: input, shape index: {}]
  %s3 = inlined_call_operand.hbm [shape: bf16[384,384], index: 3, kind: input, shape index: {}]
  %s4 = inlined_call_operand.hbm [shape: f32[2,128,256], index: 4, kind: output, shape index: {}]
  %s5 = sld [smem:[#allocation0]]
  $region42: #{tpu_custom_call.1} parent=0
    _
  %s7 = ssub.s32 1, %s5
  %s8 = scalar_select 0, %s7, %s5
  $region1: #{tpu_custom_call.1} parent=0
    #allocation3 [shape = 'u8[262144]{0}', space=vmem, size = 0x40000, scoped, tag = 'input window, operand 0, single buffered']
    #allocation4 [shape = 's32[1]{0}', space=sflag, size = 0x4, scoped, tag = 'scoped memory for tpu_custom_call.1']
    #allocation5 [shape = 's32[1]{0}', space=sflag, size = 0x4, scoped, tag = 'scoped memory for tpu_custom_call.1']
    #allocation6 [shape = 'u8[4096]{0}', space=vmem, size = 0x1000, scoped, tag = 'input window, operand 1, single buffered']
    #allocation7 [shape = 's32[1]{0}', space=sflag, size = 0x4, scoped, tag = 'scoped memory for tpu_custom_call.1']
    #allocation8 [shape = 'u8[65536]{0}', space=vmem, size = 0x10000, scoped, tag = 'input window, operand 2, single buffered']
    #allocation9 [shape = 'u8[294912]{0}', space=vmem, size = 0x48000, scoped, tag = 'input window, operand 3, single buffered']
    #allocation10 [shape = 's32[1]{0}', space=sflag, size = 0x4, scoped, tag = 'scoped memory for tpu_custom_call.1']
    #allocation11 [shape = 'u8[262144]{0}', space=vmem, size = 0x40000, scoped, tag = 'output window, operand 0, single buffered']
    %9 = vsyncpa [#allocation4], 0
    %10 = vsyncpa [#allocation7], 0
    %11 = vsyncpa [#allocation10], 0
    %12 = vsyncpa [#allocation5], 0
    // Predicated region
    $region2: #{tpu_custom_call.1} parent=1 // pred_check
      _
    $region3: #{tpu_custom_call.1} parent=1 // pred_check_branch
      %14 = sbr.rel (0) target = $region5
    $region4: #{tpu_custom_call.1} parent=1 // pred_region
      %s16 = ssub.s32 8192, 8192
      %17 = vsyncadd [#allocation4], %s16
      %s18 = sshll.u32 [#allocation3], 4
      %s19 = int_to_ptr.vmem [resolvable:$true] %s18
      %24 = dma.hbm_to_vmem [thread:$0]  %s0, 8192, %s19, [#allocation4], 256, 256, 16
    $region5: #{tpu_custom_call.1} parent=1 // pred_fallthru
      _
    // Predicated region
    $region6: #{tpu_custom_call.1} parent=1 // pred_check
      _
    $region7: #{tpu_custom_call.1} parent=1 // pred_check_branch
      %26 = sbr.rel (0) target = $region9
    $region8: #{tpu_custom_call.1} parent=1 // pred_region
      %s28 = ssub.s32 128, 128
      %29 = vsyncadd [#allocation7], %s28
      %s31 = sshll.u32 [#allocation6], 4
      %s32 = int_to_ptr.vmem [resolvable:$true] %s31
      %34 = dma.hbm_to_vmem [thread:$0]  %s1, 128, %s32, [#allocation7]
    $region9: #{tpu_custom_call.1} parent=1 // pred_fallthru
      _
    // Predicated region
    $region10: #{tpu_custom_call.1} parent=1 // pred_check
      _
    $region11: #{tpu_custom_call.1} parent=1 // pred_check_branch
      %36 = sbr.rel (0) target = $region13
    $region12: #{tpu_custom_call.1} parent=1 // pred_region
      %s38 = ssub.s32 2048, 2048
      %39 = vsyncadd [#allocation7], %s38
      %s40 = sshll.u32 [#allocation8], 4
      %s41 = int_to_ptr.vmem [resolvable:$true] %s40
      %46 = dma.hbm_to_vmem [thread:$0]  %s2, 2048, %s41, [#allocation7], 128, 128, 8
    $region13: #{tpu_custom_call.1} parent=1 // pred_fallthru
      _
    // Predicated region
    $region14: #{tpu_custom_call.1} parent=1 // pred_check
      _
    $region15: #{tpu_custom_call.1} parent=1 // pred_check_branch
      %48 = sbr.rel (0) target = $region17
    $region16: #{tpu_custom_call.1} parent=1 // pred_region
      %s50 = ssub.s32 9216, 9216
      %51 = vsyncadd [#allocation10], %s50
      %s52 = sshll.u32 [#allocation9], 4
      %s53 = int_to_ptr.vmem [resolvable:$true] %s52
      %58 = dma.hbm_to_vmem [thread:$0]  %s3, 9216, %s53, [#allocation10], 192, 192, 12
    $region17: #{tpu_custom_call.1} parent=1 // pred_fallthru
      _
    // Predicated region
    $region18: #{tpu_custom_call.1} parent=1 // pred_check
      _
    $region19: #{tpu_custom_call.1} parent=1 // pred_check_branch
      %60 = sbr.rel (0) target = $region21
    $region20: #{tpu_custom_call.1} parent=1 // pred_region
      %61 = dma.done [#allocation4], 8192
    $region21: #{tpu_custom_call.1} parent=1 // pred_fallthru
      _
    // Predicated region
    $region22: #{tpu_custom_call.1} parent=1 // pred_check
      _
    $region23: #{tpu_custom_call.1} parent=1 // pred_check_branch
      %63 = sbr.rel (0) target = $region25
    $region24: #{tpu_custom_call.1} parent=1 // pred_region
      %64 = dma.done [#allocation7], 128
    $region25: #{tpu_custom_call.1} parent=1 // pred_fallthru
      _
    // Predicated region
    $region26: #{tpu_custom_call.1} parent=1 // pred_check
      _
    $region27: #{tpu_custom_call.1} parent=1 // pred_check_branch
      %66 = sbr.rel (0) target = $region29
    $region28: #{tpu_custom_call.1} parent=1 // pred_region
      %67 = dma.done [#allocation7], 2048
    $region29: #{tpu_custom_call.1} parent=1 // pred_fallthru
      _
    // Predicated region
    $region30: #{tpu_custom_call.1} parent=1 // pred_check
      _
    $region31: #{tpu_custom_call.1} parent=1 // pred_check_branch
      %69 = sbr.rel (0) target = $region33
    $region32: #{tpu_custom_call.1} parent=1 // pred_region
      %70 = dma.done [#allocation10], 9216
    $region33: #{tpu_custom_call.1} parent=1 // pred_fallthru
      _
    %v72 = vld [vmem:[#allocation6] sm:$0xff]
    %v73 = vld [vmem:[#allocation9] sm:$0xff]
    %v74 = vld [vmem:[#allocation9 + $0x8] sm:$0xf]
    %v75 = vld [vmem:[#allocation9 + $0xc] sm:$0xff]
    %v76 = vld [vmem:[#allocation9 + $0x14] sm:$0xf]
    %v77 = vld [vmem:[#allocation9 + $0x18] sm:$0xff]
    %v78 = vld [vmem:[#allocation9 + $0x20] sm:$0xf]
    %v79 = vld [vmem:[#allocation9 + $0x24] sm:$0xff]
    %v80 = vld [vmem:[#allocation9 + $0x2c] sm:$0xf]
    %v81 = vld [vmem:[#allocation9 + $0x30] sm:$0xff]
    %v82 = vld [vmem:[#allocation9 + $0x38] sm:$0xf]
    %v83 = vld [vmem:[#allocation9 + $0x3c] sm:$0xff]
    %v84 = vld [vmem:[#allocation9 + $0x44] sm:$0xf]
    %v85 = vld [vmem:[#allocation9 + $0x48] sm:$0xff]
    %v86 = vld [vmem:[#allocation9 + $0x50] sm:$0xf]
    %v87 = vld [vmem:[#allocation9 + $0x54] sm:$0xff]
    %v88 = vld [vmem:[#allocation9 + $0x5c] sm:$0xf]
    %v89 = vld [vmem:[#allocation9 + $0x60] sm:$0xff]
    %v90 = vld [vmem:[#allocation9 + $0x68] sm:$0xf]
    %v91 = vld [vmem:[#allocation9 + $0x6c] sm:$0xff]
    %v92 = vld [vmem:[#allocation9 + $0x74] sm:$0xf]
    %v93 = vld [vmem:[#allocation9 + $0x78] sm:$0xff]
    %v94 = vld [vmem:[#allocation9 + $0x80] sm:$0xf]
    %v95 = vld [vmem:[#allocation9 + $0x84] sm:$0xff]
    %v96 = vld [vmem:[#allocation9 + $0x8c] sm:$0xf]
    %v97 = vld [vmem:[#allocation9 + $0x90] sm:$0xff]
    %v98 = vld [vmem:[#allocation9 + $0x98] sm:$0xf]
    %v99 = vld [vmem:[#allocation9 + $0x9c] sm:$0xff]
    %v100 = vld [vmem:[#allocation9 + $0xa4] sm:$0xf]
    %v101 = vld [vmem:[#allocation9 + $0xa8] sm:$0xff]
    %v102 = vld [vmem:[#allocation9 + $0xb0] sm:$0xf]
    %v103 = vld [vmem:[#allocation9 + $0xb4] sm:$0xff]
    %v104 = vld [vmem:[#allocation9 + $0xbc] sm:$0xf]
    %v105 = vld [vmem:[#allocation9 + $0xc0] sm:$0xff]
    %v106 = vld [vmem:[#allocation9 + $0xc8] sm:$0xf]
    %v107 = vld [vmem:[#allocation9 + $0xcc] sm:$0xff]
    %v108 = vld [vmem:[#allocation9 + $0xd4] sm:$0xf]
    %v109 = vld [vmem:[#allocation9 + $0xd8] sm:$0xff]
    %v110 = vld [vmem:[#allocation9 + $0xe0] sm:$0xf]
    %v111 = vld [vmem:[#allocation9 + $0xe4] sm:$0xff]
    %v112 = vld [vmem:[#allocation9 + $0xec] sm:$0xf]
    %v113 = vld [vmem:[#allocation9 + $0xf0] sm:$0xff]
    %v114 = vld [vmem:[#allocation9 + $0xf8] sm:$0xf]
    %v115 = vld [vmem:[#allocation9 + $0xfc] sm:$0xff]
    %v116 = vld [vmem:[#allocation9 + $0x104] sm:$0xf]
    %v117 = vld [vmem:[#allocation9 + $0x108] sm:$0xff]
    %v118 = vld [vmem:[#allocation9 + $0x110] sm:$0xf]
    %v119 = vld [vmem:[#allocation9 + $0x114] sm:$0xff]
    %v120 = vld [vmem:[#allocation9 + $0x11c] sm:$0xf]
    %v121 = vld [vmem:[#allocation9 + $0x120] sm:$0xff]
    %v122 = vld [vmem:[#allocation9 + $0x128] sm:$0xf]
    %v123 = vld [vmem:[#allocation9 + $0x12c] sm:$0xff]
    %v124 = vld [vmem:[#allocation9 + $0x134] sm:$0xf]
    %v125 = vld [vmem:[#allocation9 + $0x138] sm:$0xff]
    %v126 = vld [vmem:[#allocation9 + $0x140] sm:$0xf]
    %v127 = vld [vmem:[#allocation9 + $0x144] sm:$0xff]
    %v128 = vld [vmem:[#allocation9 + $0x14c] sm:$0xf]
    %v129 = vld [vmem:[#allocation9 + $0x150] sm:$0xff]
    %v130 = vld [vmem:[#allocation9 + $0x158] sm:$0xf]
    %v131 = vld [vmem:[#allocation9 + $0x15c] sm:$0xff]
    %v132 = vld [vmem:[#allocation9 + $0x164] sm:$0xf]
    %v133 = vld [vmem:[#allocation9 + $0x168] sm:$0xff]
    %v134 = vld [vmem:[#allocation9 + $0x170] sm:$0xf]
    %v135 = vld [vmem:[#allocation9 + $0x174] sm:$0xff]
    %v136 = vld [vmem:[#allocation9 + $0x17c] sm:$0xf]
    %v137 = vld [vmem:[#allocation9 + $0x180] sm:$0xff]
    %v138 = vld [vmem:[#allocation9 + $0x188] sm:$0xf]
    %v139 = vld [vmem:[#allocation9 + $0x18c] sm:$0xff]
    %v140 = vld [vmem:[#allocation9 + $0x194] sm:$0xf]
    %v141 = vld [vmem:[#allocation9 + $0x198] sm:$0xff]
    %v142 = vld [vmem:[#allocation9 + $0x1a0] sm:$0xf]
    %v143 = vld [vmem:[#allocation9 + $0x1a4] sm:$0xff]
    %v144 = vld [vmem:[#allocation9 + $0x1ac] sm:$0xf]
    %v145 = vld [vmem:[#allocation9 + $0x1b0] sm:$0xff]
    %v146 = vld [vmem:[#allocation9 + $0x1b8] sm:$0xf]
    %v147 = vld [vmem:[#allocation9 + $0x1bc] sm:$0xff]
    %v148 = vld [vmem:[#allocation9 + $0x1c4] sm:$0xf]
    %v149 = vld [vmem:[#allocation9 + $0x1c8] sm:$0xff]
    %v150 = vld [vmem:[#allocation9 + $0x1d0] sm:$0xf]
    %v151 = vld [vmem:[#allocation9 + $0x1d4] sm:$0xff]
    %v152 = vld [vmem:[#allocation9 + $0x1dc] sm:$0xf]
    %v153 = vld [vmem:[#allocation9 + $0x1e0] sm:$0xff]
    %v154 = vld [vmem:[#allocation9 + $0x1e8] sm:$0xf]
    %v155 = vld [vmem:[#allocation9 + $0x1ec] sm:$0xff]
    %v156 = vld [vmem:[#allocation9 + $0x1f4] sm:$0xf]
    %v157 = vld [vmem:[#allocation9 + $0x1f8] sm:$0xff]
    %v158 = vld [vmem:[#allocation9 + $0x200] sm:$0xf]
    %v159 = vld [vmem:[#allocation9 + $0x204] sm:$0xff]
    %v160 = vld [vmem:[#allocation9 + $0x20c] sm:$0xf]
    %v161 = vld [vmem:[#allocation9 + $0x210] sm:$0xff]
    %v162 = vld [vmem:[#allocation9 + $0x218] sm:$0xf]
    %v163 = vld [vmem:[#allocation9 + $0x21c] sm:$0xff]
    %v164 = vld [vmem:[#allocation9 + $0x224] sm:$0xf]
    %v165 = vld [vmem:[#allocation9 + $0x228] sm:$0xff]
    %v166 = vld [vmem:[#allocation9 + $0x230] sm:$0xf]
    %v167 = vld [vmem:[#allocation9 + $0x234] sm:$0xff]
    %v168 = vld [vmem:[#allocation9 + $0x23c] sm:$0xf]
    %v169 = vlaneseq
    %v170 = vshrl.u32 %v169, 7
    %v171 = vadd.s32 %v170, 8
    %v172 = vadd.s32 %v170, 16
    %v173 = vadd.s32 %v170, 24
    %v174 = vadd.s32 %v170, 32
    %v175 = vadd.s32 %v170, 40
    %v176 = vadd.s32 %v170, 48
    %v177 = vadd.s32 %v170, 56
    %v178 = vadd.s32 %v170, 64
    %v179 = vadd.s32 %v170, 72
    %v180 = vadd.s32 %v170, 80
    %v181 = vadd.s32 %v170, 88
    %v182 = vadd.s32 %v170, 96
    %v183 = vadd.s32 %v170, 104
    %v184 = vadd.s32 %v170, 112
    %v185 = vadd.s32 %v170, 120
    %v186 = vadd.s32 %v170, 128
    %v187 = vadd.s32 %v170, 136
    %v188 = vadd.s32 %v170, 144
    %v189 = vadd.s32 %v170, 152
    %v190 = vadd.s32 %v170, 160
    %v191 = vadd.s32 %v170, 168
    %v192 = vadd.s32 %v170, 176
    %v193 = vadd.s32 %v170, 184
    %v194 = vadd.s32 %v170, 192
    %v195 = vadd.s32 %v170, 200
    %v196 = vadd.s32 %v170, 208
    %v197 = vadd.s32 %v170, 216
    %v198 = vadd.s32 %v170, 224
    %v199 = vadd.s32 %v170, 232
    %v200 = vadd.s32 %v170, 240
    %v201 = vadd.s32 %v170, 248
    %vm202 = vcmp.lt.s32.totalorder %v170, 0
    %v203 = vsub.s32 0, %v170
    %v204 = vsel %vm202, %v203, %v170
    %v205 = vshrl.u32 %v204, 4
    %v206 = vand.u32 %v204, 15
    %v207 = vsub.s32 0, %v206
    %v208 = vsel %vm202, %v207, %v206
    %vm209 = vcmp.lt.s32.totalorder %v171, 0
    %v210 = vsub.s32 0, %v171
    %v211 = vsel %vm209, %v210, %v171
    %v212 = vshrl.u32 %v211, 4
    %v213 = vand.u32 %v211, 15
    %v214 = vsub.s32 0, %v213
    %v215 = vsel %vm209, %v214, %v213
    %vm216 = vcmp.lt.s32.totalorder %v172, 0
    %v217 = vsub.s32 0, %v172
    %v218 = vsel %vm216, %v217, %v172
    %v219 = vshrl.u32 %v218, 4
    %v220 = vand.u32 %v218, 15
    %v221 = vsub.s32 0, %v220
    %v222 = vsel %vm216, %v221, %v220
    %vm223 = vcmp.lt.s32.totalorder %v173, 0
    %v224 = vsub.s32 0, %v173
    %v225 = vsel %vm223, %v224, %v173
    %v226 = vshrl.u32 %v225, 4
    %v227 = vand.u32 %v225, 15
    %v228 = vsub.s32 0, %v227
    %v229 = vsel %vm223, %v228, %v227
    %vm230 = vcmp.lt.s32.totalorder %v174, 0
    %v231 = vsub.s32 0, %v174
    %v232 = vsel %vm230, %v231, %v174
    %v233 = vshrl.u32 %v232, 4
    %v234 = vand.u32 %v232, 15
    %v235 = vsub.s32 0, %v234
    %v236 = vsel %vm230, %v235, %v234
    %vm237 = vcmp.lt.s32.totalorder %v175, 0
    %v238 = vsub.s32 0, %v175
    %v239 = vsel %vm237, %v238, %v175
    %v240 = vshrl.u32 %v239, 4
    %v241 = vand.u32 %v239, 15
    %v242 = vsub.s32 0, %v241
    %v243 = vsel %vm237, %v242, %v241
    %vm244 = vcmp.lt.s32.totalorder %v176, 0
    %v245 = vsub.s32 0, %v176
    %v246 = vsel %vm244, %v245, %v176
    %v247 = vshrl.u32 %v246, 4
    %v248 = vand.u32 %v246, 15
    %v249 = vsub.s32 0, %v248
    %v250 = vsel %vm244, %v249, %v248
    %vm251 = vcmp.lt.s32.totalorder %v177, 0
    %v252 = vsub.s32 0, %v177
    %v253 = vsel %vm251, %v252, %v177
    %v254 = vshrl.u32 %v253, 4
    %v255 = vand.u32 %v253, 15
    %v256 = vsub.s32 0, %v255
    %v257 = vsel %vm251, %v256, %v255
    %vm258 = vcmp.lt.s32.totalorder %v178, 0
    %v259 = vsub.s32 0, %v178
    %v260 = vsel %vm258, %v259, %v178
    %v261 = vshrl.u32 %v260, 4
    %v262 = vand.u32 %v260, 15
    %v263 = vsub.s32 0, %v262
    %v264 = vsel %vm258, %v263, %v262
    %vm265 = vcmp.lt.s32.totalorder %v179, 0
    %v266 = vsub.s32 0, %v179
    %v267 = vsel %vm265, %v266, %v179
    %v268 = vshrl.u32 %v267, 4
    %v269 = vand.u32 %v267, 15
    %v270 = vsub.s32 0, %v269
    %v271 = vsel %vm265, %v270, %v269
    %vm272 = vcmp.lt.s32.totalorder %v180, 0
    %v273 = vsub.s32 0, %v180
    %v274 = vsel %vm272, %v273, %v180
    %v275 = vshrl.u32 %v274, 4
    %v276 = vand.u32 %v274, 15
    %v277 = vsub.s32 0, %v276
    %v278 = vsel %vm272, %v277, %v276
    %vm279 = vcmp.lt.s32.totalorder %v181, 0
    %v280 = vsub.s32 0, %v181
    %v281 = vsel %vm279, %v280, %v181
    %v282 = vshrl.u32 %v281, 4
    %v283 = vand.u32 %v281, 15
    %v284 = vsub.s32 0, %v283
    %v285 = vsel %vm279, %v284, %v283
    %vm286 = vcmp.lt.s32.totalorder %v182, 0
    %v287 = vsub.s32 0, %v182
    %v288 = vsel %vm286, %v287, %v182
    %v289 = vshrl.u32 %v288, 4
    %v290 = vand.u32 %v288, 15
    %v291 = vsub.s32 0, %v290
    %v292 = vsel %vm286, %v291, %v290
    %vm293 = vcmp.lt.s32.totalorder %v183, 0
    %v294 = vsub.s32 0, %v183
    %v295 = vsel %vm293, %v294, %v183
    %v296 = vshrl.u32 %v295, 4
    %v297 = vand.u32 %v295, 15
    %v298 = vsub.s32 0, %v297
    %v299 = vsel %vm293, %v298, %v297
    %vm300 = vcmp.lt.s32.totalorder %v184, 0
    %v301 = vsub.s32 0, %v184
    %v302 = vsel %vm300, %v301, %v184
    %v303 = vshrl.u32 %v302, 4
    %v304 = vand.u32 %v302, 15
    %v305 = vsub.s32 0, %v304
    %v306 = vsel %vm300, %v305, %v304
    %vm307 = vcmp.lt.s32.totalorder %v185, 0
    %v308 = vsub.s32 0, %v185
    %v309 = vsel %vm307, %v308, %v185
    %v310 = vshrl.u32 %v309, 4
    %v311 = vand.u32 %v309, 15
    %v312 = vsub.s32 0, %v311
    %v313 = vsel %vm307, %v312, %v311
    %vm314 = vcmp.lt.s32.totalorder %v186, 0
    %v315 = vsub.s32 0, %v186
    %v316 = vsel %vm314, %v315, %v186
    %v317 = vshrl.u32 %v316, 4
    %v318 = vand.u32 %v316, 15
    %v319 = vsub.s32 0, %v318
    %v320 = vsel %vm314, %v319, %v318
    %vm321 = vcmp.lt.s32.totalorder %v187, 0
    %v322 = vsub.s32 0, %v187
    %v323 = vsel %vm321, %v322, %v187
    %v324 = vshrl.u32 %v323, 4
    %v325 = vand.u32 %v323, 15
    %v326 = vsub.s32 0, %v325
    %v327 = vsel %vm321, %v326, %v325
    %vm328 = vcmp.lt.s32.totalorder %v188, 0
    %v329 = vsub.s32 0, %v188
    %v330 = vsel %vm328, %v329, %v188
    %v331 = vshrl.u32 %v330, 4
    %v332 = vand.u32 %v330, 15
    %v333 = vsub.s32 0, %v332
    %v334 = vsel %vm328, %v333, %v332
    %vm335 = vcmp.lt.s32.totalorder %v189, 0
    %v336 = vsub.s32 0, %v189
    %v337 = vsel %vm335, %v336, %v189
    %v338 = vshrl.u32 %v337, 4
    %v339 = vand.u32 %v337, 15
    %v340 = vsub.s32 0, %v339
    %v341 = vsel %vm335, %v340, %v339
    %vm342 = vcmp.lt.s32.totalorder %v190, 0
    %v343 = vsub.s32 0, %v190
    %v344 = vsel %vm342, %v343, %v190
    %v345 = vshrl.u32 %v344, 4
    %v346 = vand.u32 %v344, 15
    %v347 = vsub.s32 0, %v346
    %v348 = vsel %vm342, %v347, %v346
    %vm349 = vcmp.lt.s32.totalorder %v191, 0
    %v350 = vsub.s32 0, %v191
    %v351 = vsel %vm349, %v350, %v191
    %v352 = vshrl.u32 %v351, 4
    %v353 = vand.u32 %v351, 15
    %v354 = vsub.s32 0, %v353
    %v355 = vsel %vm349, %v354, %v353
    %vm356 = vcmp.lt.s32.totalorder %v192, 0
    %v357 = vsub.s32 0, %v192
    %v358 = vsel %vm356, %v357, %v192
    %v359 = vshrl.u32 %v358, 4
    %v360 = vand.u32 %v358, 15
    %v361 = vsub.s32 0, %v360
    %v362 = vsel %vm356, %v361, %v360
    %vm363 = vcmp.lt.s32.totalorder %v193, 0
    %v364 = vsub.s32 0, %v193
    %v365 = vsel %vm363, %v364, %v193
    %v366 = vshrl.u32 %v365, 4
    %v367 = vand.u32 %v365, 15
    %v368 = vsub.s32 0, %v367
    %v369 = vsel %vm363, %v368, %v367
    %vm370 = vcmp.lt.s32.totalorder %v194, 0
    %v371 = vsub.s32 0, %v194
    %v372 = vsel %vm370, %v371, %v194
    %v373 = vshrl.u32 %v372, 4
    %v374 = vand.u32 %v372, 15
    %v375 = vsub.s32 0, %v374
    %v376 = vsel %vm370, %v375, %v374
    %vm377 = vcmp.lt.s32.totalorder %v195, 0
    %v378 = vsub.s32 0, %v195
    %v379 = vsel %vm377, %v378, %v195
    %v380 = vshrl.u32 %v379, 4
    %v381 = vand.u32 %v379, 15
    %v382 = vsub.s32 0, %v381
    %v383 = vsel %vm377, %v382, %v381
    %vm384 = vcmp.lt.s32.totalorder %v196, 0
    %v385 = vsub.s32 0, %v196
    %v386 = vsel %vm384, %v385, %v196
    %v387 = vshrl.u32 %v386, 4
    %v388 = vand.u32 %v386, 15
    %v389 = vsub.s32 0, %v388
    %v390 = vsel %vm384, %v389, %v388
    %vm391 = vcmp.lt.s32.totalorder %v197, 0
    %v392 = vsub.s32 0, %v197
    %v393 = vsel %vm391, %v392, %v197
    %v394 = vshrl.u32 %v393, 4
    %v395 = vand.u32 %v393, 15
    %v396 = vsub.s32 0, %v395
    %v397 = vsel %vm391, %v396, %v395
    %vm398 = vcmp.lt.s32.totalorder %v198, 0
    %v399 = vsub.s32 0, %v198
    %v400 = vsel %vm398, %v399, %v198
    %v401 = vshrl.u32 %v400, 4
    %v402 = vand.u32 %v400, 15
    %v403 = vsub.s32 0, %v402
    %v404 = vsel %vm398, %v403, %v402
    %vm405 = vcmp.lt.s32.totalorder %v199, 0
    %v406 = vsub.s32 0, %v199
    %v407 = vsel %vm405, %v406, %v199
    %v408 = vshrl.u32 %v407, 4
    %v409 = vand.u32 %v407, 15
    %v410 = vsub.s32 0, %v409
    %v411 = vsel %vm405, %v410, %v409
    %vm412 = vcmp.lt.s32.totalorder %v200, 0
    %v413 = vsub.s32 0, %v200
    %v414 = vsel %vm412, %v413, %v200
    %v415 = vshrl.u32 %v414, 4
    %v416 = vand.u32 %v414, 15
    %v417 = vsub.s32 0, %v416
    %v418 = vsel %vm412, %v417, %v416
    %vm419 = vcmp.lt.s32.totalorder %v201, 0
    %v420 = vsub.s32 0, %v201
    %v421 = vsel %vm419, %v420, %v201
    %v422 = vshrl.u32 %v421, 4
    %v423 = vand.u32 %v421, 15
    %v424 = vsub.s32 0, %v423
    %v425 = vsel %vm419, %v424, %v423
    %vm426 = vcmp.ne.s32.totalorder %v208, 0
    %vm427 = vcmp.ne.s32.totalorder %v215, 0
    %vm428 = vcmp.ne.s32.totalorder %v222, 0
    %vm429 = vcmp.ne.s32.totalorder %v229, 0
    %vm430 = vcmp.ne.s32.totalorder %v236, 0
    %vm431 = vcmp.ne.s32.totalorder %v243, 0
    %vm432 = vcmp.ne.s32.totalorder %v250, 0
    %vm433 = vcmp.ne.s32.totalorder %v257, 0
    %vm434 = vcmp.ne.s32.totalorder %v264, 0
    %vm435 = vcmp.ne.s32.totalorder %v271, 0
    %vm436 = vcmp.ne.s32.totalorder %v278, 0
    %vm437 = vcmp.ne.s32.totalorder %v285, 0
    %vm438 = vcmp.ne.s32.totalorder %v292, 0
    %vm439 = vcmp.ne.s32.totalorder %v299, 0
    %vm440 = vcmp.ne.s32.totalorder %v306, 0
    %vm441 = vcmp.ne.s32.totalorder %v313, 0
    %vm442 = vcmp.ne.s32.totalorder %v320, 0
    %vm443 = vcmp.ne.s32.totalorder %v327, 0
    %vm444 = vcmp.ne.s32.totalorder %v334, 0
    %vm445 = vcmp.ne.s32.totalorder %v341, 0
    %vm446 = vcmp.ne.s32.totalorder %v348, 0
    %vm447 = vcmp.ne.s32.totalorder %v355, 0
    %vm448 = vcmp.ne.s32.totalorder %v362, 0
    %vm449 = vcmp.ne.s32.totalorder %v369, 0
    %vm450 = vcmp.ne.s32.totalorder %v376, 0
    %vm451 = vcmp.ne.s32.totalorder %v383, 0
    %vm452 = vcmp.ne.s32.totalorder %v390, 0
    %vm453 = vcmp.ne.s32.totalorder %v397, 0
    %vm454 = vcmp.ne.s32.totalorder %v404, 0
    %vm455 = vcmp.ne.s32.totalorder %v411, 0
    %vm456 = vcmp.ne.s32.totalorder %v418, 0
    %vm457 = vcmp.ne.s32.totalorder %v425, 0
    %vm458 = vcmp.lt.s32.totalorder %v208, 0
    %vm459 = vcmp.lt.s32.totalorder %v215, 0
    %vm460 = vcmp.lt.s32.totalorder %v222, 0
    %vm461 = vcmp.lt.s32.totalorder %v229, 0
    %vm462 = vcmp.lt.s32.totalorder %v236, 0
    %vm463 = vcmp.lt.s32.totalorder %v243, 0
    %vm464 = vcmp.lt.s32.totalorder %v250, 0
    %vm465 = vcmp.lt.s32.totalorder %v257, 0
    %vm466 = vcmp.lt.s32.totalorder %v264, 0
    %vm467 = vcmp.lt.s32.totalorder %v271, 0
    %vm468 = vcmp.lt.s32.totalorder %v278, 0
    %vm469 = vcmp.lt.s32.totalorder %v285, 0
    %vm470 = vcmp.lt.s32.totalorder %v292, 0
    %vm471 = vcmp.lt.s32.totalorder %v299, 0
    %vm472 = vcmp.lt.s32.totalorder %v306, 0
    %vm473 = vcmp.lt.s32.totalorder %v313, 0
    %vm474 = vcmp.lt.s32.totalorder %v320, 0
    %vm475 = vcmp.lt.s32.totalorder %v327, 0
    %vm476 = vcmp.lt.s32.totalorder %v334, 0
    %vm477 = vcmp.lt.s32.totalorder %v341, 0
    %vm478 = vcmp.lt.s32.totalorder %v348, 0
    %vm479 = vcmp.lt.s32.totalorder %v355, 0
    %vm480 = vcmp.lt.s32.totalorder %v362, 0
    %vm481 = vcmp.lt.s32.totalorder %v369, 0
    %vm482 = vcmp.lt.s32.totalorder %v376, 0
    %vm483 = vcmp.lt.s32.totalorder %v383, 0
    %vm484 = vcmp.lt.s32.totalorder %v390, 0
    %vm485 = vcmp.lt.s32.totalorder %v397, 0
    %vm486 = vcmp.lt.s32.totalorder %v404, 0
    %vm487 = vcmp.lt.s32.totalorder %v411, 0
    %vm488 = vcmp.lt.s32.totalorder %v418, 0
    %vm489 = vcmp.lt.s32.totalorder %v425, 0
    %vm490 = vmand %vm458, %vm426
    %vm491 = vmand %vm459, %vm427
    %vm492 = vmand %vm460, %vm428
    %vm493 = vmand %vm461, %vm429
    %vm494 = vmand %vm462, %vm430
    %vm495 = vmand %vm463, %vm431
    %vm496 = vmand %vm464, %vm432
    %vm497 = vmand %vm465, %vm433
    %vm498 = vmand %vm466, %vm434
    %vm499 = vmand %vm467, %vm435
    %vm500 = vmand %vm468, %vm436
    %vm501 = vmand %vm469, %vm437
    %vm502 = vmand %vm470, %vm438
    %vm503 = vmand %vm471, %vm439
    %vm504 = vmand %vm472, %vm440
    %vm505 = vmand %vm473, %vm441
    %vm506 = vmand %vm474, %vm442
    %vm507 = vmand %vm475, %vm443
    %vm508 = vmand %vm476, %vm444
    %vm509 = vmand %vm477, %vm445
    %vm510 = vmand %vm478, %vm446
    %vm511 = vmand %vm479, %vm447
    %vm512 = vmand %vm480, %vm448
    %vm513 = vmand %vm481, %vm449
    %vm514 = vmand %vm482, %vm450
    %vm515 = vmand %vm483, %vm451
    %vm516 = vmand %vm484, %vm452
    %vm517 = vmand %vm485, %vm453
    %vm518 = vmand %vm486, %vm454
    %vm519 = vmand %vm487, %vm455
    %vm520 = vmand %vm488, %vm456
    %vm521 = vmand %vm489, %vm457
    %v522 = vadd.s32 %v208, 16
    %v523 = vadd.s32 %v215, 16
    %v524 = vadd.s32 %v222, 16
    %v525 = vadd.s32 %v229, 16
    %v526 = vadd.s32 %v236, 16
    %v527 = vadd.s32 %v243, 16
    %v528 = vadd.s32 %v250, 16
    %v529 = vadd.s32 %v257, 16
    %v530 = vadd.s32 %v264, 16
    %v531 = vadd.s32 %v271, 16
    %v532 = vadd.s32 %v278, 16
    %v533 = vadd.s32 %v285, 16
    %v534 = vadd.s32 %v292, 16
    %v535 = vadd.s32 %v299, 16
    %v536 = vadd.s32 %v306, 16
    %v537 = vadd.s32 %v313, 16
    %v538 = vadd.s32 %v320, 16
    %v539 = vadd.s32 %v327, 16
    %v540 = vadd.s32 %v334, 16
    %v541 = vadd.s32 %v341, 16
    %v542 = vadd.s32 %v348, 16
    %v543 = vadd.s32 %v355, 16
    %v544 = vadd.s32 %v362, 16
    %v545 = vadd.s32 %v369, 16
    %v546 = vadd.s32 %v376, 16
    %v547 = vadd.s32 %v383, 16
    %v548 = vadd.s32 %v390, 16
    %v549 = vadd.s32 %v397, 16
    %v550 = vadd.s32 %v404, 16
    %v551 = vadd.s32 %v411, 16
    %v552 = vadd.s32 %v418, 16
    %v553 = vadd.s32 %v425, 16
    %v554 = vsel %vm490, %v522, %v208
    %v555 = vsel %vm491, %v523, %v215
    %v556 = vsel %vm492, %v524, %v222
    %v557 = vsel %vm493, %v525, %v229
    %v558 = vsel %vm494, %v526, %v236
    %v559 = vsel %vm495, %v527, %v243
    %v560 = vsel %vm496, %v528, %v250
    %v561 = vsel %vm497, %v529, %v257
    %v562 = vsel %vm498, %v530, %v264
    %v563 = vsel %vm499, %v531, %v271
    %v564 = vsel %vm500, %v532, %v278
    %v565 = vsel %vm501, %v533, %v285
    %v566 = vsel %vm502, %v534, %v292
    %v567 = vsel %vm503, %v535, %v299
    %v568 = vsel %vm504, %v536, %v306
    %v569 = vsel %vm505, %v537, %v313
    %v570 = vsel %vm506, %v538, %v320
    %v571 = vsel %vm507, %v539, %v327
    %v572 = vsel %vm508, %v540, %v334
    %v573 = vsel %vm509, %v541, %v341
    %v574 = vsel %vm510, %v542, %v348
    %v575 = vsel %vm511, %v543, %v355
    %v576 = vsel %vm512, %v544, %v362
    %v577 = vsel %vm513, %v545, %v369
    %v578 = vsel %vm514, %v546, %v376
    %v579 = vsel %vm515, %v547, %v383
    %v580 = vsel %vm516, %v548, %v390
    %v581 = vsel %vm517, %v549, %v397
    %v582 = vsel %vm518, %v550, %v404
    %v583 = vsel %vm519, %v551, %v411
    %v584 = vsel %vm520, %v552, %v418
    %v585 = vsel %vm521, %v553, %v425
    %vm586 = vcmp.ne.s32.totalorder %v554, 0
    %vm587 = vcmp.ne.s32.totalorder %v555, 0
    %vm588 = vcmp.ne.s32.totalorder %v556, 0
    %vm589 = vcmp.ne.s32.totalorder %v557, 0
    %vm590 = vcmp.ne.s32.totalorder %v558, 0
    %vm591 = vcmp.ne.s32.totalorder %v559, 0
    %vm592 = vcmp.ne.s32.totalorder %v560, 0
    %vm593 = vcmp.ne.s32.totalorder %v561, 0
    %vm594 = vcmp.ne.s32.totalorder %v562, 0
    %vm595 = vcmp.ne.s32.totalorder %v563, 0
    %vm596 = vcmp.ne.s32.totalorder %v564, 0
    %vm597 = vcmp.ne.s32.totalorder %v565, 0
    %vm598 = vcmp.ne.s32.totalorder %v566, 0
    %vm599 = vcmp.ne.s32.totalorder %v567, 0
    %vm600 = vcmp.ne.s32.totalorder %v568, 0
    %vm601 = vcmp.ne.s32.totalorder %v569, 0
    %vm602 = vcmp.ne.s32.totalorder %v570, 0
    %vm603 = vcmp.ne.s32.totalorder %v571, 0
    %vm604 = vcmp.ne.s32.totalorder %v572, 0
    %vm605 = vcmp.ne.s32.totalorder %v573, 0
    %vm606 = vcmp.ne.s32.totalorder %v574, 0
    %vm607 = vcmp.ne.s32.totalorder %v575, 0
    %vm608 = vcmp.ne.s32.totalorder %v576, 0
    %vm609 = vcmp.ne.s32.totalorder %v577, 0
    %vm610 = vcmp.ne.s32.totalorder %v578, 0
    %vm611 = vcmp.ne.s32.totalorder %v579, 0
    %vm612 = vcmp.ne.s32.totalorder %v580, 0
    %vm613 = vcmp.ne.s32.totalorder %v581, 0
    %vm614 = vcmp.ne.s32.totalorder %v582, 0
    %vm615 = vcmp.ne.s32.totalorder %v583, 0
    %vm616 = vcmp.ne.s32.totalorder %v584, 0
    %vm617 = vcmp.ne.s32.totalorder %v585, 0
    %vm618 = vcmp.ne.s32.totalorder %v554, 15
    %vm619 = vcmp.ne.s32.totalorder %v555, 15
    %vm620 = vcmp.ne.s32.totalorder %v556, 15
    %vm621 = vcmp.ne.s32.totalorder %v557, 15
    %vm622 = vcmp.ne.s32.totalorder %v558, 15
    %vm623 = vcmp.ne.s32.totalorder %v559, 15
    %vm624 = vcmp.ne.s32.totalorder %v560, 15
    %vm625 = vcmp.ne.s32.totalorder %v561, 15
    %vm626 = vcmp.ne.s32.totalorder %v562, 15
    %vm627 = vcmp.ne.s32.totalorder %v563, 15
    %vm628 = vcmp.ne.s32.totalorder %v564, 15
    %vm629 = vcmp.ne.s32.totalorder %v565, 15
    %vm630 = vcmp.ne.s32.totalorder %v566, 15
    %vm631 = vcmp.ne.s32.totalorder %v567, 15
    %vm632 = vcmp.ne.s32.totalorder %v568, 15
    %vm633 = vcmp.ne.s32.totalorder %v569, 15
    %vm634 = vcmp.ne.s32.totalorder %v570, 15
    %vm635 = vcmp.ne.s32.totalorder %v571, 15
    %vm636 = vcmp.ne.s32.totalorder %v572, 15
    %vm637 = vcmp.ne.s32.totalorder %v573, 15
    %vm638 = vcmp.ne.s32.totalorder %v574, 15
    %vm639 = vcmp.ne.s32.totalorder %v575, 15
    %vm640 = vcmp.ne.s32.totalorder %v576, 15
    %vm641 = vcmp.ne.s32.totalorder %v577, 15
    %vm642 = vcmp.ne.s32.totalorder %v578, 15
    %vm643 = vcmp.ne.s32.totalorder %v579, 15
    %vm644 = vcmp.ne.s32.totalorder %v580, 15
    %vm645 = vcmp.ne.s32.totalorder %v581, 15
    %vm646 = vcmp.ne.s32.totalorder %v582, 15
    %vm647 = vcmp.ne.s32.totalorder %v583, 15
    %vm648 = vcmp.ne.s32.totalorder %v584, 15
    %vm649 = vcmp.ne.s32.totalorder %v585, 15
    %v650 = vld [vmem:[#allocation3] sm:$0xff]
    %v651 = vld [vmem:[#allocation3 + $0x8] sm:$0xff]
    %v652 = vld [vmem:[#allocation3 + $0x10] sm:$0xff]
    %v653 = vld [vmem:[#allocation3 + $0x18] sm:$0xff]
    %v654 = vld [vmem:[#allocation3 + $0x20] sm:$0xff]
    %v655 = vld [vmem:[#allocation3 + $0x28] sm:$0xff]
    %v656 = vld [vmem:[#allocation3 + $0x30] sm:$0xff]
    %v657 = vld [vmem:[#allocation3 + $0x38] sm:$0xff]
    %v658 = vld [vmem:[#allocation3 + $0x40] sm:$0xff]
    %v659 = vld [vmem:[#allocation3 + $0x48] sm:$0xff]
    %v660 = vld [vmem:[#allocation3 + $0x50] sm:$0xff]
    %v661 = vld [vmem:[#allocation3 + $0x58] sm:$0xff]
    %v662 = vld [vmem:[#allocation3 + $0x60] sm:$0xff]
    %v663 = vld [vmem:[#allocation3 + $0x68] sm:$0xff]
    %v664 = vld [vmem:[#allocation3 + $0x70] sm:$0xff]
    %v665 = vld [vmem:[#allocation3 + $0x78] sm:$0xff]
    %v666 = vld [vmem:[#allocation3 + $0x80] sm:$0xff]
    %v667 = vld [vmem:[#allocation3 + $0x88] sm:$0xff]
    %v668 = vld [vmem:[#allocation3 + $0x90] sm:$0xff]
    %v669 = vld [vmem:[#allocation3 + $0x98] sm:$0xff]
    %v670 = vld [vmem:[#allocation3 + $0xa0] sm:$0xff]
    %v671 = vld [vmem:[#allocation3 + $0xa8] sm:$0xff]
    %v672 = vld [vmem:[#allocation3 + $0xb0] sm:$0xff]
    %v673 = vld [vmem:[#allocation3 + $0xb8] sm:$0xff]
    %v674 = vld [vmem:[#allocation3 + $0xc0] sm:$0xff]
    %v675 = vld [vmem:[#allocation3 + $0xc8] sm:$0xff]
    %v676 = vld [vmem:[#allocation3 + $0xd0] sm:$0xff]
    %v677 = vld [vmem:[#allocation3 + $0xd8] sm:$0xff]
    %v678 = vld [vmem:[#allocation3 + $0xe0] sm:$0xff]
    %v679 = vld [vmem:[#allocation3 + $0xe8] sm:$0xff]
    %v680 = vld [vmem:[#allocation3 + $0xf0] sm:$0xff]
    %v681 = vld [vmem:[#allocation3 + $0xf8] sm:$0xff]
    %v682 = vld [vmem:[#allocation3 + $0x100] sm:$0xff]
    %v683 = vld [vmem:[#allocation3 + $0x108] sm:$0xff]
    %v684 = vld [vmem:[#allocation3 + $0x110] sm:$0xff]
    %v685 = vld [vmem:[#allocation3 + $0x118] sm:$0xff]
    %v686 = vld [vmem:[#allocation3 + $0x120] sm:$0xff]
    %v687 = vld [vmem:[#allocation3 + $0x128] sm:$0xff]
    %v688 = vld [vmem:[#allocation3 + $0x130] sm:$0xff]
    %v689 = vld [vmem:[#allocation3 + $0x138] sm:$0xff]
    %v690 = vld [vmem:[#allocation3 + $0x140] sm:$0xff]
    %v691 = vld [vmem:[#allocation3 + $0x148] sm:$0xff]
    %v692 = vld [vmem:[#allocation3 + $0x150] sm:$0xff]
    %v693 = vld [vmem:[#allocation3 + $0x158] sm:$0xff]
    %v694 = vld [vmem:[#allocation3 + $0x160] sm:$0xff]
    %v695 = vld [vmem:[#allocation3 + $0x168] sm:$0xff]
    %v696 = vld [vmem:[#allocation3 + $0x170] sm:$0xff]
    %v697 = vld [vmem:[#allocation3 + $0x178] sm:$0xff]
    %v698 = vld [vmem:[#allocation3 + $0x180] sm:$0xff]
    %v699 = vld [vmem:[#allocation3 + $0x188] sm:$0xff]
    %v700 = vld [vmem:[#allocation3 + $0x190] sm:$0xff]
    %v701 = vld [vmem:[#allocation3 + $0x198] sm:$0xff]
    %v702 = vld [vmem:[#allocation3 + $0x1a0] sm:$0xff]
    %v703 = vld [vmem:[#allocation3 + $0x1a8] sm:$0xff]
    %v704 = vld [vmem:[#allocation3 + $0x1b0] sm:$0xff]
    %v705 = vld [vmem:[#allocation3 + $0x1b8] sm:$0xff]
    %v706 = vld [vmem:[#allocation3 + $0x1c0] sm:$0xff]
    %v707 = vld [vmem:[#allocation3 + $0x1c8] sm:$0xff]
    %v708 = vld [vmem:[#allocation3 + $0x1d0] sm:$0xff]
    %v709 = vld [vmem:[#allocation3 + $0x1d8] sm:$0xff]
    %v710 = vld [vmem:[#allocation3 + $0x1e0] sm:$0xff]
    %v711 = vld [vmem:[#allocation3 + $0x1e8] sm:$0xff]
    %v712 = vld [vmem:[#allocation3 + $0x1f0] sm:$0xff]
    %v713 = vld [vmem:[#allocation3 + $0x1f8] sm:$0xff]
    %v714 = vadd.f32 %v650, %v651
    %715 = vadd.xlane.f32.xlu0 %v714
    %v716 = vpop.xlane.xlu0 %715
    %v717 = vadd.f32 %v652, %v653
    %718 = vadd.xlane.f32.xlu0 %v717
    %v719 = vpop.xlane.xlu0 %718
    %v720 = vadd.f32 %v654, %v655
    %721 = vadd.xlane.f32.xlu0 %v720
    %v722 = vpop.xlane.xlu0 %721
    %v723 = vadd.f32 %v656, %v657
    %724 = vadd.xlane.f32.xlu0 %v723
    %v725 = vpop.xlane.xlu0 %724
    %v726 = vadd.f32 %v658, %v659
    %727 = vadd.xlane.f32.xlu0 %v726
    %v728 = vpop.xlane.xlu0 %727
    %v729 = vadd.f32 %v660, %v661
    %730 = vadd.xlane.f32.xlu0 %v729
    %v731 = vpop.xlane.xlu0 %730
    %v732 = vadd.f32 %v662, %v663
    %733 = vadd.xlane.f32.xlu0 %v732
    %v734 = vpop.xlane.xlu0 %733
    %v735 = vadd.f32 %v664, %v665
    %736 = vadd.xlane.f32.xlu0 %v735
    %v737 = vpop.xlane.xlu0 %736
    %v738 = vadd.f32 %v666, %v667
    %739 = vadd.xlane.f32.xlu0 %v738
    %v740 = vpop.xlane.xlu0 %739
    %v741 = vadd.f32 %v668, %v669
    %742 = vadd.xlane.f32.xlu0 %v741
    %v743 = vpop.xlane.xlu0 %742
    %v744 = vadd.f32 %v670, %v671
    %745 = vadd.xlane.f32.xlu0 %v744
    %v746 = vpop.xlane.xlu0 %745
    %v747 = vadd.f32 %v672, %v673
    %748 = vadd.xlane.f32.xlu0 %v747
    %v749 = vpop.xlane.xlu0 %748
    %v750 = vadd.f32 %v674, %v675
    %751 = vadd.xlane.f32.xlu0 %v750
    %v752 = vpop.xlane.xlu0 %751
    %v753 = vadd.f32 %v676, %v677
    %754 = vadd.xlane.f32.xlu0 %v753
    %v755 = vpop.xlane.xlu0 %754
    %v756 = vadd.f32 %v678, %v679
    %757 = vadd.xlane.f32.xlu0 %v756
    %v758 = vpop.xlane.xlu0 %757
    %v759 = vadd.f32 %v680, %v681
    %760 = vadd.xlane.f32.xlu0 %v759
    %v761 = vpop.xlane.xlu0 %760
    %v762 = vadd.f32 %v682, %v683
    %763 = vadd.xlane.f32.xlu0 %v762
    %v764 = vpop.xlane.xlu0 %763
    %v765 = vadd.f32 %v684, %v685
    %766 = vadd.xlane.f32.xlu0 %v765
    %v767 = vpop.xlane.xlu0 %766
    %v768 = vadd.f32 %v686, %v687
    %769 = vadd.xlane.f32.xlu0 %v768
    %v770 = vpop.xlane.xlu0 %769
    %v771 = vadd.f32 %v688, %v689
    %772 = vadd.xlane.f32.xlu0 %v771
    %v773 = vpop.xlane.xlu0 %772
    %v774 = vadd.f32 %v690, %v691
    %775 = vadd.xlane.f32.xlu0 %v774
    %v776 = vpop.xlane.xlu0 %775
    %v777 = vadd.f32 %v692, %v693
    %778 = vadd.xlane.f32.xlu0 %v777
    %v779 = vpop.xlane.xlu0 %778
    %v780 = vadd.f32 %v694, %v695
    %781 = vadd.xlane.f32.xlu0 %v780
    %v782 = vpop.xlane.xlu0 %781
    %v783 = vadd.f32 %v696, %v697
    %784 = vadd.xlane.f32.xlu0 %v783
    %v785 = vpop.xlane.xlu0 %784
    %v786 = vadd.f32 %v698, %v699
    %787 = vadd.xlane.f32.xlu0 %v786
    %v788 = vpop.xlane.xlu0 %787
    %v789 = vadd.f32 %v700, %v701
    %790 = vadd.xlane.f32.xlu0 %v789
    %v791 = vpop.xlane.xlu0 %790
    %v792 = vadd.f32 %v702, %v703
    %793 = vadd.xlane.f32.xlu0 %v792
    %v794 = vpop.xlane.xlu0 %793
    %v795 = vadd.f32 %v704, %v705
    %796 = vadd.xlane.f32.xlu0 %v795
    %v797 = vpop.xlane.xlu0 %796
    %v798 = vadd.f32 %v706, %v707
    %799 = vadd.xlane.f32.xlu0 %v798
    %v800 = vpop.xlane.xlu0 %799
    %v801 = vadd.f32 %v708, %v709
    %802 = vadd.xlane.f32.xlu0 %v801
    %v803 = vpop.xlane.xlu0 %802
    %v804 = vadd.f32 %v710, %v711
    %805 = vadd.xlane.f32.xlu0 %v804
    %v806 = vpop.xlane.xlu0 %805
    %v807 = vadd.f32 %v712, %v713
    %808 = vadd.xlane.f32.xlu0 %v807
    %v809 = vpop.xlane.xlu0 %808
    %v810 = vrcp.pop 256.0
    %v811 = vmul.f32 %v716, %v810
    %v812 = vmul.f32 %v719, %v810
    %v813 = vmul.f32 %v722, %v810
    %v814 = vmul.f32 %v725, %v810
    %v815 = vmul.f32 %v728, %v810
    %v816 = vmul.f32 %v731, %v810
    %v817 = vmul.f32 %v734, %v810
    %v818 = vmul.f32 %v737, %v810
    %v819 = vmul.f32 %v740, %v810
    %v820 = vmul.f32 %v743, %v810
    %v821 = vmul.f32 %v746, %v810
    %v822 = vmul.f32 %v749, %v810
    %v823 = vmul.f32 %v752, %v810
    %v824 = vmul.f32 %v755, %v810
    %v825 = vmul.f32 %v758, %v810
    %v826 = vmul.f32 %v761, %v810
    %v827 = vmul.f32 %v764, %v810
    %v828 = vmul.f32 %v767, %v810
    %v829 = vmul.f32 %v770, %v810
    %v830 = vmul.f32 %v773, %v810
    %v831 = vmul.f32 %v776, %v810
    %v832 = vmul.f32 %v779, %v810
    %v833 = vmul.f32 %v782, %v810
    %v834 = vmul.f32 %v785, %v810
    %v835 = vmul.f32 %v788, %v810
    %v836 = vmul.f32 %v791, %v810
    %v837 = vmul.f32 %v794, %v810
    %v838 = vmul.f32 %v797, %v810
    %v839 = vmul.f32 %v800, %v810
    %v840 = vmul.f32 %v803, %v810
    %v841 = vmul.f32 %v806, %v810
    %v842 = vmul.f32 %v809, %v810
    %v843 = vlaneseq
    %v844 = vshrl.u32 %v843, 7
    %v845 = vsub.s32 0, %v844
    %v846 = vrot.slane %v72, %v845
    %849 = vbcast.lane.b32.xlu0 %v846, 256
    %v850 = vpop.permute.xlu0 %849
    %s852 = sor.u32 256, 8
    %853 = vbcast.lane.b32.xlu0 %v846, %s852
    %v854 = vpop.permute.xlu0 %853
    %s856 = sor.u32 256, 16
    %857 = vbcast.lane.b32.xlu0 %v846, %s856
    %v858 = vpop.permute.xlu0 %857
    %s860 = sor.u32 256, 24
    %861 = vbcast.lane.b32.xlu0 %v846, %s860
    %v862 = vpop.permute.xlu0 %861
    %s864 = sor.u32 256, 32
    %865 = vbcast.lane.b32.xlu0 %v846, %s864
    %v866 = vpop.permute.xlu0 %865
    %s868 = sor.u32 256, 40
    %869 = vbcast.lane.b32.xlu0 %v846, %s868
    %v870 = vpop.permute.xlu0 %869
    %s872 = sor.u32 256, 48
    %873 = vbcast.lane.b32.xlu0 %v846, %s872
    %v874 = vpop.permute.xlu0 %873
    %s876 = sor.u32 256, 56
    %877 = vbcast.lane.b32.xlu0 %v846, %s876
    %v878 = vpop.permute.xlu0 %877
    %s880 = sor.u32 256, 64
    %881 = vbcast.lane.b32.xlu0 %v846, %s880
    %v882 = vpop.permute.xlu0 %881
    %s884 = sor.u32 256, 72
    %885 = vbcast.lane.b32.xlu0 %v846, %s884
    %v886 = vpop.permute.xlu0 %885
    %s888 = sor.u32 256, 80
    %889 = vbcast.lane.b32.xlu0 %v846, %s888
    %v890 = vpop.permute.xlu0 %889
    %s892 = sor.u32 256, 88
    %893 = vbcast.lane.b32.xlu0 %v846, %s892
    %v894 = vpop.permute.xlu0 %893
    %s896 = sor.u32 256, 96
    %897 = vbcast.lane.b32.xlu0 %v846, %s896
    %v898 = vpop.permute.xlu0 %897
    %s900 = sor.u32 256, 104
    %901 = vbcast.lane.b32.xlu0 %v846, %s900
    %v902 = vpop.permute.xlu0 %901
    %s904 = sor.u32 256, 112
    %905 = vbcast.lane.b32.xlu0 %v846, %s904
    %v906 = vpop.permute.xlu0 %905
    %s908 = sor.u32 256, 120
    %909 = vbcast.lane.b32.xlu0 %v846, %s908
    %v910 = vpop.permute.xlu0 %909
    %v927 = vmul.f32 %v811, %v850
    %v928 = vmul.f32 %v812, %v854
    %v929 = vmul.f32 %v813, %v858
    %v930 = vmul.f32 %v814, %v862
    %v931 = vmul.f32 %v815, %v866
    %v932 = vmul.f32 %v816, %v870
    %v933 = vmul.f32 %v817, %v874
    %v934 = vmul.f32 %v818, %v878
    %v935 = vmul.f32 %v819, %v882
    %v936 = vmul.f32 %v820, %v886
    %v937 = vmul.f32 %v821, %v890
    %v938 = vmul.f32 %v822, %v894
    %v939 = vmul.f32 %v823, %v898
    %v940 = vmul.f32 %v824, %v902
    %v941 = vmul.f32 %v825, %v906
    %v942 = vmul.f32 %v826, %v910
    %v943 = vmul.f32 %v827, %v850
    %v944 = vmul.f32 %v828, %v854
    %v945 = vmul.f32 %v829, %v858
    %v946 = vmul.f32 %v830, %v862
    %v947 = vmul.f32 %v831, %v866
    %v948 = vmul.f32 %v832, %v870
    %v949 = vmul.f32 %v833, %v874
    %v950 = vmul.f32 %v834, %v878
    %v951 = vmul.f32 %v835, %v882
    %v952 = vmul.f32 %v836, %v886
    %v953 = vmul.f32 %v837, %v890
    %v954 = vmul.f32 %v838, %v894
    %v955 = vmul.f32 %v839, %v898
    %v956 = vmul.f32 %v840, %v902
    %v957 = vmul.f32 %v841, %v906
    %v958 = vmul.f32 %v842, %v910
    %v959 = vlaneseq
    %v960 = vshrl.u32 %v959, 7
    %v961 = vsub.s32 1, %v960
    %v962 = vrot.slane %v72, %v961
    %965 = vbcast.lane.b32.xlu0 %v962, 256
    %v966 = vpop.permute.xlu0 %965
    %s968 = sor.u32 256, 8
    %969 = vbcast.lane.b32.xlu0 %v962, %s968
    %v970 = vpop.permute.xlu0 %969
    %s972 = sor.u32 256, 16
    %973 = vbcast.lane.b32.xlu0 %v962, %s972
    %v974 = vpop.permute.xlu0 %973
    %s976 = sor.u32 256, 24
    %977 = vbcast.lane.b32.xlu0 %v962, %s976
    %v978 = vpop.permute.xlu0 %977
    %s980 = sor.u32 256, 32
    %981 = vbcast.lane.b32.xlu0 %v962, %s980
    %v982 = vpop.permute.xlu0 %981
    %s984 = sor.u32 256, 40
    %985 = vbcast.lane.b32.xlu0 %v962, %s984
    %v986 = vpop.permute.xlu0 %985
    %s988 = sor.u32 256, 48
    %989 = vbcast.lane.b32.xlu0 %v962, %s988
    %v990 = vpop.permute.xlu0 %989
    %s992 = sor.u32 256, 56
    %993 = vbcast.lane.b32.xlu0 %v962, %s992
    %v994 = vpop.permute.xlu0 %993
    %s996 = sor.u32 256, 64
    %997 = vbcast.lane.b32.xlu0 %v962, %s996
    %v998 = vpop.permute.xlu0 %997
    %s1000 = sor.u32 256, 72
    %1001 = vbcast.lane.b32.xlu0 %v962, %s1000
    %v1002 = vpop.permute.xlu0 %1001
    %s1004 = sor.u32 256, 80
    %1005 = vbcast.lane.b32.xlu0 %v962, %s1004
    %v1006 = vpop.permute.xlu0 %1005
    %s1008 = sor.u32 256, 88
    %1009 = vbcast.lane.b32.xlu0 %v962, %s1008
    %v1010 = vpop.permute.xlu0 %1009
    %s1012 = sor.u32 256, 96
    %1013 = vbcast.lane.b32.xlu0 %v962, %s1012
    %v1014 = vpop.permute.xlu0 %1013
    %s1016 = sor.u32 256, 104
    %1017 = vbcast.lane.b32.xlu0 %v962, %s1016
    %v1018 = vpop.permute.xlu0 %1017
    %s1020 = sor.u32 256, 112
    %1021 = vbcast.lane.b32.xlu0 %v962, %s1020
    %v1022 = vpop.permute.xlu0 %1021
    %s1024 = sor.u32 256, 120
    %1025 = vbcast.lane.b32.xlu0 %v962, %s1024
    %v1026 = vpop.permute.xlu0 %1025
    %v1043 = vadd.f32 %v927, %v966
    %v1044 = vadd.f32 %v928, %v970
    %v1045 = vadd.f32 %v929, %v974
    %v1046 = vadd.f32 %v930, %v978
    %v1047 = vadd.f32 %v931, %v982
    %v1048 = vadd.f32 %v932, %v986
    %v1049 = vadd.f32 %v933, %v990
    %v1050 = vadd.f32 %v934, %v994
    %v1051 = vadd.f32 %v935, %v998
    %v1052 = vadd.f32 %v936, %v1002
    %v1053 = vadd.f32 %v937, %v1006
    %v1054 = vadd.f32 %v938, %v1010
    %v1055 = vadd.f32 %v939, %v1014
    %v1056 = vadd.f32 %v940, %v1018
    %v1057 = vadd.f32 %v941, %v1022
    %v1058 = vadd.f32 %v942, %v1026
    %v1059 = vadd.f32 %v943, %v966
    %v1060 = vadd.f32 %v944, %v970
    %v1061 = vadd.f32 %v945, %v974
    %v1062 = vadd.f32 %v946, %v978
    %v1063 = vadd.f32 %v947, %v982
    %v1064 = vadd.f32 %v948, %v986
    %v1065 = vadd.f32 %v949, %v990
    %v1066 = vadd.f32 %v950, %v994
    %v1067 = vadd.f32 %v951, %v998
    %v1068 = vadd.f32 %v952, %v1002
    %v1069 = vadd.f32 %v953, %v1006
    %v1070 = vadd.f32 %v954, %v1010
    %v1071 = vadd.f32 %v955, %v1014
    %v1072 = vadd.f32 %v956, %v1018
    %v1073 = vadd.f32 %v957, %v1022
    %v1074 = vadd.f32 %v958, %v1026
    %v1075 = vld [vmem:[#allocation8] sm:$0xff]
    %v1076 = vld [vmem:[#allocation8 + $0x8] sm:$0xff]
    %v1077 = vld [vmem:[#allocation8 + $0x10] sm:$0xff]
    %v1078 = vld [vmem:[#allocation8 + $0x18] sm:$0xff]
    %v1079 = vld [vmem:[#allocation8 + $0x20] sm:$0xff]
    %v1080 = vld [vmem:[#allocation8 + $0x28] sm:$0xff]
    %v1081 = vld [vmem:[#allocation8 + $0x30] sm:$0xff]
    %v1082 = vld [vmem:[#allocation8 + $0x38] sm:$0xff]
    %v1083 = vld [vmem:[#allocation8 + $0x40] sm:$0xff]
    %v1084 = vld [vmem:[#allocation8 + $0x48] sm:$0xff]
    %v1085 = vld [vmem:[#allocation8 + $0x50] sm:$0xff]
    %v1086 = vld [vmem:[#allocation8 + $0x58] sm:$0xff]
    %v1087 = vld [vmem:[#allocation8 + $0x60] sm:$0xff]
    %v1088 = vld [vmem:[#allocation8 + $0x68] sm:$0xff]
    %v1089 = vld [vmem:[#allocation8 + $0x70] sm:$0xff]
    %v1090 = vld [vmem:[#allocation8 + $0x78] sm:$0xff]
    %1123 = vset.pattern.permute.xlu0 0
    %1124 = vperm.xlu0 %1123, %v1043
    %v1125 = vpop.permute.xlu0 %1124
    %1126 = vset.pattern.permute.xlu0 0
    %1127 = vperm.xlu0 %1126, %v1044
    %v1128 = vpop.permute.xlu0 %1127
    %1129 = vset.pattern.permute.xlu0 0
    %1130 = vperm.xlu0 %1129, %v1045
    %v1131 = vpop.permute.xlu0 %1130
    %1132 = vset.pattern.permute.xlu0 0
    %1133 = vperm.xlu0 %1132, %v1046
    %v1134 = vpop.permute.xlu0 %1133
    %1135 = vset.pattern.permute.xlu0 0
    %1136 = vperm.xlu0 %1135, %v1047
    %v1137 = vpop.permute.xlu0 %1136
    %1138 = vset.pattern.permute.xlu0 0
    %1139 = vperm.xlu0 %1138, %v1048
    %v1140 = vpop.permute.xlu0 %1139
    %1141 = vset.pattern.permute.xlu0 0
    %1142 = vperm.xlu0 %1141, %v1049
    %v1143 = vpop.permute.xlu0 %1142
    %1144 = vset.pattern.permute.xlu0 0
    %1145 = vperm.xlu0 %1144, %v1050
    %v1146 = vpop.permute.xlu0 %1145
    %1147 = vset.pattern.permute.xlu0 0
    %1148 = vperm.xlu0 %1147, %v1051
    %v1149 = vpop.permute.xlu0 %1148
    %1150 = vset.pattern.permute.xlu0 0
    %1151 = vperm.xlu0 %1150, %v1052
    %v1152 = vpop.permute.xlu0 %1151
    %1153 = vset.pattern.permute.xlu0 0
    %1154 = vperm.xlu0 %1153, %v1053
    %v1155 = vpop.permute.xlu0 %1154
    %1156 = vset.pattern.permute.xlu0 0
    %1157 = vperm.xlu0 %1156, %v1054
    %v1158 = vpop.permute.xlu0 %1157
    %1159 = vset.pattern.permute.xlu0 0
    %1160 = vperm.xlu0 %1159, %v1055
    %v1161 = vpop.permute.xlu0 %1160
    %1162 = vset.pattern.permute.xlu0 0
    %1163 = vperm.xlu0 %1162, %v1056
    %v1164 = vpop.permute.xlu0 %1163
    %1165 = vset.pattern.permute.xlu0 0
    %1166 = vperm.xlu0 %1165, %v1057
    %v1167 = vpop.permute.xlu0 %1166
    %1168 = vset.pattern.permute.xlu0 0
    %1169 = vperm.xlu0 %1168, %v1058
    %v1170 = vpop.permute.xlu0 %1169
    %1171 = vset.pattern.permute.xlu0 0
    %1172 = vperm.xlu0 %1171, %v1059
    %v1173 = vpop.permute.xlu0 %1172
    %1174 = vset.pattern.permute.xlu0 0
    %1175 = vperm.xlu0 %1174, %v1060
    %v1176 = vpop.permute.xlu0 %1175
    %1177 = vset.pattern.permute.xlu0 0
    %1178 = vperm.xlu0 %1177, %v1061
    %v1179 = vpop.permute.xlu0 %1178
    %1180 = vset.pattern.permute.xlu0 0
    %1181 = vperm.xlu0 %1180, %v1062
    %v1182 = vpop.permute.xlu0 %1181
    %1183 = vset.pattern.permute.xlu0 0
    %1184 = vperm.xlu0 %1183, %v1063
    %v1185 = vpop.permute.xlu0 %1184
    %1186 = vset.pattern.permute.xlu0 0
    %1187 = vperm.xlu0 %1186, %v1064
    %v1188 = vpop.permute.xlu0 %1187
    %1189 = vset.pattern.permute.xlu0 0
    %1190 = vperm.xlu0 %1189, %v1065
    %v1191 = vpop.permute.xlu0 %1190
    %1192 = vset.pattern.permute.xlu0 0
    %1193 = vperm.xlu0 %1192, %v1066
    %v1194 = vpop.permute.xlu0 %1193
    %1195 = vset.pattern.permute.xlu0 0
    %1196 = vperm.xlu0 %1195, %v1067
    %v1197 = vpop.permute.xlu0 %1196
    %1198 = vset.pattern.permute.xlu0 0
    %1199 = vperm.xlu0 %1198, %v1068
    %v1200 = vpop.permute.xlu0 %1199
    %1201 = vset.pattern.permute.xlu0 0
    %1202 = vperm.xlu0 %1201, %v1069
    %v1203 = vpop.permute.xlu0 %1202
    %1204 = vset.pattern.permute.xlu0 0
    %1205 = vperm.xlu0 %1204, %v1070
    %v1206 = vpop.permute.xlu0 %1205
    %1207 = vset.pattern.permute.xlu0 0
    %1208 = vperm.xlu0 %1207, %v1071
    %v1209 = vpop.permute.xlu0 %1208
    %1210 = vset.pattern.permute.xlu0 0
    %1211 = vperm.xlu0 %1210, %v1072
    %v1212 = vpop.permute.xlu0 %1211
    %1213 = vset.pattern.permute.xlu0 0
    %1214 = vperm.xlu0 %1213, %v1073
    %v1215 = vpop.permute.xlu0 %1214
    %1216 = vset.pattern.permute.xlu0 0
    %1217 = vperm.xlu0 %1216, %v1074
    %v1218 = vpop.permute.xlu0 %1217
    %v1219 = vlaneseq
    %v1220 = vand.u32 %v1219, 127
    %v1221 = vlaneseq
    %v1222 = vshrl.u32 %v1221, 7
    %v1223 = vsub.s32 %v1220, %v1222
    %v1224 = vrot.slane %v1125, %v1223
    %v1225 = vadd.s32 %v1220, 4294967288
    %v1226 = vlaneseq
    %v1227 = vshrl.u32 %v1226, 7
    %v1228 = vsub.s32 %v1225, %v1227
    %v1229 = vrot.slane %v1128, %v1228
    %vm1230 = vcmask 130112
    %v1231 = vsel %vm1230, %v1229, %v1224
    %v1232 = vadd.s32 %v1220, 4294967280
    %v1233 = vlaneseq
    %v1234 = vshrl.u32 %v1233, 7
    %v1235 = vsub.s32 %v1232, %v1234
    %v1236 = vrot.slane %v1131, %v1235
    %vm1237 = vcmask 195712
    %v1238 = vsel %vm1237, %v1236, %v1231
    %v1239 = vadd.s32 %v1220, 4294967272
    %v1240 = vlaneseq
    %v1241 = vshrl.u32 %v1240, 7
    %v1242 = vsub.s32 %v1239, %v1241
    %v1243 = vrot.slane %v1134, %v1242
    %vm1244 = vcmask 261312
    %v1245 = vsel %vm1244, %v1243, %v1238
    %v1246 = vadd.s32 %v1220, 4294967264
    %v1247 = vlaneseq
    %v1248 = vshrl.u32 %v1247, 7
    %v1249 = vsub.s32 %v1246, %v1248
    %v1250 = vrot.slane %v1137, %v1249
    %vm1251 = vcmask 326912
    %v1252 = vsel %vm1251, %v1250, %v1245
    %v1253 = vadd.s32 %v1220, 4294967256
    %v1254 = vlaneseq
    %v1255 = vshrl.u32 %v1254, 7
    %v1256 = vsub.s32 %v1253, %v1255
    %v1257 = vrot.slane %v1140, %v1256
    %vm1258 = vcmask 392512
    %v1259 = vsel %vm1258, %v1257, %v1252
    %v1260 = vadd.s32 %v1220, 4294967248
    %v1261 = vlaneseq
    %v1262 = vshrl.u32 %v1261, 7
    %v1263 = vsub.s32 %v1260, %v1262
    %v1264 = vrot.slane %v1143, %v1263
    %vm1265 = vcmask 458112
    %v1266 = vsel %vm1265, %v1264, %v1259
    %v1267 = vadd.s32 %v1220, 4294967240
    %v1268 = vlaneseq
    %v1269 = vshrl.u32 %v1268, 7
    %v1270 = vsub.s32 %v1267, %v1269
    %v1271 = vrot.slane %v1146, %v1270
    %vm1272 = vcmask 523712
    %v1273 = vsel %vm1272, %v1271, %v1266
    %v1274 = vadd.s32 %v1220, 4294967232
    %v1275 = vlaneseq
    %v1276 = vshrl.u32 %v1275, 7
    %v1277 = vsub.s32 %v1274, %v1276
    %v1278 = vrot.slane %v1149, %v1277
    %vm1279 = vcmask 589312
    %v1280 = vsel %vm1279, %v1278, %v1273
    %v1281 = vadd.s32 %v1220, 4294967224
    %v1282 = vlaneseq
    %v1283 = vshrl.u32 %v1282, 7
    %v1284 = vsub.s32 %v1281, %v1283
    %v1285 = vrot.slane %v1152, %v1284
    %vm1286 = vcmask 654912
    %v1287 = vsel %vm1286, %v1285, %v1280
    %v1288 = vadd.s32 %v1220, 4294967216
    %v1289 = vlaneseq
    %v1290 = vshrl.u32 %v1289, 7
    %v1291 = vsub.s32 %v1288, %v1290
    %v1292 = vrot.slane %v1155, %v1291
    %vm1293 = vcmask 720512
    %v1294 = vsel %vm1293, %v1292, %v1287
    %v1295 = vadd.s32 %v1220, 4294967208
    %v1296 = vlaneseq
    %v1297 = vshrl.u32 %v1296, 7
    %v1298 = vsub.s32 %v1295, %v1297
    %v1299 = vrot.slane %v1158, %v1298
    %vm1300 = vcmask 786112
    %v1301 = vsel %vm1300, %v1299, %v1294
    %v1302 = vadd.s32 %v1220, 4294967200
    %v1303 = vlaneseq
    %v1304 = vshrl.u32 %v1303, 7
    %v1305 = vsub.s32 %v1302, %v1304
    %v1306 = vrot.slane %v1161, %v1305
    %vm1307 = vcmask 851712
    %v1308 = vsel %vm1307, %v1306, %v1301
    %v1309 = vadd.s32 %v1220, 4294967192
    %v1310 = vlaneseq
    %v1311 = vshrl.u32 %v1310, 7
    %v1312 = vsub.s32 %v1309, %v1311
    %v1313 = vrot.slane %v1164, %v1312
    %vm1314 = vcmask 917312
    %v1315 = vsel %vm1314, %v1313, %v1308
    %v1316 = vadd.s32 %v1220, 4294967184
    %v1317 = vlaneseq
    %v1318 = vshrl.u32 %v1317, 7
    %v1319 = vsub.s32 %v1316, %v1318
    %v1320 = vrot.slane %v1167, %v1319
    %vm1321 = vcmask 982912
    %v1322 = vsel %vm1321, %v1320, %v1315
    %v1323 = vadd.s32 %v1220, 4294967176
    %v1324 = vlaneseq
    %v1325 = vshrl.u32 %v1324, 7
    %v1326 = vsub.s32 %v1323, %v1325
    %v1327 = vrot.slane %v1170, %v1326
    %vm1328 = vcmask 1048512
    %v1329 = vsel %vm1328, %v1327, %v1322
    %v1330 = vlaneseq
    %v1331 = vshrl.u32 %v1330, 7
    %v1332 = vsub.s32 %v1220, %v1331
    %v1333 = vrot.slane %v1173, %v1332
    %v1334 = vlaneseq
    %v1335 = vshrl.u32 %v1334, 7
    %v1336 = vsub.s32 %v1225, %v1335
    %v1337 = vrot.slane %v1176, %v1336
    %v1338 = vsel %vm1230, %v1337, %v1333
    %v1339 = vlaneseq
    %v1340 = vshrl.u32 %v1339, 7
    %v1341 = vsub.s32 %v1232, %v1340
    %v1342 = vrot.slane %v1179, %v1341
    %v1343 = vsel %vm1237, %v1342, %v1338
    %v1344 = vlaneseq
    %v1345 = vshrl.u32 %v1344, 7
    %v1346 = vsub.s32 %v1239, %v1345
    %v1347 = vrot.slane %v1182, %v1346
    %v1348 = vsel %vm1244, %v1347, %v1343
    %v1349 = vlaneseq
    %v1350 = vshrl.u32 %v1349, 7
    %v1351 = vsub.s32 %v1246, %v1350
    %v1352 = vrot.slane %v1185, %v1351
    %v1353 = vsel %vm1251, %v1352, %v1348
    %v1354 = vlaneseq
    %v1355 = vshrl.u32 %v1354, 7
    %v1356 = vsub.s32 %v1253, %v1355
    %v1357 = vrot.slane %v1188, %v1356
    %v1358 = vsel %vm1258, %v1357, %v1353
    %v1359 = vlaneseq
    %v1360 = vshrl.u32 %v1359, 7
    %v1361 = vsub.s32 %v1260, %v1360
    %v1362 = vrot.slane %v1191, %v1361
    %v1363 = vsel %vm1265, %v1362, %v1358
    %v1364 = vlaneseq
    %v1365 = vshrl.u32 %v1364, 7
    %v1366 = vsub.s32 %v1267, %v1365
    %v1367 = vrot.slane %v1194, %v1366
    %v1368 = vsel %vm1272, %v1367, %v1363
    %v1369 = vlaneseq
    %v1370 = vshrl.u32 %v1369, 7
    %v1371 = vsub.s32 %v1274, %v1370
    %v1372 = vrot.slane %v1197, %v1371
    %v1373 = vsel %vm1279, %v1372, %v1368
    %v1374 = vlaneseq
    %v1375 = vshrl.u32 %v1374, 7
    %v1376 = vsub.s32 %v1281, %v1375
    %v1377 = vrot.slane %v1200, %v1376
    %v1378 = vsel %vm1286, %v1377, %v1373
    %v1379 = vlaneseq
    %v1380 = vshrl.u32 %v1379, 7
    %v1381 = vsub.s32 %v1288, %v1380
    %v1382 = vrot.slane %v1203, %v1381
    %v1383 = vsel %vm1293, %v1382, %v1378
    %v1384 = vlaneseq
    %v1385 = vshrl.u32 %v1384, 7
    %v1386 = vsub.s32 %v1295, %v1385
    %v1387 = vrot.slane %v1206, %v1386
    %v1388 = vsel %vm1300, %v1387, %v1383
    %v1389 = vlaneseq
    %v1390 = vshrl.u32 %v1389, 7
    %v1391 = vsub.s32 %v1302, %v1390
    %v1392 = vrot.slane %v1209, %v1391
    %v1393 = vsel %vm1307, %v1392, %v1388
    %v1394 = vlaneseq
    %v1395 = vshrl.u32 %v1394, 7
    %v1396 = vsub.s32 %v1309, %v1395
    %v1397 = vrot.slane %v1212, %v1396
    %v1398 = vsel %vm1314, %v1397, %v1393
    %v1399 = vlaneseq
    %v1400 = vshrl.u32 %v1399, 7
    %v1401 = vsub.s32 %v1316, %v1400
    %v1402 = vrot.slane %v1215, %v1401
    %v1403 = vsel %vm1321, %v1402, %v1398
    %v1404 = vlaneseq
    %v1405 = vshrl.u32 %v1404, 7
    %v1406 = vsub.s32 %v1323, %v1405
    %v1407 = vrot.slane %v1218, %v1406
    %v1408 = vsel %vm1328, %v1407, %v1403
    %vm1409 = vcmask 1041409
    %v1410 = vsel %vm1409, %v1408, %v1329
    %1412 = vmatprep.subr.mxu0 0.0
    %1413 = vmatpush1.msra.mxu0 %v1075
    %1414 = vmatprep.subr.mxu0 0.0
    %1415 = vmatpush1.msra.mxu0 %v1076
    %1416 = vmatprep.subr.mxu0 0.0
    %1417 = vmatpush1.msra.mxu0 %v1077
    %1418 = vmatprep.subr.mxu0 0.0
    %1419 = vmatpush1.msra.mxu0 %v1078
    %1420 = vmatprep.subr.mxu0 0.0
    %1421 = vmatpush1.msra.mxu0 %v1079
    %1422 = vmatprep.subr.mxu0 0.0
    %1423 = vmatpush1.msra.mxu0 %v1080
    %1424 = vmatprep.subr.mxu0 0.0
    %1425 = vmatpush1.msra.mxu0 %v1081
    %1426 = vmatprep.subr.mxu0 0.0
    %1427 = vmatpush1.msra.mxu0 %v1082
    %1428 = vmatprep.subr.mxu0 0.0
    %1429 = vmatpush1.msra.mxu0 %v1083
    %1430 = vmatprep.subr.mxu0 0.0
    %1431 = vmatpush1.msra.mxu0 %v1084
    %1432 = vmatprep.subr.mxu0 0.0
    %1433 = vmatpush1.msra.mxu0 %v1085
    %1434 = vmatprep.subr.mxu0 0.0
    %1435 = vmatpush1.msra.mxu0 %v1086
    %1436 = vmatprep.subr.mxu0 0.0
    %1437 = vmatpush1.msra.mxu0 %v1087
    %1438 = vmatprep.subr.mxu0 0.0
    %1439 = vmatpush1.msra.mxu0 %v1088
    %1440 = vmatprep.subr.mxu0 0.0
    %1441 = vmatpush1.msra.mxu0 %v1089
    %1442 = vmatprep.subr.mxu0 0.0
    %1443 = vmatpush1.msra.mxu0 %v1090
    %1444 = vmatprep.subr.mxu0 0.0
    %1445 = vmatpush1.msra.mxu0 0.0
    %1446 = vmatprep.subr.mxu0 0.0
    %1447 = vmatpush1.msra.mxu0 0.0
    %1448 = vmatprep.subr.mxu0 0.0
    %1449 = vmatpush1.msra.mxu0 0.0
    %1450 = vmatprep.subr.mxu0 0.0
    %1451 = vmatpush1.msra.mxu0 0.0
    %1452 = vmatprep.subr.mxu0 0.0
    %1453 = vmatpush1.msra.mxu0 0.0
    %1454 = vmatprep.subr.mxu0 0.0
    %1455 = vmatpush1.msra.mxu0 0.0
    %1456 = vmatprep.subr.mxu0 0.0
    %1457 = vmatpush1.msra.mxu0 0.0
    %1458 = vmatprep.subr.mxu0 0.0
    %1459 = vmatpush1.msra.mxu0 0.0
    %1460 = vmatprep.subr.mxu0 0.0
    %1461 = vmatpush1.msra.mxu0 0.0
    %1462 = vmatprep.subr.mxu0 0.0
    %1463 = vmatpush1.msra.mxu0 0.0
    %1464 = vmatprep.subr.mxu0 0.0
    %1465 = vmatpush1.msra.mxu0 0.0
    %1466 = vmatprep.subr.mxu0 0.0
    %1467 = vmatpush1.msra.mxu0 0.0
    %1468 = vmatprep.subr.mxu0 0.0
    %1469 = vmatpush1.msra.mxu0 0.0
    %1470 = vmatprep.subr.mxu0 0.0
    %1471 = vmatpush1.msra.mxu0 0.0
    %1472 = vmatprep.subr.mxu0 0.0
    %1473 = vmatpush1.msra.mxu0 0.0
    %1474 = vmatprep.subr.mxu0 0.0
    %1475 = vmatpush1.msra.mxu0 0.0
    %1476 = vmatprep.mubr.f32.mxu0 0.0
    %1477 = vmatmul.mubr.f32.gmra.mrb[0].mxu0 %v1410
    %v1478 = vpop.f32.mrb[0].mxu0
    %v1479 = vadd.f32 0.0, %v1478
    %v1480 = vpop.f32.mrb[0].mxu0
    %1481 = vdwg.mxu0
    %v1482 = vlaneseq
    %v1483 = vshrl.u32 %v1482, 7
    %v1484 = vsub.s32 2, %v1483
    %v1485 = vrot.slane %v72, %v1484
    %v1486 = vmul.f32 %v1479, %v1485
    %v1487 = vlaneseq
    %v1488 = vshrl.u32 %v1487, 7
    %v1489 = vsub.s32 3, %v1488
    %v1490 = vrot.slane %v72, %v1489
    %v1491 = vadd.f32 %v1486, %v1490
    %v1492 = vmax.f32 %v1491, 0.0
    %1493 = vst [vmem:[#allocation2] sm:$0xff] 0
    %1494 = vst [vmem:[#allocation2 + $0x90] sm:$0xff] 0
    %1495 = vst [vmem:[#allocation2 + $0x88] sm:$0xff] 0
    %1496 = vst [vmem:[#allocation2 + $0x118] sm:$0xff] 0
    %v1497 = vld [vmem:[#allocation3] sm:$0xff]
    %v1498 = vld [vmem:[#allocation3 + $0x8] sm:$0xff]
    %v1499 = vld [vmem:[#allocation3 + $0x10] sm:$0xff]
    %v1500 = vld [vmem:[#allocation3 + $0x18] sm:$0xff]
    %v1501 = vld [vmem:[#allocation3 + $0x20] sm:$0xff]
    %v1502 = vld [vmem:[#allocation3 + $0x28] sm:$0xff]
    %v1503 = vld [vmem:[#allocation3 + $0x30] sm:$0xff]
    %v1504 = vld [vmem:[#allocation3 + $0x38] sm:$0xff]
    %v1505 = vld [vmem:[#allocation3 + $0x40] sm:$0xff]
    %v1506 = vld [vmem:[#allocation3 + $0x48] sm:$0xff]
    %v1507 = vld [vmem:[#allocation3 + $0x50] sm:$0xff]
    %v1508 = vld [vmem:[#allocation3 + $0x58] sm:$0xff]
    %v1509 = vld [vmem:[#allocation3 + $0x60] sm:$0xff]
    %v1510 = vld [vmem:[#allocation3 + $0x68] sm:$0xff]
    %v1511 = vld [vmem:[#allocation3 + $0x70] sm:$0xff]
    %v1512 = vld [vmem:[#allocation3 + $0x78] sm:$0xff]
    %v1513 = vld [vmem:[#allocation3 + $0x80] sm:$0xff]
    %v1514 = vld [vmem:[#allocation3 + $0x88] sm:$0xff]
    %v1515 = vld [vmem:[#allocation3 + $0x90] sm:$0xff]
    %v1516 = vld [vmem:[#allocation3 + $0x98] sm:$0xff]
    %v1517 = vld [vmem:[#allocation3 + $0xa0] sm:$0xff]
    %v1518 = vld [vmem:[#allocation3 + $0xa8] sm:$0xff]
    %v1519 = vld [vmem:[#allocation3 + $0xb0] sm:$0xff]
    %v1520 = vld [vmem:[#allocation3 + $0xb8] sm:$0xff]
    %v1521 = vld [vmem:[#allocation3 + $0xc0] sm:$0xff]
    %v1522 = vld [vmem:[#allocation3 + $0xc8] sm:$0xff]
    %v1523 = vld [vmem:[#allocation3 + $0xd0] sm:$0xff]
    %v1524 = vld [vmem:[#allocation3 + $0xd8] sm:$0xff]
    %v1525 = vld [vmem:[#allocation3 + $0xe0] sm:$0xff]
    %v1526 = vld [vmem:[#allocation3 + $0xe8] sm:$0xff]
    %v1527 = vld [vmem:[#allocation3 + $0xf0] sm:$0xff]
    %v1528 = vld [vmem:[#allocation3 + $0xf8] sm:$0xff]
    %1529 = vxpose.xlu0.b32.start [1/16] %v1497, 128
    %1530 = vxpose.xlu0.b32.cont [2/16] %v1499, 128
    %1531 = vxpose.xlu0.b32.cont [3/16] %v1501, 128
    %1532 = vxpose.xlu0.b32.cont [4/16] %v1503, 128
    %1533 = vxpose.xlu0.b32.cont [5/16] %v1505, 128
    %1534 = vxpose.xlu0.b32.cont [6/16] %v1507, 128
    %1535 = vxpose.xlu0.b32.cont [7/16] %v1509, 128
    %1536 = vxpose.xlu0.b32.cont [8/16] %v1511, 128
    %1537 = vxpose.xlu0.b32.cont [9/16] %v1513, 128
    %1538 = vxpose.xlu0.b32.cont [10/16] %v1515, 128
    %1539 = vxpose.xlu0.b32.cont [11/16] %v1517, 128
    %1540 = vxpose.xlu0.b32.cont [12/16] %v1519, 128
    %1541 = vxpose.xlu0.b32.cont [13/16] %v1521, 128
    %1542 = vxpose.xlu0.b32.cont [14/16] %v1523, 128
    %1543 = vxpose.xlu0.b32.cont [15/16] %v1525, 128
    %1544 = vxpose.xlu0.b32.end [16/16] %v1527, 128
    %v1545 = vpop.trf.xlu0
    %v1546 = vpop.trf.xlu0
    %v1547 = vpop.trf.xlu0
    %v1548 = vpop.trf.xlu0
    %v1549 = vpop.trf.xlu0
    %v1550 = vpop.trf.xlu0
    %v1551 = vpop.trf.xlu0
    %v1552 = vpop.trf.xlu0
    %v1553 = vpop.trf.xlu0
    %v1554 = vpop.trf.xlu0
    %v1555 = vpop.trf.xlu0
    %v1556 = vpop.trf.xlu0
    %v1557 = vpop.trf.xlu0
    %v1558 = vpop.trf.xlu0
    %v1559 = vpop.trf.xlu0
    %v1560 = vpop.trf.xlu0
    %1561 = vxpose.xlu0.b32.start [1/16] %v1498, 128
    %1562 = vxpose.xlu0.b32.cont [2/16] %v1500, 128
    %1563 = vxpose.xlu0.b32.cont [3/16] %v1502, 128
    %1564 = vxpose.xlu0.b32.cont [4/16] %v1504, 128
    %1565 = vxpose.xlu0.b32.cont [5/16] %v1506, 128
    %1566 = vxpose.xlu0.b32.cont [6/16] %v1508, 128
    %1567 = vxpose.xlu0.b32.cont [7/16] %v1510, 128
    %1568 = vxpose.xlu0.b32.cont [8/16] %v1512, 128
    %1569 = vxpose.xlu0.b32.cont [9/16] %v1514, 128
    %1570 = vxpose.xlu0.b32.cont [10/16] %v1516, 128
    %1571 = vxpose.xlu0.b32.cont [11/16] %v1518, 128
    %1572 = vxpose.xlu0.b32.cont [12/16] %v1520, 128
    %1573 = vxpose.xlu0.b32.cont [13/16] %v1522, 128
    %1574 = vxpose.xlu0.b32.cont [14/16] %v1524, 128
    %1575 = vxpose.xlu0.b32.cont [15/16] %v1526, 128
    %1576 = vxpose.xlu0.b32.end [16/16] %v1528, 128
    %v1577 = vpop.trf.xlu0
    %v1578 = vpop.trf.xlu0
    %v1579 = vpop.trf.xlu0
    %v1580 = vpop.trf.xlu0
    %v1581 = vpop.trf.xlu0
    %v1582 = vpop.trf.xlu0
    %v1583 = vpop.trf.xlu0
    %v1584 = vpop.trf.xlu0
    %v1585 = vpop.trf.xlu0
    %v1586 = vpop.trf.xlu0
    %v1587 = vpop.trf.xlu0
    %v1588 = vpop.trf.xlu0
    %v1589 = vpop.trf.xlu0
    %v1590 = vpop.trf.xlu0
    %v1591 = vpop.trf.xlu0
    %v1592 = vpop.trf.xlu0
    %v1593 = vlaneseq
    %v1594 = vshrl.u32 %v1593, 7
    %v1595 = vsub.s32 0, %v1594
    %v1596 = vrot.slane %v1492, %v1595
    %v1597 = vadd.f32 %v1545, %v1596
    %v1598 = vadd.f32 %v1546, %v1596
    %v1599 = vadd.f32 %v1547, %v1596
    %v1600 = vadd.f32 %v1548, %v1596
    %v1601 = vadd.f32 %v1549, %v1596
    %v1602 = vadd.f32 %v1550, %v1596
    %v1603 = vadd.f32 %v1551, %v1596
    %v1604 = vadd.f32 %v1552, %v1596
    %v1605 = vadd.f32 %v1553, %v1596
    %v1606 = vadd.f32 %v1554, %v1596
    %v1607 = vadd.f32 %v1555, %v1596
    %v1608 = vadd.f32 %v1556, %v1596
    %v1609 = vadd.f32 %v1557, %v1596
    %v1610 = vadd.f32 %v1558, %v1596
    %v1611 = vadd.f32 %v1559, %v1596
    %v1612 = vadd.f32 %v1560, %v1596
    %v1613 = vadd.f32 %v1577, %v1596
    %v1614 = vadd.f32 %v1578, %v1596
    %v1615 = vadd.f32 %v1579, %v1596
    %v1616 = vadd.f32 %v1580, %v1596
    %v1617 = vadd.f32 %v1581, %v1596
    %v1618 = vadd.f32 %v1582, %v1596
    %v1619 = vadd.f32 %v1583, %v1596
    %v1620 = vadd.f32 %v1584, %v1596
    %v1621 = vadd.f32 %v1585, %v1596
    %v1622 = vadd.f32 %v1586, %v1596
    %v1623 = vadd.f32 %v1587, %v1596
    %v1624 = vadd.f32 %v1588, %v1596
    %v1625 = vadd.f32 %v1589, %v1596
    %v1626 = vadd.f32 %v1590, %v1596
    %v1627 = vadd.f32 %v1591, %v1596
    %v1628 = vadd.f32 %v1592, %v1596
    %v1629 = vpack.c.bf16 %v1598, %v1597
    %v1630 = vpack.c.bf16 %v1600, %v1599
    %v1631 = vpack.c.bf16 %v1602, %v1601
    %v1632 = vpack.c.bf16 %v1604, %v1603
    %v1633 = vpack.c.bf16 %v1606, %v1605
    %v1634 = vpack.c.bf16 %v1608, %v1607
    %v1635 = vpack.c.bf16 %v1610, %v1609
    %v1636 = vpack.c.bf16 %v1612, %v1611
    %v1637 = vpack.c.bf16 %v1614, %v1613
    %v1638 = vpack.c.bf16 %v1616, %v1615
    %v1639 = vpack.c.bf16 %v1618, %v1617
    %v1640 = vpack.c.bf16 %v1620, %v1619
    %v1641 = vpack.c.bf16 %v1622, %v1621
    %v1642 = vpack.c.bf16 %v1624, %v1623
    %v1643 = vpack.c.bf16 %v1626, %v1625
    %v1644 = vpack.c.bf16 %v1628, %v1627
    %1645 = vst [vmem:[#allocation2 + $0x8] sm:$0xff] %v1629
    %1646 = vst [vmem:[#allocation2 + $0x10] sm:$0xff] %v1630
    %1647 = vst [vmem:[#allocation2 + $0x18] sm:$0xff] %v1631
    %1648 = vst [vmem:[#allocation2 + $0x20] sm:$0xff] %v1632
    %1649 = vst [vmem:[#allocation2 + $0x28] sm:$0xff] %v1633
    %1650 = vst [vmem:[#allocation2 + $0x30] sm:$0xff] %v1634
    %1651 = vst [vmem:[#allocation2 + $0x38] sm:$0xff] %v1635
    %1652 = vst [vmem:[#allocation2 + $0x40] sm:$0xff] %v1636
    %1653 = vst [vmem:[#allocation2 + $0x48] sm:$0xff] %v1637
    %1654 = vst [vmem:[#allocation2 + $0x50] sm:$0xff] %v1638
    %1655 = vst [vmem:[#allocation2 + $0x58] sm:$0xff] %v1639
    %1656 = vst [vmem:[#allocation2 + $0x60] sm:$0xff] %v1640
    %1657 = vst [vmem:[#allocation2 + $0x68] sm:$0xff] %v1641
    %1658 = vst [vmem:[#allocation2 + $0x70] sm:$0xff] %v1642
    %1659 = vst [vmem:[#allocation2 + $0x78] sm:$0xff] %v1643
    %1660 = vst [vmem:[#allocation2 + $0x80] sm:$0xff] %v1644
    %v1661 = vld [vmem:[#allocation2] sm:$0xff]
    %v1662 = vld [vmem:[#allocation2 + $0x8] sm:$0xff]
    %v1663 = vld [vmem:[#allocation2 + $0x10] sm:$0xff]
    %v1664 = vld [vmem:[#allocation2 + $0x18] sm:$0xff]
    %v1665 = vld [vmem:[#allocation2 + $0x20] sm:$0xff]
    %v1666 = vld [vmem:[#allocation2 + $0x28] sm:$0xff]
    %v1667 = vld [vmem:[#allocation2 + $0x30] sm:$0xff]
    %v1668 = vld [vmem:[#allocation2 + $0x38] sm:$0xff]
    %v1669 = vld [vmem:[#allocation2 + $0x40] sm:$0xff]
    %v1670 = vld [vmem:[#allocation2 + $0x48] sm:$0xff]
    %v1671 = vld [vmem:[#allocation2 + $0x50] sm:$0xff]
    %v1672 = vld [vmem:[#allocation2 + $0x58] sm:$0xff]
    %v1673 = vld [vmem:[#allocation2 + $0x60] sm:$0xff]
    %v1674 = vld [vmem:[#allocation2 + $0x68] sm:$0xff]
    %v1675 = vld [vmem:[#allocation2 + $0x70] sm:$0xff]
    %v1676 = vld [vmem:[#allocation2 + $0x78] sm:$0xff]
    %v1677 = vld [vmem:[#allocation2 + $0x80] sm:$0xff]
    %v1678 = vld [vmem:[#allocation2 + $0x88] sm:$0xff]
    %v1711 = vunpack.c.l.b16 %v73
    %v1712 = vunpack.c.h.b16 %v73
    %v1713 = vunpack.c.l.b16 %v74
    %v1714 = vunpack.c.l.b16 %v75
    %v1715 = vunpack.c.h.b16 %v75
    %v1716 = vunpack.c.l.b16 %v76
    %v1717 = vunpack.c.l.b16 %v77
    %v1718 = vunpack.c.h.b16 %v77
    %v1719 = vunpack.c.l.b16 %v78
    %v1720 = vunpack.c.l.b16 %v79
    %v1721 = vunpack.c.h.b16 %v79
    %v1722 = vunpack.c.l.b16 %v80
    %v1723 = vunpack.c.l.b16 %v81
    %v1724 = vunpack.c.h.b16 %v81
    %v1725 = vunpack.c.l.b16 %v82
    %v1726 = vunpack.c.l.b16 %v83
    %v1727 = vunpack.c.h.b16 %v83
    %v1728 = vunpack.c.l.b16 %v84
    %v1729 = vunpack.c.l.b16 %v85
    %v1730 = vunpack.c.h.b16 %v85
    %v1731 = vunpack.c.l.b16 %v86
    %v1732 = vunpack.c.l.b16 %v87
    %v1733 = vunpack.c.h.b16 %v87
    %v1734 = vunpack.c.l.b16 %v88
    %v1735 = vunpack.c.l.b16 %v89
    %v1736 = vunpack.c.h.b16 %v89
    %v1737 = vunpack.c.l.b16 %v90
    %v1738 = vunpack.c.l.b16 %v91
    %v1739 = vunpack.c.h.b16 %v91
    %v1740 = vunpack.c.l.b16 %v92
    %v1741 = vunpack.c.l.b16 %v93
    %v1742 = vunpack.c.h.b16 %v93
    %v1743 = vunpack.c.l.b16 %v94
    %v1744 = vunpack.c.l.b16 %v95
    %v1745 = vunpack.c.h.b16 %v95
    %v1746 = vunpack.c.l.b16 %v96
    %v1747 = vunpack.c.l.b16 %v97
    %v1748 = vunpack.c.h.b16 %v97
    %v1749 = vunpack.c.l.b16 %v98
    %v1750 = vunpack.c.l.b16 %v99
    %v1751 = vunpack.c.h.b16 %v99
    %v1752 = vunpack.c.l.b16 %v100
    %v1753 = vunpack.c.l.b16 %v101
    %v1754 = vunpack.c.h.b16 %v101
    %v1755 = vunpack.c.l.b16 %v102
    %v1756 = vunpack.c.l.b16 %v103
    %v1757 = vunpack.c.h.b16 %v103
    %v1758 = vunpack.c.l.b16 %v104
    %v1759 = vpack.c.b16 %v1714, %v1711
    %v1760 = vpack.c.b16 %v1715, %v1712
    %v1761 = vpack.c.b16 %v1716, %v1713
    %v1762 = vpack.c.b16 %v1720, %v1717
    %v1763 = vpack.c.b16 %v1721, %v1718
    %v1764 = vpack.c.b16 %v1722, %v1719
    %v1765 = vpack.c.b16 %v1726, %v1723
    %v1766 = vpack.c.b16 %v1727, %v1724
    %v1767 = vpack.c.b16 %v1728, %v1725
    %v1768 = vpack.c.b16 %v1732, %v1729
    %v1769 = vpack.c.b16 %v1733, %v1730
    %v1770 = vpack.c.b16 %v1734, %v1731
    %v1771 = vpack.c.b16 %v1738, %v1735
    %v1772 = vpack.c.b16 %v1739, %v1736
    %v1773 = vpack.c.b16 %v1740, %v1737
    %v1774 = vpack.c.b16 %v1744, %v1741
    %v1775 = vpack.c.b16 %v1745, %v1742
    %v1776 = vpack.c.b16 %v1746, %v1743
    %v1777 = vpack.c.b16 %v1750, %v1747
    %v1778 = vpack.c.b16 %v1751, %v1748
    %v1779 = vpack.c.b16 %v1752, %v1749
    %v1780 = vpack.c.b16 %v1756, %v1753
    %v1781 = vpack.c.b16 %v1757, %v1754
    %v1782 = vpack.c.b16 %v1758, %v1755
    %1807 = vmatprep.subr.bf16.mxu0 %v1760
    %1808 = vmatpush1.bf16.msra.mxu0 %v1759
    %1809 = vmatprep.subr.bf16.mxu0 %v1763
    %1810 = vmatpush1.bf16.msra.mxu0 %v1762
    %1811 = vmatprep.subr.bf16.mxu0 %v1766
    %1812 = vmatpush1.bf16.msra.mxu0 %v1765
    %1813 = vmatprep.subr.bf16.mxu0 %v1769
    %1814 = vmatpush1.bf16.msra.mxu0 %v1768
    %1815 = vmatprep.subr.bf16.mxu0 %v1772
    %1816 = vmatpush1.bf16.msra.mxu0 %v1771
    %1817 = vmatprep.subr.bf16.mxu0 %v1775
    %1818 = vmatpush1.bf16.msra.mxu0 %v1774
    %1819 = vmatprep.subr.bf16.mxu0 %v1778
    %1820 = vmatpush1.bf16.msra.mxu0 %v1777
    %1821 = vmatprep.subr.bf16.mxu0 %v1781
    %1822 = vmatpush1.bf16.msra.mxu0 %v1780
    %1823 = vmatprep.subr.bf16.mxu0 0
    %1824 = vmatpush1.bf16.msra.mxu0 0
    %1825 = vmatprep.subr.bf16.mxu0 0
    %1826 = vmatpush1.bf16.msra.mxu0 0
    %1827 = vmatprep.subr.bf16.mxu0 0
    %1828 = vmatpush1.bf16.msra.mxu0 0
    %1829 = vmatprep.subr.bf16.mxu0 0
    %1830 = vmatpush1.bf16.msra.mxu0 0
    %1831 = vmatprep.subr.bf16.mxu0 0
    %1832 = vmatpush1.bf16.msra.mxu0 0
    %1833 = vmatprep.subr.bf16.mxu0 0
    %1834 = vmatpush1.bf16.msra.mxu0 0
    %1835 = vmatprep.subr.bf16.mxu0 0
    %1836 = vmatpush1.bf16.msra.mxu0 0
    %1837 = vmatprep.subr.bf16.mxu0 0
    %1838 = vmatpush1.bf16.msra.mxu0 0
    %1839 = vmatprep.mubr.bf16.mxu0 0
    %1840 = vmatmul.mubr.bf16.gmra.mrb[0].mxu0 %v1661
    %v1841 = vpop.f32.mrb[0].mxu0
    %v1842 = vadd.f32 0.0, %v1841
    %v1843 = vpop.f32.mrb[0].mxu0
    %v1844 = vadd.f32 0.0, %v1843
    %v1845 = vpop.f32.mrb[0].mxu0
    %v1846 = vadd.f32 0.0, %v1845
    %v1847 = vpop.f32.mrb[0].mxu0
    %v1848 = vadd.f32 0.0, %v1847
    %1849 = vmatprep.mubr.bf16.mxu0 0
    %1850 = vmatmul.mubr.bf16.gmra.mrb[0].mxu0 %v1662
    %v1851 = vpop.f32.mrb[0].mxu0
    %v1852 = vadd.f32 0.0, %v1851
    %v1853 = vpop.f32.mrb[0].mxu0
    %v1854 = vadd.f32 0.0, %v1853
    %v1855 = vpop.f32.mrb[0].mxu0
    %v1856 = vadd.f32 0.0, %v1855
    %v1857 = vpop.f32.mrb[0].mxu0
    %v1858 = vadd.f32 0.0, %v1857
    %1859 = vmatprep.mubr.bf16.mxu0 0
    %1860 = vmatmul.mubr.bf16.gmra.mrb[0].mxu0 %v1663
    %v1861 = vpop.f32.mrb[0].mxu0
    %v1862 = vadd.f32 0.0, %v1861
    %v1863 = vpop.f32.mrb[0].mxu0
    %v1864 = vadd.f32 0.0, %v1863
    %v1865 = vpop.f32.mrb[0].mxu0
    %v1866 = vadd.f32 0.0, %v1865
    %v1867 = vpop.f32.mrb[0].mxu0
    %v1868 = vadd.f32 0.0, %v1867
    %1869 = vmatprep.mubr.bf16.mxu0 0
    %1870 = vmatmul.mubr.bf16.gmra.mrb[0].mxu0 %v1664
    %v1871 = vpop.f32.mrb[0].mxu0
    %v1872 = vadd.f32 0.0, %v1871
    %v1873 = vpop.f32.mrb[0].mxu0
    %v1874 = vadd.f32 0.0, %v1873
    %v1875 = vpop.f32.mrb[0].mxu0
    %v1876 = vadd.f32 0.0, %v1875
    %v1877 = vpop.f32.mrb[0].mxu0
    %v1878 = vadd.f32 0.0, %v1877
    %1879 = vmatprep.mubr.bf16.mxu0 0
    %1880 = vmatmul.mubr.bf16.gmra.mrb[0].mxu0 %v1665
    %v1881 = vpop.f32.mrb[0].mxu0
    %v1882 = vadd.f32 0.0, %v1881
    %v1883 = vpop.f32.mrb[0].mxu0
    %v1884 = vadd.f32 0.0, %v1883
    %v1885 = vpop.f32.mrb[0].mxu0
    %v1886 = vadd.f32 0.0, %v1885
    %v1887 = vpop.f32.mrb[0].mxu0
    %v1888 = vadd.f32 0.0, %v1887
    %1889 = vmatprep.mubr.bf16.mxu0 0
    %1890 = vmatmul.mubr.bf16.gmra.mrb[0].mxu0 %v1666
    %v1891 = vpop.f32.mrb[0].mxu0
    %v1892 = vadd.f32 0.0, %v1891
    %v1893 = vpop.f32.mrb[0].mxu0
    %v1894 = vadd.f32 0.0, %v1893
    %v1895 = vpop.f32.mrb[0].mxu0
    %v1896 = vadd.f32 0.0, %v1895
    %v1897 = vpop.f32.mrb[0].mxu0
    %v1898 = vadd.f32 0.0, %v1897
    %1899 = vmatprep.mubr.bf16.mxu0 0
    %1900 = vmatmul.mubr.bf16.gmra.mrb[0].mxu0 %v1667
    %v1901 = vpop.f32.mrb[0].mxu0
    %v1902 = vadd.f32 0.0, %v1901
    %v1903 = vpop.f32.mrb[0].mxu0
    %v1904 = vadd.f32 0.0, %v1903
    %v1905 = vpop.f32.mrb[0].mxu0
    %v1906 = vadd.f32 0.0, %v1905
    %v1907 = vpop.f32.mrb[0].mxu0
    %v1908 = vadd.f32 0.0, %v1907
    %1909 = vmatprep.mubr.bf16.mxu0 0
    %1910 = vmatmul.mubr.bf16.gmra.mrb[0].mxu0 %v1668
    %v1911 = vpop.f32.mrb[0].mxu0
    %v1912 = vadd.f32 0.0, %v1911
    %v1913 = vpop.f32.mrb[0].mxu0
    %v1914 = vadd.f32 0.0, %v1913
    %v1915 = vpop.f32.mrb[0].mxu0
    %v1916 = vadd.f32 0.0, %v1915
    %v1917 = vpop.f32.mrb[0].mxu0
    %v1918 = vadd.f32 0.0, %v1917
    %1919 = vmatprep.mubr.bf16.mxu0 0
    %1920 = vmatmul.mubr.bf16.gmra.mrb[0].mxu0 %v1669
    %v1921 = vpop.f32.mrb[0].mxu0
    %v1922 = vadd.f32 0.0, %v1921
    %v1923 = vpop.f32.mrb[0].mxu0
    %v1924 = vadd.f32 0.0, %v1923
    %v1925 = vpop.f32.mrb[0].mxu0
    %v1926 = vadd.f32 0.0, %v1925
    %v1927 = vpop.f32.mrb[0].mxu0
    %v1928 = vadd.f32 0.0, %v1927
    %1929 = vmatprep.mubr.bf16.mxu0 0
    %1930 = vmatmul.mubr.bf16.gmra.mrb[0].mxu0 %v1670
    %v1931 = vpop.f32.mrb[0].mxu0
    %v1932 = vadd.f32 0.0, %v1931
    %v1933 = vpop.f32.mrb[0].mxu0
    %v1934 = vadd.f32 0.0, %v1933
    %v1935 = vpop.f32.mrb[0].mxu0
    %v1936 = vadd.f32 0.0, %v1935
    %v1937 = vpop.f32.mrb[0].mxu0
    %v1938 = vadd.f32 0.0, %v1937
    %1939 = vmatprep.mubr.bf16.mxu0 0
    %1940 = vmatmul.mubr.bf16.gmra.mrb[0].mxu0 %v1671
    %v1941 = vpop.f32.mrb[0].mxu0
    %v1942 = vadd.f32 0.0, %v1941
    %v1943 = vpop.f32.mrb[0].mxu0
    %v1944 = vadd.f32 0.0, %v1943
    %v1945 = vpop.f32.mrb[0].mxu0
    %v1946 = vadd.f32 0.0, %v1945
    %v1947 = vpop.f32.mrb[0].mxu0
    %v1948 = vadd.f32 0.0, %v1947
    %1949 = vmatprep.mubr.bf16.mxu0 0
    %1950 = vmatmul.mubr.bf16.gmra.mrb[0].mxu0 %v1672
    %v1951 = vpop.f32.mrb[0].mxu0
    %v1952 = vadd.f32 0.0, %v1951
    %v1953 = vpop.f32.mrb[0].mxu0
    %v1954 = vadd.f32 0.0, %v1953
    %v1955 = vpop.f32.mrb[0].mxu0
    %v1956 = vadd.f32 0.0, %v1955
    %v1957 = vpop.f32.mrb[0].mxu0
    %v1958 = vadd.f32 0.0, %v1957
    %1959 = vmatprep.mubr.bf16.mxu0 0
    %1960 = vmatmul.mubr.bf16.gmra.mrb[0].mxu0 %v1673
    %v1961 = vpop.f32.mrb[0].mxu0
    %v1962 = vadd.f32 0.0, %v1961
    %v1963 = vpop.f32.mrb[0].mxu0
    %v1964 = vadd.f32 0.0, %v1963
    %v1965 = vpop.f32.mrb[0].mxu0
    %v1966 = vadd.f32 0.0, %v1965
    %v1967 = vpop.f32.mrb[0].mxu0
    %v1968 = vadd.f32 0.0, %v1967
    %1969 = vmatprep.mubr.bf16.mxu0 0
    %1970 = vmatmul.mubr.bf16.gmra.mrb[0].mxu0 %v1674
    %v1971 = vpop.f32.mrb[0].mxu0
    %v1972 = vadd.f32 0.0, %v1971
    %v1973 = vpop.f32.mrb[0].mxu0
    %v1974 = vadd.f32 0.0, %v1973
    %v1975 = vpop.f32.mrb[0].mxu0
    %v1976 = vadd.f32 0.0, %v1975
    %v1977 = vpop.f32.mrb[0].mxu0
    %v1978 = vadd.f32 0.0, %v1977
    %1979 = vmatprep.mubr.bf16.mxu0 0
    %1980 = vmatmul.mubr.bf16.gmra.mrb[0].mxu0 %v1675
    %v1981 = vpop.f32.mrb[0].mxu0
    %v1982 = vadd.f32 0.0, %v1981
    %v1983 = vpop.f32.mrb[0].mxu0
    %v1984 = vadd.f32 0.0, %v1983
    %v1985 = vpop.f32.mrb[0].mxu0
    %v1986 = vadd.f32 0.0, %v1985
    %v1987 = vpop.f32.mrb[0].mxu0
    %v1988 = vadd.f32 0.0, %v1987
    %1989 = vmatprep.mubr.bf16.mxu0 0
    %1990 = vmatmul.mubr.bf16.gmra.mrb[0].mxu0 %v1676
    %v1991 = vpop.f32.mrb[0].mxu0
    %v1992 = vadd.f32 0.0, %v1991
    %v1993 = vpop.f32.mrb[0].mxu0
    %v1994 = vadd.f32 0.0, %v1993
    %v1995 = vpop.f32.mrb[0].mxu0
    %v1996 = vadd.f32 0.0, %v1995
    %v1997 = vpop.f32.mrb[0].mxu0
    %v1998 = vadd.f32 0.0, %v1997
    %1999 = vdwg.mxu0
    %2000 = vmatprep.subr.bf16.mxu0 0
    %2001 = vmatpush1.bf16.msra.mxu0 %v1761
    %2002 = vmatprep.subr.bf16.mxu0 0
    %2003 = vmatpush1.bf16.msra.mxu0 %v1764
    %2004 = vmatprep.subr.bf16.mxu0 0
    %2005 = vmatpush1.bf16.msra.mxu0 %v1767
    %2006 = vmatprep.subr.bf16.mxu0 0
    %2007 = vmatpush1.bf16.msra.mxu0 %v1770
    %2008 = vmatprep.subr.bf16.mxu0 0
    %2009 = vmatpush1.bf16.msra.mxu0 %v1773
    %2010 = vmatprep.subr.bf16.mxu0 0
    %2011 = vmatpush1.bf16.msra.mxu0 %v1776
    %2012 = vmatprep.subr.bf16.mxu0 0
    %2013 = vmatpush1.bf16.msra.mxu0 %v1779
    %2014 = vmatprep.subr.bf16.mxu0 0
    %2015 = vmatpush1.bf16.msra.mxu0 %v1782
    %2016 = vmatprep.subr.bf16.mxu0 0
    %2017 = vmatpush1.bf16.msra.mxu0 0
    %2018 = vmatprep.subr.bf16.mxu0 0
    %2019 = vmatpush1.bf16.msra.mxu0 0
    %2020 = vmatprep.subr.bf16.mxu0 0
    %2021 = vmatpush1.bf16.msra.mxu0 0
    %2022 = vmatprep.subr.bf16.mxu0 0
    %2023 = vmatpush1.bf16.msra.mxu0 0
    %2024 = vmatprep.subr.bf16.mxu0 0
    %2025 = vmatpush1.bf16.msra.mxu0 0
    %2026 = vmatprep.subr.bf16.mxu0 0
    %2027 = vmatpush1.bf16.msra.mxu0 0
    %2028 = vmatprep.subr.bf16.mxu0 0
    %2029 = vmatpush1.bf16.msra.mxu0 0
    %2030 = vmatprep.subr.bf16.mxu0 0
    %2031 = vmatpush1.bf16.msra.mxu0 0
    %2032 = vmatprep.mubr.bf16.mxu0 0
    %2033 = vmatmul.mubr.bf16.gmra.mrb[0].mxu0 %v1661
    %v2034 = vpop.f32.mrb[0].mxu0
    %v2035 = vadd.f32 0.0, %v2034
    %v2036 = vpop.f32.mrb[0].mxu0
    %v2037 = vpop.f32.mrb[0].mxu0
    %v2038 = vadd.f32 0.0, %v2037
    %v2039 = vpop.f32.mrb[0].mxu0
    %2040 = vmatprep.mubr.bf16.mxu0 0
    %2041 = vmatmul.mubr.bf16.gmra.mrb[0].mxu0 %v1662
    %v2042 = vpop.f32.mrb[0].mxu0
    %v2043 = vadd.f32 0.0, %v2042
    %v2044 = vpop.f32.mrb[0].mxu0
    %v2045 = vpop.f32.mrb[0].mxu0
    %v2046 = vadd.f32 0.0, %v2045
    %v2047 = vpop.f32.mrb[0].mxu0
    %2048 = vmatprep.mubr.bf16.mxu0 0
    %2049 = vmatmul.mubr.bf16.gmra.mrb[0].mxu0 %v1663
    %v2050 = vpop.f32.mrb[0].mxu0
    %v2051 = vadd.f32 0.0, %v2050
    %v2052 = vpop.f32.mrb[0].mxu0
    %v2053 = vpop.f32.mrb[0].mxu0
    %v2054 = vadd.f32 0.0, %v2053
    %v2055 = vpop.f32.mrb[0].mxu0
    %2056 = vmatprep.mubr.bf16.mxu0 0
    %2057 = vmatmul.mubr.bf16.gmra.mrb[0].mxu0 %v1664
    %v2058 = vpop.f32.mrb[0].mxu0
    %v2059 = vadd.f32 0.0, %v2058
    %v2060 = vpop.f32.mrb[0].mxu0
    %v2061 = vpop.f32.mrb[0].mxu0
    %v2062 = vadd.f32 0.0, %v2061
    %v2063 = vpop.f32.mrb[0].mxu0
    %2064 = vmatprep.mubr.bf16.mxu0 0
    %2065 = vmatmul.mubr.bf16.gmra.mrb[0].mxu0 %v1665
    %v2066 = vpop.f32.mrb[0].mxu0
    %v2067 = vadd.f32 0.0, %v2066
    %v2068 = vpop.f32.mrb[0].mxu0
    %v2069 = vpop.f32.mrb[0].mxu0
    %v2070 = vadd.f32 0.0, %v2069
    %v2071 = vpop.f32.mrb[0].mxu0
    %2072 = vmatprep.mubr.bf16.mxu0 0
    %2073 = vmatmul.mubr.bf16.gmra.mrb[0].mxu0 %v1666
    %v2074 = vpop.f32.mrb[0].mxu0
    %v2075 = vadd.f32 0.0, %v2074
    %v2076 = vpop.f32.mrb[0].mxu0
    %v2077 = vpop.f32.mrb[0].mxu0
    %v2078 = vadd.f32 0.0, %v2077
    %v2079 = vpop.f32.mrb[0].mxu0
    %2080 = vmatprep.mubr.bf16.mxu0 0
    %2081 = vmatmul.mubr.bf16.gmra.mrb[0].mxu0 %v1667
    %v2082 = vpop.f32.mrb[0].mxu0
    %v2083 = vadd.f32 0.0, %v2082
    %v2084 = vpop.f32.mrb[0].mxu0
    %v2085 = vpop.f32.mrb[0].mxu0
    %v2086 = vadd.f32 0.0, %v2085
    %v2087 = vpop.f32.mrb[0].mxu0
    %2088 = vmatprep.mubr.bf16.mxu0 0
    %2089 = vmatmul.mubr.bf16.gmra.mrb[0].mxu0 %v1668
    %v2090 = vpop.f32.mrb[0].mxu0
    %v2091 = vadd.f32 0.0, %v2090
    %v2092 = vpop.f32.mrb[0].mxu0
    %v2093 = vpop.f32.mrb[0].mxu0
    %v2094 = vadd.f32 0.0, %v2093
    %v2095 = vpop.f32.mrb[0].mxu0
    %2096 = vmatprep.mubr.bf16.mxu0 0
    %2097 = vmatmul.mubr.bf16.gmra.mrb[0].mxu0 %v1669
    %v2098 = vpop.f32.mrb[0].mxu0
    %v2099 = vadd.f32 0.0, %v2098
    %v2100 = vpop.f32.mrb[0].mxu0
    %v2101 = vpop.f32.mrb[0].mxu0
    %v2102 = vadd.f32 0.0, %v2101
    %v2103 = vpop.f32.mrb[0].mxu0
    %2104 = vmatprep.mubr.bf16.mxu0 0
    %2105 = vmatmul.mubr.bf16.gmra.mrb[0].mxu0 %v1670
    %v2106 = vpop.f32.mrb[0].mxu0
    %v2107 = vadd.f32 0.0, %v2106
    %v2108 = vpop.f32.mrb[0].mxu0
    %v2109 = vpop.f32.mrb[0].mxu0
    %v2110 = vadd.f32 0.0, %v2109
    %v2111 = vpop.f32.mrb[0].mxu0
    %2112 = vmatprep.mubr.bf16.mxu0 0
    %2113 = vmatmul.mubr.bf16.gmra.mrb[0].mxu0 %v1671
    %v2114 = vpop.f32.mrb[0].mxu0
    %v2115 = vadd.f32 0.0, %v2114
    %v2116 = vpop.f32.mrb[0].mxu0
    %v2117 = vpop.f32.mrb[0].mxu0
    %v2118 = vadd.f32 0.0, %v2117
    %v2119 = vpop.f32.mrb[0].mxu0
    %2120 = vmatprep.mubr.bf16.mxu0 0
    %2121 = vmatmul.mubr.bf16.gmra.mrb[0].mxu0 %v1672
    %v2122 = vpop.f32.mrb[0].mxu0
    %v2123 = vadd.f32 0.0, %v2122
    %v2124 = vpop.f32.mrb[0].mxu0
    %v2125 = vpop.f32.mrb[0].mxu0
    %v2126 = vadd.f32 0.0, %v2125
    %v2127 = vpop.f32.mrb[0].mxu0
    %2128 = vmatprep.mubr.bf16.mxu0 0
    %2129 = vmatmul.mubr.bf16.gmra.mrb[0].mxu0 %v1673
    %v2130 = vpop.f32.mrb[0].mxu0
    %v2131 = vadd.f32 0.0, %v2130
    %v2132 = vpop.f32.mrb[0].mxu0
    %v2133 = vpop.f32.mrb[0].mxu0
    %v2134 = vadd.f32 0.0, %v2133
    %v2135 = vpop.f32.mrb[0].mxu0
    %2136 = vmatprep.mubr.bf16.mxu0 0
    %2137 = vmatmul.mubr.bf16.gmra.mrb[0].mxu0 %v1674
    %v2138 = vpop.f32.mrb[0].mxu0
    %v2139 = vadd.f32 0.0, %v2138
    %v2140 = vpop.f32.mrb[0].mxu0
    %v2141 = vpop.f32.mrb[0].mxu0
    %v2142 = vadd.f32 0.0, %v2141
    %v2143 = vpop.f32.mrb[0].mxu0
    %2144 = vmatprep.mubr.bf16.mxu0 0
    %2145 = vmatmul.mubr.bf16.gmra.mrb[0].mxu0 %v1675
    %v2146 = vpop.f32.mrb[0].mxu0
    %v2147 = vadd.f32 0.0, %v2146
    %v2148 = vpop.f32.mrb[0].mxu0
    %v2149 = vpop.f32.mrb[0].mxu0
    %v2150 = vadd.f32 0.0, %v2149
    %v2151 = vpop.f32.mrb[0].mxu0
    %2152 = vmatprep.mubr.bf16.mxu0 0
    %2153 = vmatmul.mubr.bf16.gmra.mrb[0].mxu0 %v1676
    %v2154 = vpop.f32.mrb[0].mxu0
    %v2155 = vadd.f32 0.0, %v2154
    %v2156 = vpop.f32.mrb[0].mxu0
    %v2157 = vpop.f32.mrb[0].mxu0
    %v2158 = vadd.f32 0.0, %v2157
    %v2159 = vpop.f32.mrb[0].mxu0
    %2160 = vdwg.mxu0
    %v2193 = vunpack.c.l.b16 %v105
    %v2194 = vunpack.c.h.b16 %v105
    %v2195 = vunpack.c.l.b16 %v106
    %v2196 = vunpack.c.l.b16 %v107
    %v2197 = vunpack.c.h.b16 %v107
    %v2198 = vunpack.c.l.b16 %v108
    %v2199 = vunpack.c.l.b16 %v109
    %v2200 = vunpack.c.h.b16 %v109
    %v2201 = vunpack.c.l.b16 %v110
    %v2202 = vunpack.c.l.b16 %v111
    %v2203 = vunpack.c.h.b16 %v111
    %v2204 = vunpack.c.l.b16 %v112
    %v2205 = vunpack.c.l.b16 %v113
    %v2206 = vunpack.c.h.b16 %v113
    %v2207 = vunpack.c.l.b16 %v114
    %v2208 = vunpack.c.l.b16 %v115
    %v2209 = vunpack.c.h.b16 %v115
    %v2210 = vunpack.c.l.b16 %v116
    %v2211 = vunpack.c.l.b16 %v117
    %v2212 = vunpack.c.h.b16 %v117
    %v2213 = vunpack.c.l.b16 %v118
    %v2214 = vunpack.c.l.b16 %v119
    %v2215 = vunpack.c.h.b16 %v119
    %v2216 = vunpack.c.l.b16 %v120
    %v2217 = vunpack.c.l.b16 %v121
    %v2218 = vunpack.c.h.b16 %v121
    %v2219 = vunpack.c.l.b16 %v122
    %v2220 = vunpack.c.l.b16 %v123
    %v2221 = vunpack.c.h.b16 %v123
    %v2222 = vunpack.c.l.b16 %v124
    %v2223 = vunpack.c.l.b16 %v125
    %v2224 = vunpack.c.h.b16 %v125
    %v2225 = vunpack.c.l.b16 %v126
    %v2226 = vunpack.c.l.b16 %v127
    %v2227 = vunpack.c.h.b16 %v127
    %v2228 = vunpack.c.l.b16 %v128
    %v2229 = vunpack.c.l.b16 %v129
    %v2230 = vunpack.c.h.b16 %v129
    %v2231 = vunpack.c.l.b16 %v130
    %v2232 = vunpack.c.l.b16 %v131
    %v2233 = vunpack.c.h.b16 %v131
    %v2234 = vunpack.c.l.b16 %v132
    %v2235 = vunpack.c.l.b16 %v133
    %v2236 = vunpack.c.h.b16 %v133
    %v2237 = vunpack.c.l.b16 %v134
    %v2238 = vunpack.c.l.b16 %v135
    %v2239 = vunpack.c.h.b16 %v135
    %v2240 = vunpack.c.l.b16 %v136
    %v2241 = vpack.c.b16 %v2196, %v2193
    %v2242 = vpack.c.b16 %v2197, %v2194
    %v2243 = vpack.c.b16 %v2198, %v2195
    %v2244 = vpack.c.b16 %v2202, %v2199
    %v2245 = vpack.c.b16 %v2203, %v2200
    %v2246 = vpack.c.b16 %v2204, %v2201
    %v2247 = vpack.c.b16 %v2208, %v2205
    %v2248 = vpack.c.b16 %v2209, %v2206
    %v2249 = vpack.c.b16 %v2210, %v2207
    %v2250 = vpack.c.b16 %v2214, %v2211
    %v2251 = vpack.c.b16 %v2215, %v2212
    %v2252 = vpack.c.b16 %v2216, %v2213
    %v2253 = vpack.c.b16 %v2220, %v2217
    %v2254 = vpack.c.b16 %v2221, %v2218
    %v2255 = vpack.c.b16 %v2222, %v2219
    %v2256 = vpack.c.b16 %v2226, %v2223
    %v2257 = vpack.c.b16 %v2227, %v2224
    %v2258 = vpack.c.b16 %v2228, %v2225
    %v2259 = vpack.c.b16 %v2232, %v2229
    %v2260 = vpack.c.b16 %v2233, %v2230
    %v2261 = vpack.c.b16 %v2234, %v2231
    %v2262 = vpack.c.b16 %v2238, %v2235
    %v2263 = vpack.c.b16 %v2239, %v2236
    %v2264 = vpack.c.b16 %v2240, %v2237
    %2289 = vmatprep.subr.bf16.mxu0 %v2242
    %2290 = vmatpush1.bf16.msra.mxu0 %v2241
    %2291 = vmatprep.subr.bf16.mxu0 %v2245
    %2292 = vmatpush1.bf16.msra.mxu0 %v2244
    %2293 = vmatprep.subr.bf16.mxu0 %v2248
    %2294 = vmatpush1.bf16.msra.mxu0 %v2247
    %2295 = vmatprep.subr.bf16.mxu0 %v2251
    %2296 = vmatpush1.bf16.msra.mxu0 %v2250
    %2297 = vmatprep.subr.bf16.mxu0 %v2254
    %2298 = vmatpush1.bf16.msra.mxu0 %v2253
    %2299 = vmatprep.subr.bf16.mxu0 %v2257
    %2300 = vmatpush1.bf16.msra.mxu0 %v2256
    %2301 = vmatprep.subr.bf16.mxu0 %v2260
    %2302 = vmatpush1.bf16.msra.mxu0 %v2259
    %2303 = vmatprep.subr.bf16.mxu0 %v2263
    %2304 = vmatpush1.bf16.msra.mxu0 %v2262
    %2305 = vmatprep.subr.bf16.mxu0 0
    %2306 = vmatpush1.bf16.msra.mxu0 0
    %2307 = vmatprep.subr.bf16.mxu0 0
    %2308 = vmatpush1.bf16.msra.mxu0 0
    %2309 = vmatprep.subr.bf16.mxu0 0
    %2310 = vmatpush1.bf16.msra.mxu0 0
    %2311 = vmatprep.subr.bf16.mxu0 0
    %2312 = vmatpush1.bf16.msra.mxu0 0
    %2313 = vmatprep.subr.bf16.mxu0 0
    %2314 = vmatpush1.bf16.msra.mxu0 0
    %2315 = vmatprep.subr.bf16.mxu0 0
    %2316 = vmatpush1.bf16.msra.mxu0 0
    %2317 = vmatprep.subr.bf16.mxu0 0
    %2318 = vmatpush1.bf16.msra.mxu0 0
    %2319 = vmatprep.subr.bf16.mxu0 0
    %2320 = vmatpush1.bf16.msra.mxu0 0
    %2321 = vmatprep.mubr.bf16.mxu0 0
    %2322 = vmatmul.mubr.bf16.gmra.mrb[0].mxu0 %v1629
    %v2323 = vpop.f32.mrb[0].mxu0
    %v2324 = vadd.f32 %v1842, %v2323
    %v2325 = vpop.f32.mrb[0].mxu0
    %v2326 = vadd.f32 %v1844, %v2325
    %v2327 = vpop.f32.mrb[0].mxu0
    %v2328 = vadd.f32 %v1846, %v2327
    %v2329 = vpop.f32.mrb[0].mxu0
    %v2330 = vadd.f32 %v1848, %v2329
    %2331 = vmatprep.mubr.bf16.mxu0 0
    %2332 = vmatmul.mubr.bf16.gmra.mrb[0].mxu0 %v1630
    %v2333 = vpop.f32.mrb[0].mxu0
    %v2334 = vadd.f32 %v1852, %v2333
    %v2335 = vpop.f32.mrb[0].mxu0
    %v2336 = vadd.f32 %v1854, %v2335
    %v2337 = vpop.f32.mrb[0].mxu0
    %v2338 = vadd.f32 %v1856, %v2337
    %v2339 = vpop.f32.mrb[0].mxu0
    %v2340 = vadd.f32 %v1858, %v2339
    %2341 = vmatprep.mubr.bf16.mxu0 0
    %2342 = vmatmul.mubr.bf16.gmra.mrb[0].mxu0 %v1631
    %v2343 = vpop.f32.mrb[0].mxu0
    %v2344 = vadd.f32 %v1862, %v2343
    %v2345 = vpop.f32.mrb[0].mxu0
    %v2346 = vadd.f32 %v1864, %v2345
    %v2347 = vpop.f32.mrb[0].mxu0
    %v2348 = vadd.f32 %v1866, %v2347
    %v2349 = vpop.f32.mrb[0].mxu0
    %v2350 = vadd.f32 %v1868, %v2349
    %2351 = vmatprep.mubr.bf16.mxu0 0
    %2352 = vmatmul.mubr.bf16.gmra.mrb[0].mxu0 %v1632
    %v2353 = vpop.f32.mrb[0].mxu0
    %v2354 = vadd.f32 %v1872, %v2353
    %v2355 = vpop.f32.mrb[0].mxu0
    %v2356 = vadd.f32 %v1874, %v2355
    %v2357 = vpop.f32.mrb[0].mxu0
    %v2358 = vadd.f32 %v1876, %v2357
    %v2359 = vpop.f32.mrb[0].mxu0
    %v2360 = vadd.f32 %v1878, %v2359
    %2361 = vmatprep.mubr.bf16.mxu0 0
    %2362 = vmatmul.mubr.bf16.gmra.mrb[0].mxu0 %v1633
    %v2363 = vpop.f32.mrb[0].mxu0
    %v2364 = vadd.f32 %v1882, %v2363
    %v2365 = vpop.f32.mrb[0].mxu0
    %v2366 = vadd.f32 %v1884, %v2365
    %v2367 = vpop.f32.mrb[0].mxu0
    %v2368 = vadd.f32 %v1886, %v2367
    %v2369 = vpop.f32.mrb[0].mxu0
    %v2370 = vadd.f32 %v1888, %v2369
    %2371 = vmatprep.mubr.bf16.mxu0 0
    %2372 = vmatmul.mubr.bf16.gmra.mrb[0].mxu0 %v1634
    %v2373 = vpop.f32.mrb[0].mxu0
    %v2374 = vadd.f32 %v1892, %v2373
    %v2375 = vpop.f32.mrb[0].mxu0
    %v2376 = vadd.f32 %v1894, %v2375
    %v2377 = vpop.f32.mrb[0].mxu0
    %v2378 = vadd.f32 %v1896, %v2377
    %v2379 = vpop.f32.mrb[0].mxu0
    %v2380 = vadd.f32 %v1898, %v2379
    %2381 = vmatprep.mubr.bf16.mxu0 0
    %2382 = vmatmul.mubr.bf16.gmra.mrb[0].mxu0 %v1635
    %v2383 = vpop.f32.mrb[0].mxu0
    %v2384 = vadd.f32 %v1902, %v2383
    %v2385 = vpop.f32.mrb[0].mxu0
    %v2386 = vadd.f32 %v1904, %v2385
    %v2387 = vpop.f32.mrb[0].mxu0
    %v2388 = vadd.f32 %v1906, %v2387
    %v2389 = vpop.f32.mrb[0].mxu0
    %v2390 = vadd.f32 %v1908, %v2389
    %2391 = vmatprep.mubr.bf16.mxu0 0
    %2392 = vmatmul.mubr.bf16.gmra.mrb[0].mxu0 %v1636
    %v2393 = vpop.f32.mrb[0].mxu0
    %v2394 = vadd.f32 %v1912, %v2393
    %v2395 = vpop.f32.mrb[0].mxu0
    %v2396 = vadd.f32 %v1914, %v2395
    %v2397 = vpop.f32.mrb[0].mxu0
    %v2398 = vadd.f32 %v1916, %v2397
    %v2399 = vpop.f32.mrb[0].mxu0
    %v2400 = vadd.f32 %v1918, %v2399
    %2401 = vmatprep.mubr.bf16.mxu0 0
    %2402 = vmatmul.mubr.bf16.gmra.mrb[0].mxu0 %v1637
    %v2403 = vpop.f32.mrb[0].mxu0
    %v2404 = vadd.f32 %v1922, %v2403
    %v2405 = vpop.f32.mrb[0].mxu0
    %v2406 = vadd.f32 %v1924, %v2405
    %v2407 = vpop.f32.mrb[0].mxu0
    %v2408 = vadd.f32 %v1926, %v2407
    %v2409 = vpop.f32.mrb[0].mxu0
    %v2410 = vadd.f32 %v1928, %v2409
    %2411 = vmatprep.mubr.bf16.mxu0 0
    %2412 = vmatmul.mubr.bf16.gmra.mrb[0].mxu0 %v1638
    %v2413 = vpop.f32.mrb[0].mxu0
    %v2414 = vadd.f32 %v1932, %v2413
    %v2415 = vpop.f32.mrb[0].mxu0
    %v2416 = vadd.f32 %v1934, %v2415
    %v2417 = vpop.f32.mrb[0].mxu0
    %v2418 = vadd.f32 %v1936, %v2417
    %v2419 = vpop.f32.mrb[0].mxu0
    %v2420 = vadd.f32 %v1938, %v2419
    %2421 = vmatprep.mubr.bf16.mxu0 0
    %2422 = vmatmul.mubr.bf16.gmra.mrb[0].mxu0 %v1639
    %v2423 = vpop.f32.mrb[0].mxu0
    %v2424 = vadd.f32 %v1942, %v2423
    %v2425 = vpop.f32.mrb[0].mxu0
    %v2426 = vadd.f32 %v1944, %v2425
    %v2427 = vpop.f32.mrb[0].mxu0
    %v2428 = vadd.f32 %v1946, %v2427
    %v2429 = vpop.f32.mrb[0].mxu0
    %v2430 = vadd.f32 %v1948, %v2429
    %2431 = vmatprep.mubr.bf16.mxu0 0
    %2432 = vmatmul.mubr.bf16.gmra.mrb[0].mxu0 %v1640
    %v2433 = vpop.f32.mrb[0].mxu0
    %v2434 = vadd.f32 %v1952, %v2433
    %v2435 = vpop.f32.mrb[0].mxu0
    %v2436 = vadd.f32 %v1954, %v2435
    %v2437 = vpop.f32.mrb[0].mxu0
    %v2438 = vadd.f32 %v1956, %v2437
    %v2439 = vpop.f32.mrb[0].mxu0
    %v2440 = vadd.f32 %v1958, %v2439
    %2441 = vmatprep.mubr.bf16.mxu0 0
    %2442 = vmatmul.mubr.bf16.gmra.mrb[0].mxu0 %v1641
    %v2443 = vpop.f32.mrb[0].mxu0
    %v2444 = vadd.f32 %v1962, %v2443
    %v2445 = vpop.f32.mrb[0].mxu0
    %v2446 = vadd.f32 %v1964, %v2445
    %v2447 = vpop.f32.mrb[0].mxu0
    %v2448 = vadd.f32 %v1966, %v2447
    %v2449 = vpop.f32.mrb[0].mxu0
    %v2450 = vadd.f32 %v1968, %v2449
    %2451 = vmatprep.mubr.bf16.mxu0 0
    %2452 = vmatmul.mubr.bf16.gmra.mrb[0].mxu0 %v1642
    %v2453 = vpop.f32.mrb[0].mxu0
    %v2454 = vadd.f32 %v1972, %v2453
    %v2455 = vpop.f32.mrb[0].mxu0
    %v2456 = vadd.f32 %v1974, %v2455
    %v2457 = vpop.f32.mrb[0].mxu0
    %v2458 = vadd.f32 %v1976, %v2457
    %v2459 = vpop.f32.mrb[0].mxu0
    %v2460 = vadd.f32 %v1978, %v2459
    %2461 = vmatprep.mubr.bf16.mxu0 0
    %2462 = vmatmul.mubr.bf16.gmra.mrb[0].mxu0 %v1643
    %v2463 = vpop.f32.mrb[0].mxu0
    %v2464 = vadd.f32 %v1982, %v2463
    %v2465 = vpop.f32.mrb[0].mxu0
    %v2466 = vadd.f32 %v1984, %v2465
    %v2467 = vpop.f32.mrb[0].mxu0
    %v2468 = vadd.f32 %v1986, %v2467
    %v2469 = vpop.f32.mrb[0].mxu0
    %v2470 = vadd.f32 %v1988, %v2469
    %2471 = vmatprep.mubr.bf16.mxu0 0
    %2472 = vmatmul.mubr.bf16.gmra.mrb[0].mxu0 %v1644
    %v2473 = vpop.f32.mrb[0].mxu0
    %v2474 = vadd.f32 %v1992, %v2473
    %v2475 = vpop.f32.mrb[0].mxu0
    %v2476 = vadd.f32 %v1994, %v2475
    %v2477 = vpop.f32.mrb[0].mxu0
    %v2478 = vadd.f32 %v1996, %v2477
    %v2479 = vpop.f32.mrb[0].mxu0
    %v2480 = vadd.f32 %v1998, %v2479
    %2481 = vdwg.mxu0
    %2482 = vmatprep.subr.bf16.mxu0 0
    %2483 = vmatpush1.bf16.msra.mxu0 %v2243
    %2484 = vmatprep.subr.bf16.mxu0 0
    %2485 = vmatpush1.bf16.msra.mxu0 %v2246
    %2486 = vmatprep.subr.bf16.mxu0 0
    %2487 = vmatpush1.bf16.msra.mxu0 %v2249
    %2488 = vmatprep.subr.bf16.mxu0 0
    %2489 = vmatpush1.bf16.msra.mxu0 %v2252
    %2490 = vmatprep.subr.bf16.mxu0 0
    %2491 = vmatpush1.bf16.msra.mxu0 %v2255
    %2492 = vmatprep.subr.bf16.mxu0 0
    %2493 = vmatpush1.bf16.msra.mxu0 %v2258
    %2494 = vmatprep.subr.bf16.mxu0 0
    %2495 = vmatpush1.bf16.msra.mxu0 %v2261
    %2496 = vmatprep.subr.bf16.mxu0 0
    %2497 = vmatpush1.bf16.msra.mxu0 %v2264
    %2498 = vmatprep.subr.bf16.mxu0 0
    %2499 = vmatpush1.bf16.msra.mxu0 0
    %2500 = vmatprep.subr.bf16.mxu0 0
    %2501 = vmatpush1.bf16.msra.mxu0 0
    %2502 = vmatprep.subr.bf16.mxu0 0
    %2503 = vmatpush1.bf16.msra.mxu0 0
    %2504 = vmatprep.subr.bf16.mxu0 0
    %2505 = vmatpush1.bf16.msra.mxu0 0
    %2506 = vmatprep.subr.bf16.mxu0 0
    %2507 = vmatpush1.bf16.msra.mxu0 0
    %2508 = vmatprep.subr.bf16.mxu0 0
    %2509 = vmatpush1.bf16.msra.mxu0 0
    %2510 = vmatprep.subr.bf16.mxu0 0
    %2511 = vmatpush1.bf16.msra.mxu0 0
    %2512 = vmatprep.subr.bf16.mxu0 0
    %2513 = vmatpush1.bf16.msra.mxu0 0
    %2514 = vmatprep.mubr.bf16.mxu0 0
    %2515 = vmatmul.mubr.bf16.gmra.mrb[0].mxu0 %v1629
    %v2516 = vpop.f32.mrb[0].mxu0
    %v2517 = vadd.f32 %v2035, %v2516
    %v2518 = vpop.f32.mrb[0].mxu0
    %v2519 = vpop.f32.mrb[0].mxu0
    %v2520 = vadd.f32 %v2038, %v2519
    %v2521 = vpop.f32.mrb[0].mxu0
    %2522 = vmatprep.mubr.bf16.mxu0 0
    %2523 = vmatmul.mubr.bf16.gmra.mrb[0].mxu0 %v1630
    %v2524 = vpop.f32.mrb[0].mxu0
    %v2525 = vadd.f32 %v2043, %v2524
    %v2526 = vpop.f32.mrb[0].mxu0
    %v2527 = vpop.f32.mrb[0].mxu0
    %v2528 = vadd.f32 %v2046, %v2527
    %v2529 = vpop.f32.mrb[0].mxu0
    %2530 = vmatprep.mubr.bf16.mxu0 0
    %2531 = vmatmul.mubr.bf16.gmra.mrb[0].mxu0 %v1631
    %v2532 = vpop.f32.mrb[0].mxu0
    %v2533 = vadd.f32 %v2051, %v2532
    %v2534 = vpop.f32.mrb[0].mxu0
    %v2535 = vpop.f32.mrb[0].mxu0
    %v2536 = vadd.f32 %v2054, %v2535
    %v2537 = vpop.f32.mrb[0].mxu0
    %2538 = vmatprep.mubr.bf16.mxu0 0
    %2539 = vmatmul.mubr.bf16.gmra.mrb[0].mxu0 %v1632
    %v2540 = vpop.f32.mrb[0].mxu0
    %v2541 = vadd.f32 %v2059, %v2540
    %v2542 = vpop.f32.mrb[0].mxu0
    %v2543 = vpop.f32.mrb[0].mxu0
    %v2544 = vadd.f32 %v2062, %v2543
    %v2545 = vpop.f32.mrb[0].mxu0
    %2546 = vmatprep.mubr.bf16.mxu0 0
    %2547 = vmatmul.mubr.bf16.gmra.mrb[0].mxu0 %v1633
    %v2548 = vpop.f32.mrb[0].mxu0
    %v2549 = vadd.f32 %v2067, %v2548
    %v2550 = vpop.f32.mrb[0].mxu0
    %v2551 = vpop.f32.mrb[0].mxu0
    %v2552 = vadd.f32 %v2070, %v2551
    %v2553 = vpop.f32.mrb[0].mxu0
    %2554 = vmatprep.mubr.bf16.mxu0 0
    %2555 = vmatmul.mubr.bf16.gmra.mrb[0].mxu0 %v1634
    %v2556 = vpop.f32.mrb[0].mxu0
    %v2557 = vadd.f32 %v2075, %v2556
    %v2558 = vpop.f32.mrb[0].mxu0
    %v2559 = vpop.f32.mrb[0].mxu0
    %v2560 = vadd.f32 %v2078, %v2559
    %v2561 = vpop.f32.mrb[0].mxu0
    %2562 = vmatprep.mubr.bf16.mxu0 0
    %2563 = vmatmul.mubr.bf16.gmra.mrb[0].mxu0 %v1635
    %v2564 = vpop.f32.mrb[0].mxu0
    %v2565 = vadd.f32 %v2083, %v2564
    %v2566 = vpop.f32.mrb[0].mxu0
    %v2567 = vpop.f32.mrb[0].mxu0
    %v2568 = vadd.f32 %v2086, %v2567
    %v2569 = vpop.f32.mrb[0].mxu0
    %2570 = vmatprep.mubr.bf16.mxu0 0
    %2571 = vmatmul.mubr.bf16.gmra.mrb[0].mxu0 %v1636
    %v2572 = vpop.f32.mrb[0].mxu0
    %v2573 = vadd.f32 %v2091, %v2572
    %v2574 = vpop.f32.mrb[0].mxu0
    %v2575 = vpop.f32.mrb[0].mxu0
    %v2576 = vadd.f32 %v2094, %v2575
    %v2577 = vpop.f32.mrb[0].mxu0
    %2578 = vmatprep.mubr.bf16.mxu0 0
    %2579 = vmatmul.mubr.bf16.gmra.mrb[0].mxu0 %v1637
    %v2580 = vpop.f32.mrb[0].mxu0
    %v2581 = vadd.f32 %v2099, %v2580
    %v2582 = vpop.f32.mrb[0].mxu0
    %v2583 = vpop.f32.mrb[0].mxu0
    %v2584 = vadd.f32 %v2102, %v2583
    %v2585 = vpop.f32.mrb[0].mxu0
    %2586 = vmatprep.mubr.bf16.mxu0 0
    %2587 = vmatmul.mubr.bf16.gmra.mrb[0].mxu0 %v1638
    %v2588 = vpop.f32.mrb[0].mxu0
    %v2589 = vadd.f32 %v2107, %v2588
    %v2590 = vpop.f32.mrb[0].mxu0
    %v2591 = vpop.f32.mrb[0].mxu0
    %v2592 = vadd.f32 %v2110, %v2591
    %v2593 = vpop.f32.mrb[0].mxu0
    %2594 = vmatprep.mubr.bf16.mxu0 0
    %2595 = vmatmul.mubr.bf16.gmra.mrb[0].mxu0 %v1639
    %v2596 = vpop.f32.mrb[0].mxu0
    %v2597 = vadd.f32 %v2115, %v2596
    %v2598 = vpop.f32.mrb[0].mxu0
    %v2599 = vpop.f32.mrb[0].mxu0
    %v2600 = vadd.f32 %v2118, %v2599
    %v2601 = vpop.f32.mrb[0].mxu0
    %2602 = vmatprep.mubr.bf16.mxu0 0
    %2603 = vmatmul.mubr.bf16.gmra.mrb[0].mxu0 %v1640
    %v2604 = vpop.f32.mrb[0].mxu0
    %v2605 = vadd.f32 %v2123, %v2604
    %v2606 = vpop.f32.mrb[0].mxu0
    %v2607 = vpop.f32.mrb[0].mxu0
    %v2608 = vadd.f32 %v2126, %v2607
    %v2609 = vpop.f32.mrb[0].mxu0
    %2610 = vmatprep.mubr.bf16.mxu0 0
    %2611 = vmatmul.mubr.bf16.gmra.mrb[0].mxu0 %v1641
    %v2612 = vpop.f32.mrb[0].mxu0
    %v2613 = vadd.f32 %v2131, %v2612
    %v2614 = vpop.f32.mrb[0].mxu0
    %v2615 = vpop.f32.mrb[0].mxu0
    %v2616 = vadd.f32 %v2134, %v2615
    %v2617 = vpop.f32.mrb[0].mxu0
    %2618 = vmatprep.mubr.bf16.mxu0 0
    %2619 = vmatmul.mubr.bf16.gmra.mrb[0].mxu0 %v1642
    %v2620 = vpop.f32.mrb[0].mxu0
    %v2621 = vadd.f32 %v2139, %v2620
    %v2622 = vpop.f32.mrb[0].mxu0
    %v2623 = vpop.f32.mrb[0].mxu0
    %v2624 = vadd.f32 %v2142, %v2623
    %v2625 = vpop.f32.mrb[0].mxu0
    %2626 = vmatprep.mubr.bf16.mxu0 0
    %2627 = vmatmul.mubr.bf16.gmra.mrb[0].mxu0 %v1643
    %v2628 = vpop.f32.mrb[0].mxu0
    %v2629 = vadd.f32 %v2147, %v2628
    %v2630 = vpop.f32.mrb[0].mxu0
    %v2631 = vpop.f32.mrb[0].mxu0
    %v2632 = vadd.f32 %v2150, %v2631
    %v2633 = vpop.f32.mrb[0].mxu0
    %2634 = vmatprep.mubr.bf16.mxu0 0
    %2635 = vmatmul.mubr.bf16.gmra.mrb[0].mxu0 %v1644
    %v2636 = vpop.f32.mrb[0].mxu0
    %v2637 = vadd.f32 %v2155, %v2636
    %v2638 = vpop.f32.mrb[0].mxu0
    %v2639 = vpop.f32.mrb[0].mxu0
    %v2640 = vadd.f32 %v2158, %v2639
    %v2641 = vpop.f32.mrb[0].mxu0
    %2642 = vdwg.mxu0
    %v2675 = vunpack.c.l.b16 %v137
    %v2676 = vunpack.c.h.b16 %v137
    %v2677 = vunpack.c.l.b16 %v138
    %v2678 = vunpack.c.l.b16 %v139
    %v2679 = vunpack.c.h.b16 %v139
    %v2680 = vunpack.c.l.b16 %v140
    %v2681 = vunpack.c.l.b16 %v141
    %v2682 = vunpack.c.h.b16 %v141
    %v2683 = vunpack.c.l.b16 %v142
    %v2684 = vunpack.c.l.b16 %v143
    %v2685 = vunpack.c.h.b16 %v143
    %v2686 = vunpack.c.l.b16 %v144
    %v2687 = vunpack.c.l.b16 %v145
    %v2688 = vunpack.c.h.b16 %v145
    %v2689 = vunpack.c.l.b16 %v146
    %v2690 = vunpack.c.l.b16 %v147
    %v2691 = vunpack.c.h.b16 %v147
    %v2692 = vunpack.c.l.b16 %v148
    %v2693 = vunpack.c.l.b16 %v149
    %v2694 = vunpack.c.h.b16 %v149
    %v2695 = vunpack.c.l.b16 %v150
    %v2696 = vunpack.c.l.b16 %v151
    %v2697 = vunpack.c.h.b16 %v151
    %v2698 = vunpack.c.l.b16 %v152
    %v2699 = vunpack.c.l.b16 %v153
    %v2700 = vunpack.c.h.b16 %v153
    %v2701 = vunpack.c.l.b16 %v154
    %v2702 = vunpack.c.l.b16 %v155
    %v2703 = vunpack.c.h.b16 %v155
    %v2704 = vunpack.c.l.b16 %v156
    %v2705 = vunpack.c.l.b16 %v157
    %v2706 = vunpack.c.h.b16 %v157
    %v2707 = vunpack.c.l.b16 %v158
    %v2708 = vunpack.c.l.b16 %v159
    %v2709 = vunpack.c.h.b16 %v159
    %v2710 = vunpack.c.l.b16 %v160
    %v2711 = vunpack.c.l.b16 %v161
    %v2712 = vunpack.c.h.b16 %v161
    %v2713 = vunpack.c.l.b16 %v162
    %v2714 = vunpack.c.l.b16 %v163
    %v2715 = vunpack.c.h.b16 %v163
    %v2716 = vunpack.c.l.b16 %v164
    %v2717 = vunpack.c.l.b16 %v165
    %v2718 = vunpack.c.h.b16 %v165
    %v2719 = vunpack.c.l.b16 %v166
    %v2720 = vunpack.c.l.b16 %v167
    %v2721 = vunpack.c.h.b16 %v167
    %v2722 = vunpack.c.l.b16 %v168
    %v2723 = vpack.c.b16 %v2678, %v2675
    %v2724 = vpack.c.b16 %v2679, %v2676
    %v2725 = vpack.c.b16 %v2680, %v2677
    %v2726 = vpack.c.b16 %v2684, %v2681
    %v2727 = vpack.c.b16 %v2685, %v2682
    %v2728 = vpack.c.b16 %v2686, %v2683
    %v2729 = vpack.c.b16 %v2690, %v2687
    %v2730 = vpack.c.b16 %v2691, %v2688
    %v2731 = vpack.c.b16 %v2692, %v2689
    %v2732 = vpack.c.b16 %v2696, %v2693
    %v2733 = vpack.c.b16 %v2697, %v2694
    %v2734 = vpack.c.b16 %v2698, %v2695
    %v2735 = vpack.c.b16 %v2702, %v2699
    %v2736 = vpack.c.b16 %v2703, %v2700
    %v2737 = vpack.c.b16 %v2704, %v2701
    %v2738 = vpack.c.b16 %v2708, %v2705
    %v2739 = vpack.c.b16 %v2709, %v2706
    %v2740 = vpack.c.b16 %v2710, %v2707
    %v2741 = vpack.c.b16 %v2714, %v2711
    %v2742 = vpack.c.b16 %v2715, %v2712
    %v2743 = vpack.c.b16 %v2716, %v2713
    %v2744 = vpack.c.b16 %v2720, %v2717
    %v2745 = vpack.c.b16 %v2721, %v2718
    %v2746 = vpack.c.b16 %v2722, %v2719
    %2771 = vmatprep.subr.bf16.mxu0 %v2724
    %2772 = vmatpush1.bf16.msra.mxu0 %v2723
    %2773 = vmatprep.subr.bf16.mxu0 %v2727
    %2774 = vmatpush1.bf16.msra.mxu0 %v2726
    %2775 = vmatprep.subr.bf16.mxu0 %v2730
    %2776 = vmatpush1.bf16.msra.mxu0 %v2729
    %2777 = vmatprep.subr.bf16.mxu0 %v2733
    %2778 = vmatpush1.bf16.msra.mxu0 %v2732
    %2779 = vmatprep.subr.bf16.mxu0 %v2736
    %2780 = vmatpush1.bf16.msra.mxu0 %v2735
    %2781 = vmatprep.subr.bf16.mxu0 %v2739
    %2782 = vmatpush1.bf16.msra.mxu0 %v2738
    %2783 = vmatprep.subr.bf16.mxu0 %v2742
    %2784 = vmatpush1.bf16.msra.mxu0 %v2741
    %2785 = vmatprep.subr.bf16.mxu0 %v2745
    %2786 = vmatpush1.bf16.msra.mxu0 %v2744
    %2787 = vmatprep.subr.bf16.mxu0 0
    %2788 = vmatpush1.bf16.msra.mxu0 0
    %2789 = vmatprep.subr.bf16.mxu0 0
    %2790 = vmatpush1.bf16.msra.mxu0 0
    %2791 = vmatprep.subr.bf16.mxu0 0
    %2792 = vmatpush1.bf16.msra.mxu0 0
    %2793 = vmatprep.subr.bf16.mxu0 0
    %2794 = vmatpush1.bf16.msra.mxu0 0
    %2795 = vmatprep.subr.bf16.mxu0 0
    %2796 = vmatpush1.bf16.msra.mxu0 0
    %2797 = vmatprep.subr.bf16.mxu0 0
    %2798 = vmatpush1.bf16.msra.mxu0 0
    %2799 = vmatprep.subr.bf16.mxu0 0
    %2800 = vmatpush1.bf16.msra.mxu0 0
    %2801 = vmatprep.subr.bf16.mxu0 0
    %2802 = vmatpush1.bf16.msra.mxu0 0
    %2803 = vmatprep.mubr.bf16.mxu0 0
    %2804 = vmatmul.mubr.bf16.gmra.mrb[0].mxu0 %v1663
    %v2805 = vpop.f32.mrb[0].mxu0
    %v2806 = vadd.f32 0.0, %v2805
    %v2807 = vpop.f32.mrb[0].mxu0
    %v2808 = vadd.f32 0.0, %v2807
    %v2809 = vpop.f32.mrb[0].mxu0
    %v2810 = vadd.f32 0.0, %v2809
    %v2811 = vpop.f32.mrb[0].mxu0
    %v2812 = vadd.f32 0.0, %v2811
    %2813 = vmatprep.mubr.bf16.mxu0 0
    %2814 = vmatmul.mubr.bf16.gmra.mrb[0].mxu0 %v1664
    %v2815 = vpop.f32.mrb[0].mxu0
    %v2816 = vadd.f32 0.0, %v2815
    %v2817 = vpop.f32.mrb[0].mxu0
    %v2818 = vadd.f32 0.0, %v2817
    %v2819 = vpop.f32.mrb[0].mxu0
    %v2820 = vadd.f32 0.0, %v2819
    %v2821 = vpop.f32.mrb[0].mxu0
    %v2822 = vadd.f32 0.0, %v2821
    %2823 = vmatprep.mubr.bf16.mxu0 0
    %2824 = vmatmul.mubr.bf16.gmra.mrb[0].mxu0 %v1665
    %v2825 = vpop.f32.mrb[0].mxu0
    %v2826 = vadd.f32 0.0, %v2825
    %v2827 = vpop.f32.mrb[0].mxu0
    %v2828 = vadd.f32 0.0, %v2827
    %v2829 = vpop.f32.mrb[0].mxu0
    %v2830 = vadd.f32 0.0, %v2829
    %v2831 = vpop.f32.mrb[0].mxu0
    %v2832 = vadd.f32 0.0, %v2831
    %2833 = vmatprep.mubr.bf16.mxu0 0
    %2834 = vmatmul.mubr.bf16.gmra.mrb[0].mxu0 %v1666
    %v2835 = vpop.f32.mrb[0].mxu0
    %v2836 = vadd.f32 0.0, %v2835
    %v2837 = vpop.f32.mrb[0].mxu0
    %v2838 = vadd.f32 0.0, %v2837
    %v2839 = vpop.f32.mrb[0].mxu0
    %v2840 = vadd.f32 0.0, %v2839
    %v2841 = vpop.f32.mrb[0].mxu0
    %v2842 = vadd.f32 0.0, %v2841
    %2843 = vmatprep.mubr.bf16.mxu0 0
    %2844 = vmatmul.mubr.bf16.gmra.mrb[0].mxu0 %v1667
    %v2845 = vpop.f32.mrb[0].mxu0
    %v2846 = vadd.f32 0.0, %v2845
    %v2847 = vpop.f32.mrb[0].mxu0
    %v2848 = vadd.f32 0.0, %v2847
    %v2849 = vpop.f32.mrb[0].mxu0
    %v2850 = vadd.f32 0.0, %v2849
    %v2851 = vpop.f32.mrb[0].mxu0
    %v2852 = vadd.f32 0.0, %v2851
    %2853 = vmatprep.mubr.bf16.mxu0 0
    %2854 = vmatmul.mubr.bf16.gmra.mrb[0].mxu0 %v1668
    %v2855 = vpop.f32.mrb[0].mxu0
    %v2856 = vadd.f32 0.0, %v2855
    %v2857 = vpop.f32.mrb[0].mxu0
    %v2858 = vadd.f32 0.0, %v2857
    %v2859 = vpop.f32.mrb[0].mxu0
    %v2860 = vadd.f32 0.0, %v2859
    %v2861 = vpop.f32.mrb[0].mxu0
    %v2862 = vadd.f32 0.0, %v2861
    %2863 = vmatprep.mubr.bf16.mxu0 0
    %2864 = vmatmul.mubr.bf16.gmra.mrb[0].mxu0 %v1669
    %v2865 = vpop.f32.mrb[0].mxu0
    %v2866 = vadd.f32 0.0, %v2865
    %v2867 = vpop.f32.mrb[0].mxu0
    %v2868 = vadd.f32 0.0, %v2867
    %v2869 = vpop.f32.mrb[0].mxu0
    %v2870 = vadd.f32 0.0, %v2869
    %v2871 = vpop.f32.mrb[0].mxu0
    %v2872 = vadd.f32 0.0, %v2871
    %2873 = vmatprep.mubr.bf16.mxu0 0
    %2874 = vmatmul.mubr.bf16.gmra.mrb[0].mxu0 %v1670
    %v2875 = vpop.f32.mrb[0].mxu0
    %v2876 = vadd.f32 0.0, %v2875
    %v2877 = vpop.f32.mrb[0].mxu0
    %v2878 = vadd.f32 0.0, %v2877
    %v2879 = vpop.f32.mrb[0].mxu0
    %v2880 = vadd.f32 0.0, %v2879
    %v2881 = vpop.f32.mrb[0].mxu0
    %v2882 = vadd.f32 0.0, %v2881
    %2883 = vmatprep.mubr.bf16.mxu0 0
    %2884 = vmatmul.mubr.bf16.gmra.mrb[0].mxu0 %v1671
    %v2885 = vpop.f32.mrb[0].mxu0
    %v2886 = vadd.f32 0.0, %v2885
    %v2887 = vpop.f32.mrb[0].mxu0
    %v2888 = vadd.f32 0.0, %v2887
    %v2889 = vpop.f32.mrb[0].mxu0
    %v2890 = vadd.f32 0.0, %v2889
    %v2891 = vpop.f32.mrb[0].mxu0
    %v2892 = vadd.f32 0.0, %v2891
    %2893 = vmatprep.mubr.bf16.mxu0 0
    %2894 = vmatmul.mubr.bf16.gmra.mrb[0].mxu0 %v1672
    %v2895 = vpop.f32.mrb[0].mxu0
    %v2896 = vadd.f32 0.0, %v2895
    %v2897 = vpop.f32.mrb[0].mxu0
    %v2898 = vadd.f32 0.0, %v2897
    %v2899 = vpop.f32.mrb[0].mxu0
    %v2900 = vadd.f32 0.0, %v2899
    %v2901 = vpop.f32.mrb[0].mxu0
    %v2902 = vadd.f32 0.0, %v2901
    %2903 = vmatprep.mubr.bf16.mxu0 0
    %2904 = vmatmul.mubr.bf16.gmra.mrb[0].mxu0 %v1673
    %v2905 = vpop.f32.mrb[0].mxu0
    %v2906 = vadd.f32 0.0, %v2905
    %v2907 = vpop.f32.mrb[0].mxu0
    %v2908 = vadd.f32 0.0, %v2907
    %v2909 = vpop.f32.mrb[0].mxu0
    %v2910 = vadd.f32 0.0, %v2909
    %v2911 = vpop.f32.mrb[0].mxu0
    %v2912 = vadd.f32 0.0, %v2911
    %2913 = vmatprep.mubr.bf16.mxu0 0
    %2914 = vmatmul.mubr.bf16.gmra.mrb[0].mxu0 %v1674
    %v2915 = vpop.f32.mrb[0].mxu0
    %v2916 = vadd.f32 0.0, %v2915
    %v2917 = vpop.f32.mrb[0].mxu0
    %v2918 = vadd.f32 0.0, %v2917
    %v2919 = vpop.f32.mrb[0].mxu0
    %v2920 = vadd.f32 0.0, %v2919
    %v2921 = vpop.f32.mrb[0].mxu0
    %v2922 = vadd.f32 0.0, %v2921
    %2923 = vmatprep.mubr.bf16.mxu0 0
    %2924 = vmatmul.mubr.bf16.gmra.mrb[0].mxu0 %v1675
    %v2925 = vpop.f32.mrb[0].mxu0
    %v2926 = vadd.f32 0.0, %v2925
    %v2927 = vpop.f32.mrb[0].mxu0
    %v2928 = vadd.f32 0.0, %v2927
    %v2929 = vpop.f32.mrb[0].mxu0
    %v2930 = vadd.f32 0.0, %v2929
    %v2931 = vpop.f32.mrb[0].mxu0
    %v2932 = vadd.f32 0.0, %v2931
    %2933 = vmatprep.mubr.bf16.mxu0 0
    %2934 = vmatmul.mubr.bf16.gmra.mrb[0].mxu0 %v1676
    %v2935 = vpop.f32.mrb[0].mxu0
    %v2936 = vadd.f32 0.0, %v2935
    %v2937 = vpop.f32.mrb[0].mxu0
    %v2938 = vadd.f32 0.0, %v2937
    %v2939 = vpop.f32.mrb[0].mxu0
    %v2940 = vadd.f32 0.0, %v2939
    %v2941 = vpop.f32.mrb[0].mxu0
    %v2942 = vadd.f32 0.0, %v2941
    %2943 = vmatprep.mubr.bf16.mxu0 0
    %2944 = vmatmul.mubr.bf16.gmra.mrb[0].mxu0 %v1677
    %v2945 = vpop.f32.mrb[0].mxu0
    %v2946 = vadd.f32 0.0, %v2945
    %v2947 = vpop.f32.mrb[0].mxu0
    %v2948 = vadd.f32 0.0, %v2947
    %v2949 = vpop.f32.mrb[0].mxu0
    %v2950 = vadd.f32 0.0, %v2949
    %v2951 = vpop.f32.mrb[0].mxu0
    %v2952 = vadd.f32 0.0, %v2951
    %2953 = vmatprep.mubr.bf16.mxu0 0
    %2954 = vmatmul.mubr.bf16.gmra.mrb[0].mxu0 %v1678
    %v2955 = vpop.f32.mrb[0].mxu0
    %v2956 = vadd.f32 0.0, %v2955
    %v2957 = vpop.f32.mrb[0].mxu0
    %v2958 = vadd.f32 0.0, %v2957
    %v2959 = vpop.f32.mrb[0].mxu0
    %v2960 = vadd.f32 0.0, %v2959
    %v2961 = vpop.f32.mrb[0].mxu0
    %v2962 = vadd.f32 0.0, %v2961
    %2963 = vdwg.mxu0
    %2964 = vmatprep.subr.bf16.mxu0 0
    %2965 = vmatpush1.bf16.msra.mxu0 %v2725
    %2966 = vmatprep.subr.bf16.mxu0 0
    %2967 = vmatpush1.bf16.msra.mxu0 %v2728
    %2968 = vmatprep.subr.bf16.mxu0 0
    %2969 = vmatpush1.bf16.msra.mxu0 %v2731
    %2970 = vmatprep.subr.bf16.mxu0 0
    %2971 = vmatpush1.bf16.msra.mxu0 %v2734
    %2972 = vmatprep.subr.bf16.mxu0 0
    %2973 = vmatpush1.bf16.msra.mxu0 %v2737
    %2974 = vmatprep.subr.bf16.mxu0 0
    %2975 = vmatpush1.bf16.msra.mxu0 %v2740
    %2976 = vmatprep.subr.bf16.mxu0 0
    %2977 = vmatpush1.bf16.msra.mxu0 %v2743
    %2978 = vmatprep.subr.bf16.mxu0 0
    %2979 = vmatpush1.bf16.msra.mxu0 %v2746
    %2980 = vmatprep.subr.bf16.mxu0 0
    %2981 = vmatpush1.bf16.msra.mxu0 0
    %2982 = vmatprep.subr.bf16.mxu0 0
    %2983 = vmatpush1.bf16.msra.mxu0 0
    %2984 = vmatprep.subr.bf16.mxu0 0
    %2985 = vmatpush1.bf16.msra.mxu0 0
    %2986 = vmatprep.subr.bf16.mxu0 0
    %2987 = vmatpush1.bf16.msra.mxu0 0
    %2988 = vmatprep.subr.bf16.mxu0 0
    %2989 = vmatpush1.bf16.msra.mxu0 0
    %2990 = vmatprep.subr.bf16.mxu0 0
    %2991 = vmatpush1.bf16.msra.mxu0 0
    %2992 = vmatprep.subr.bf16.mxu0 0
    %2993 = vmatpush1.bf16.msra.mxu0 0
    %2994 = vmatprep.subr.bf16.mxu0 0
    %2995 = vmatpush1.bf16.msra.mxu0 0
    %2996 = vmatprep.mubr.bf16.mxu0 0
    %2997 = vmatmul.mubr.bf16.gmra.mrb[0].mxu0 %v1663
    %v2998 = vpop.f32.mrb[0].mxu0
    %v2999 = vadd.f32 0.0, %v2998
    %v3000 = vpop.f32.mrb[0].mxu0
    %v3001 = vpop.f32.mrb[0].mxu0
    %v3002 = vadd.f32 0.0, %v3001
    %v3003 = vpop.f32.mrb[0].mxu0
    %3004 = vmatprep.mubr.bf16.mxu0 0
    %3005 = vmatmul.mubr.bf16.gmra.mrb[0].mxu0 %v1664
    %v3006 = vpop.f32.mrb[0].mxu0
    %v3007 = vadd.f32 0.0, %v3006
    %v3008 = vpop.f32.mrb[0].mxu0
    %v3009 = vpop.f32.mrb[0].mxu0
    %v3010 = vadd.f32 0.0, %v3009
    %v3011 = vpop.f32.mrb[0].mxu0
    %3012 = vmatprep.mubr.bf16.mxu0 0
    %3013 = vmatmul.mubr.bf16.gmra.mrb[0].mxu0 %v1665
    %v3014 = vpop.f32.mrb[0].mxu0
    %v3015 = vadd.f32 0.0, %v3014
    %v3016 = vpop.f32.mrb[0].mxu0
    %v3017 = vpop.f32.mrb[0].mxu0
    %v3018 = vadd.f32 0.0, %v3017
    %v3019 = vpop.f32.mrb[0].mxu0
    %3020 = vmatprep.mubr.bf16.mxu0 0
    %3021 = vmatmul.mubr.bf16.gmra.mrb[0].mxu0 %v1666
    %v3022 = vpop.f32.mrb[0].mxu0
    %v3023 = vadd.f32 0.0, %v3022
    %v3024 = vpop.f32.mrb[0].mxu0
    %v3025 = vpop.f32.mrb[0].mxu0
    %v3026 = vadd.f32 0.0, %v3025
    %v3027 = vpop.f32.mrb[0].mxu0
    %3028 = vmatprep.mubr.bf16.mxu0 0
    %3029 = vmatmul.mubr.bf16.gmra.mrb[0].mxu0 %v1667
    %v3030 = vpop.f32.mrb[0].mxu0
    %v3031 = vadd.f32 0.0, %v3030
    %v3032 = vpop.f32.mrb[0].mxu0
    %v3033 = vpop.f32.mrb[0].mxu0
    %v3034 = vadd.f32 0.0, %v3033
    %v3035 = vpop.f32.mrb[0].mxu0
    %3036 = vmatprep.mubr.bf16.mxu0 0
    %3037 = vmatmul.mubr.bf16.gmra.mrb[0].mxu0 %v1668
    %v3038 = vpop.f32.mrb[0].mxu0
    %v3039 = vadd.f32 0.0, %v3038
    %v3040 = vpop.f32.mrb[0].mxu0
    %v3041 = vpop.f32.mrb[0].mxu0
    %v3042 = vadd.f32 0.0, %v3041
    %v3043 = vpop.f32.mrb[0].mxu0
    %3044 = vmatprep.mubr.bf16.mxu0 0
    %3045 = vmatmul.mubr.bf16.gmra.mrb[0].mxu0 %v1669
    %v3046 = vpop.f32.mrb[0].mxu0
    %v3047 = vadd.f32 0.0, %v3046
    %v3048 = vpop.f32.mrb[0].mxu0
    %v3049 = vpop.f32.mrb[0].mxu0
    %v3050 = vadd.f32 0.0, %v3049
    %v3051 = vpop.f32.mrb[0].mxu0
    %3052 = vmatprep.mubr.bf16.mxu0 0
    %3053 = vmatmul.mubr.bf16.gmra.mrb[0].mxu0 %v1670
    %v3054 = vpop.f32.mrb[0].mxu0
    %v3055 = vadd.f32 0.0, %v3054
    %v3056 = vpop.f32.mrb[0].mxu0
    %v3057 = vpop.f32.mrb[0].mxu0
    %v3058 = vadd.f32 0.0, %v3057
    %v3059 = vpop.f32.mrb[0].mxu0
    %3060 = vmatprep.mubr.bf16.mxu0 0
    %3061 = vmatmul.mubr.bf16.gmra.mrb[0].mxu0 %v1671
    %v3062 = vpop.f32.mrb[0].mxu0
    %v3063 = vadd.f32 0.0, %v3062
    %v3064 = vpop.f32.mrb[0].mxu0
    %v3065 = vpop.f32.mrb[0].mxu0
    %v3066 = vadd.f32 0.0, %v3065
    %v3067 = vpop.f32.mrb[0].mxu0
    %3068 = vmatprep.mubr.bf16.mxu0 0
    %3069 = vmatmul.mubr.bf16.gmra.mrb[0].mxu0 %v1672
    %v3070 = vpop.f32.mrb[0].mxu0
    %v3071 = vadd.f32 0.0, %v3070
    %v3072 = vpop.f32.mrb[0].mxu0
    %v3073 = vpop.f32.mrb[0].mxu0
    %v3074 = vadd.f32 0.0, %v3073
    %v3075 = vpop.f32.mrb[0].mxu0
    %3076 = vmatprep.mubr.bf16.mxu0 0
    %3077 = vmatmul.mubr.bf16.gmra.mrb[0].mxu0 %v1673
    %v3078 = vpop.f32.mrb[0].mxu0
    %v3079 = vadd.f32 0.0, %v3078
    %v3080 = vpop.f32.mrb[0].mxu0
    %v3081 = vpop.f32.mrb[0].mxu0
    %v3082 = vadd.f32 0.0, %v3081
    %v3083 = vpop.f32.mrb[0].mxu0
    %3084 = vmatprep.mubr.bf16.mxu0 0
    %3085 = vmatmul.mubr.bf16.gmra.mrb[0].mxu0 %v1674
    %v3086 = vpop.f32.mrb[0].mxu0
    %v3087 = vadd.f32 0.0, %v3086
    %v3088 = vpop.f32.mrb[0].mxu0
    %v3089 = vpop.f32.mrb[0].mxu0
    %v3090 = vadd.f32 0.0, %v3089
    %v3091 = vpop.f32.mrb[0].mxu0
    %3092 = vmatprep.mubr.bf16.mxu0 0
    %3093 = vmatmul.mubr.bf16.gmra.mrb[0].mxu0 %v1675
    %v3094 = vpop.f32.mrb[0].mxu0
    %v3095 = vadd.f32 0.0, %v3094
    %v3096 = vpop.f32.mrb[0].mxu0
    %v3097 = vpop.f32.mrb[0].mxu0
    %v3098 = vadd.f32 0.0, %v3097
    %v3099 = vpop.f32.mrb[0].mxu0
    %3100 = vmatprep.mubr.bf16.mxu0 0
    %3101 = vmatmul.mubr.bf16.gmra.mrb[0].mxu0 %v1676
    %v3102 = vpop.f32.mrb[0].mxu0
    %v3103 = vadd.f32 0.0, %v3102
    %v3104 = vpop.f32.mrb[0].mxu0
    %v3105 = vpop.f32.mrb[0].mxu0
    %v3106 = vadd.f32 0.0, %v3105
    %v3107 = vpop.f32.mrb[0].mxu0
    %3108 = vmatprep.mubr.bf16.mxu0 0
    %3109 = vmatmul.mubr.bf16.gmra.mrb[0].mxu0 %v1677
    %v3110 = vpop.f32.mrb[0].mxu0
    %v3111 = vadd.f32 0.0, %v3110
    %v3112 = vpop.f32.mrb[0].mxu0
    %v3113 = vpop.f32.mrb[0].mxu0
    %v3114 = vadd.f32 0.0, %v3113
    %v3115 = vpop.f32.mrb[0].mxu0
    %3116 = vmatprep.mubr.bf16.mxu0 0
    %3117 = vmatmul.mubr.bf16.gmra.mrb[0].mxu0 %v1678
    %v3118 = vpop.f32.mrb[0].mxu0
    %v3119 = vadd.f32 0.0, %v3118
    %v3120 = vpop.f32.mrb[0].mxu0
    %v3121 = vpop.f32.mrb[0].mxu0
    %v3122 = vadd.f32 0.0, %v3121
    %v3123 = vpop.f32.mrb[0].mxu0
    %3124 = vdwg.mxu0
    %v3125 = vadd.f32 %v2324, %v2806
    %v3126 = vadd.f32 %v2326, %v2808
    %v3127 = vadd.f32 %v2517, %v2999
    %v3128 = vadd.f32 %v2328, %v2810
    %v3129 = vadd.f32 %v2330, %v2812
    %v3130 = vadd.f32 %v2520, %v3002
    %v3131 = vadd.f32 %v2334, %v2816
    %v3132 = vadd.f32 %v2336, %v2818
    %v3133 = vadd.f32 %v2525, %v3007
    %v3134 = vadd.f32 %v2338, %v2820
    %v3135 = vadd.f32 %v2340, %v2822
    %v3136 = vadd.f32 %v2528, %v3010
    %v3137 = vadd.f32 %v2344, %v2826
    %v3138 = vadd.f32 %v2346, %v2828
    %v3139 = vadd.f32 %v2533, %v3015
    %v3140 = vadd.f32 %v2348, %v2830
    %v3141 = vadd.f32 %v2350, %v2832
    %v3142 = vadd.f32 %v2536, %v3018
    %v3143 = vadd.f32 %v2354, %v2836
    %v3144 = vadd.f32 %v2356, %v2838
    %v3145 = vadd.f32 %v2541, %v3023
    %v3146 = vadd.f32 %v2358, %v2840
    %v3147 = vadd.f32 %v2360, %v2842
    %v3148 = vadd.f32 %v2544, %v3026
    %v3149 = vadd.f32 %v2364, %v2846
    %v3150 = vadd.f32 %v2366, %v2848
    %v3151 = vadd.f32 %v2549, %v3031
    %v3152 = vadd.f32 %v2368, %v2850
    %v3153 = vadd.f32 %v2370, %v2852
    %v3154 = vadd.f32 %v2552, %v3034
    %v3155 = vadd.f32 %v2374, %v2856
    %v3156 = vadd.f32 %v2376, %v2858
    %v3157 = vadd.f32 %v2557, %v3039
    %v3158 = vadd.f32 %v2378, %v2860
    %v3159 = vadd.f32 %v2380, %v2862
    %v3160 = vadd.f32 %v2560, %v3042
    %v3161 = vadd.f32 %v2384, %v2866
    %v3162 = vadd.f32 %v2386, %v2868
    %v3163 = vadd.f32 %v2565, %v3047
    %v3164 = vadd.f32 %v2388, %v2870
    %v3165 = vadd.f32 %v2390, %v2872
    %v3166 = vadd.f32 %v2568, %v3050
    %v3167 = vadd.f32 %v2394, %v2876
    %v3168 = vadd.f32 %v2396, %v2878
    %v3169 = vadd.f32 %v2573, %v3055
    %v3170 = vadd.f32 %v2398, %v2880
    %v3171 = vadd.f32 %v2400, %v2882
    %v3172 = vadd.f32 %v2576, %v3058
    %v3173 = vadd.f32 %v2404, %v2886
    %v3174 = vadd.f32 %v2406, %v2888
    %v3175 = vadd.f32 %v2581, %v3063
    %v3176 = vadd.f32 %v2408, %v2890
    %v3177 = vadd.f32 %v2410, %v2892
    %v3178 = vadd.f32 %v2584, %v3066
    %v3179 = vadd.f32 %v2414, %v2896
    %v3180 = vadd.f32 %v2416, %v2898
    %v3181 = vadd.f32 %v2589, %v3071
    %v3182 = vadd.f32 %v2418, %v2900
    %v3183 = vadd.f32 %v2420, %v2902
    %v3184 = vadd.f32 %v2592, %v3074
    %v3185 = vadd.f32 %v2424, %v2906
    %v3186 = vadd.f32 %v2426, %v2908
    %v3187 = vadd.f32 %v2597, %v3079
    %v3188 = vadd.f32 %v2428, %v2910
    %v3189 = vadd.f32 %v2430, %v2912
    %v3190 = vadd.f32 %v2600, %v3082
    %v3191 = vadd.f32 %v2434, %v2916
    %v3192 = vadd.f32 %v2436, %v2918
    %v3193 = vadd.f32 %v2605, %v3087
    %v3194 = vadd.f32 %v2438, %v2920
    %v3195 = vadd.f32 %v2440, %v2922
    %v3196 = vadd.f32 %v2608, %v3090
    %v3197 = vadd.f32 %v2444, %v2926
    %v3198 = vadd.f32 %v2446, %v2928
    %v3199 = vadd.f32 %v2613, %v3095
    %v3200 = vadd.f32 %v2448, %v2930
    %v3201 = vadd.f32 %v2450, %v2932
    %v3202 = vadd.f32 %v2616, %v3098
    %v3203 = vadd.f32 %v2454, %v2936
    %v3204 = vadd.f32 %v2456, %v2938
    %v3205 = vadd.f32 %v2621, %v3103
    %v3206 = vadd.f32 %v2458, %v2940
    %v3207 = vadd.f32 %v2460, %v2942
    %v3208 = vadd.f32 %v2624, %v3106
    %v3209 = vadd.f32 %v2464, %v2946
    %v3210 = vadd.f32 %v2466, %v2948
    %v3211 = vadd.f32 %v2629, %v3111
    %v3212 = vadd.f32 %v2468, %v2950
    %v3213 = vadd.f32 %v2470, %v2952
    %v3214 = vadd.f32 %v2632, %v3114
    %v3215 = vadd.f32 %v2474, %v2956
    %v3216 = vadd.f32 %v2476, %v2958
    %v3217 = vadd.f32 %v2637, %v3119
    %v3218 = vadd.f32 %v2478, %v2960
    %v3219 = vadd.f32 %v2480, %v2962
    %v3220 = vadd.f32 %v2640, %v3122
    %v3221 = vrot.slane %v3125, 7
    %v3222 = vrot.slane %v3128, 7
    %v3223 = vrot.slane %v3131, 7
    %v3224 = vrot.slane %v3134, 7
    %v3225 = vrot.slane %v3137, 7
    %v3226 = vrot.slane %v3140, 7
    %v3227 = vrot.slane %v3143, 7
    %v3228 = vrot.slane %v3146, 7
    %v3229 = vrot.slane %v3149, 7
    %v3230 = vrot.slane %v3152, 7
    %v3231 = vrot.slane %v3155, 7
    %v3232 = vrot.slane %v3158, 7
    %v3233 = vrot.slane %v3161, 7
    %v3234 = vrot.slane %v3164, 7
    %v3235 = vrot.slane %v3167, 7
    %v3236 = vrot.slane %v3170, 7
    %v3237 = vrot.slane %v3173, 7
    %v3238 = vrot.slane %v3176, 7
    %v3239 = vrot.slane %v3179, 7
    %v3240 = vrot.slane %v3182, 7
    %v3241 = vrot.slane %v3185, 7
    %v3242 = vrot.slane %v3188, 7
    %v3243 = vrot.slane %v3191, 7
    %v3244 = vrot.slane %v3194, 7
    %v3245 = vrot.slane %v3197, 7
    %v3246 = vrot.slane %v3200, 7
    %v3247 = vrot.slane %v3203, 7
    %v3248 = vrot.slane %v3206, 7
    %v3249 = vrot.slane %v3209, 7
    %v3250 = vrot.slane %v3212, 7
    %v3251 = vrot.slane %v3215, 7
    %v3252 = vrot.slane %v3218, 7
    %vm3253 = vcmp.lt.s32.totalorder %v170, 1
    %v3254 = vsel %vm3253, %v3251, %v3252
    %v3255 = vsel %vm3253, %v3250, %v3251
    %v3256 = vsel %vm3253, %v3249, %v3250
    %v3257 = vsel %vm3253, %v3248, %v3249
    %v3258 = vsel %vm3253, %v3247, %v3248
    %v3259 = vsel %vm3253, %v3246, %v3247
    %v3260 = vsel %vm3253, %v3245, %v3246
    %v3261 = vsel %vm3253, %v3244, %v3245
    %v3262 = vsel %vm3253, %v3243, %v3244
    %v3263 = vsel %vm3253, %v3242, %v3243
    %v3264 = vsel %vm3253, %v3241, %v3242
    %v3265 = vsel %vm3253, %v3240, %v3241
    %v3266 = vsel %vm3253, %v3239, %v3240
    %v3267 = vsel %vm3253, %v3238, %v3239
    %v3268 = vsel %vm3253, %v3237, %v3238
    %v3269 = vsel %vm3253, %v3236, %v3237
    %v3270 = vsel %vm3253, %v3235, %v3236
    %v3271 = vsel %vm3253, %v3234, %v3235
    %v3272 = vsel %vm3253, %v3233, %v3234
    %v3273 = vsel %vm3253, %v3232, %v3233
    %v3274 = vsel %vm3253, %v3231, %v3232
    %v3275 = vsel %vm3253, %v3230, %v3231
    %v3276 = vsel %vm3253, %v3229, %v3230
    %v3277 = vsel %vm3253, %v3228, %v3229
    %v3278 = vsel %vm3253, %v3227, %v3228
    %v3279 = vsel %vm3253, %v3226, %v3227
    %v3280 = vsel %vm3253, %v3225, %v3226
    %v3281 = vsel %vm3253, %v3224, %v3225
    %v3282 = vsel %vm3253, %v3223, %v3224
    %v3283 = vsel %vm3253, %v3222, %v3223
    %v3284 = vsel %vm3253, %v3221, %v3222
    %v3285 = vsel %vm3253, %v3252, %v3221
    %v3286 = vsel %vm586, 1, 0
    %v3287 = vsel %vm587, 1, 0
    %v3288 = vsel %vm588, 1, 0
    %v3289 = vsel %vm589, 1, 0
    %v3290 = vsel %vm590, 1, 0
    %v3291 = vsel %vm591, 1, 0
    %v3292 = vsel %vm592, 1, 0
    %v3293 = vsel %vm593, 1, 0
    %v3294 = vsel %vm594, 1, 0
    %v3295 = vsel %vm595, 1, 0
    %v3296 = vsel %vm596, 1, 0
    %v3297 = vsel %vm597, 1, 0
    %v3298 = vsel %vm598, 1, 0
    %v3299 = vsel %vm599, 1, 0
    %v3300 = vsel %vm600, 1, 0
    %v3301 = vsel %vm601, 1, 0
    %v3302 = vsel %vm602, 1, 0
    %v3303 = vsel %vm603, 1, 0
    %v3304 = vsel %vm604, 1, 0
    %v3305 = vsel %vm605, 1, 0
    %v3306 = vsel %vm606, 1, 0
    %v3307 = vsel %vm607, 1, 0
    %v3308 = vsel %vm608, 1, 0
    %v3309 = vsel %vm609, 1, 0
    %v3310 = vsel %vm610, 1, 0
    %v3311 = vsel %vm611, 1, 0
    %v3312 = vsel %vm612, 1, 0
    %v3313 = vsel %vm613, 1, 0
    %v3314 = vsel %vm614, 1, 0
    %v3315 = vsel %vm615, 1, 0
    %v3316 = vsel %vm616, 1, 0
    %v3317 = vsel %vm617, 1, 0
    %vm3318 = vcmp.eq.s32.totalorder %v3286, 1
    %vm3319 = vcmp.eq.s32.totalorder %v3287, 1
    %vm3320 = vcmp.eq.s32.totalorder %v3288, 1
    %vm3321 = vcmp.eq.s32.totalorder %v3289, 1
    %vm3322 = vcmp.eq.s32.totalorder %v3290, 1
    %vm3323 = vcmp.eq.s32.totalorder %v3291, 1
    %vm3324 = vcmp.eq.s32.totalorder %v3292, 1
    %vm3325 = vcmp.eq.s32.totalorder %v3293, 1
    %vm3326 = vcmp.eq.s32.totalorder %v3294, 1
    %vm3327 = vcmp.eq.s32.totalorder %v3295, 1
    %vm3328 = vcmp.eq.s32.totalorder %v3296, 1
    %vm3329 = vcmp.eq.s32.totalorder %v3297, 1
    %vm3330 = vcmp.eq.s32.totalorder %v3298, 1
    %vm3331 = vcmp.eq.s32.totalorder %v3299, 1
    %vm3332 = vcmp.eq.s32.totalorder %v3300, 1
    %vm3333 = vcmp.eq.s32.totalorder %v3301, 1
    %vm3334 = vcmp.eq.s32.totalorder %v3302, 1
    %vm3335 = vcmp.eq.s32.totalorder %v3303, 1
    %vm3336 = vcmp.eq.s32.totalorder %v3304, 1
    %vm3337 = vcmp.eq.s32.totalorder %v3305, 1
    %vm3338 = vcmp.eq.s32.totalorder %v3306, 1
    %vm3339 = vcmp.eq.s32.totalorder %v3307, 1
    %vm3340 = vcmp.eq.s32.totalorder %v3308, 1
    %vm3341 = vcmp.eq.s32.totalorder %v3309, 1
    %vm3342 = vcmp.eq.s32.totalorder %v3310, 1
    %vm3343 = vcmp.eq.s32.totalorder %v3311, 1
    %vm3344 = vcmp.eq.s32.totalorder %v3312, 1
    %vm3345 = vcmp.eq.s32.totalorder %v3313, 1
    %vm3346 = vcmp.eq.s32.totalorder %v3314, 1
    %vm3347 = vcmp.eq.s32.totalorder %v3315, 1
    %vm3348 = vcmp.eq.s32.totalorder %v3316, 1
    %vm3349 = vcmp.eq.s32.totalorder %v3317, 1
    %v3350 = vsel %vm3318, %v3285, 0.0
    %v3351 = vsel %vm3319, %v3284, 0.0
    %v3352 = vsel %vm3320, %v3283, 0.0
    %v3353 = vsel %vm3321, %v3282, 0.0
    %v3354 = vsel %vm3322, %v3281, 0.0
    %v3355 = vsel %vm3323, %v3280, 0.0
    %v3356 = vsel %vm3324, %v3279, 0.0
    %v3357 = vsel %vm3325, %v3278, 0.0
    %v3358 = vsel %vm3326, %v3277, 0.0
    %v3359 = vsel %vm3327, %v3276, 0.0
    %v3360 = vsel %vm3328, %v3275, 0.0
    %v3361 = vsel %vm3329, %v3274, 0.0
    %v3362 = vsel %vm3330, %v3273, 0.0
    %v3363 = vsel %vm3331, %v3272, 0.0
    %v3364 = vsel %vm3332, %v3271, 0.0
    %v3365 = vsel %vm3333, %v3270, 0.0
    %v3366 = vsel %vm3334, %v3269, 0.0
    %v3367 = vsel %vm3335, %v3268, 0.0
    %v3368 = vsel %vm3336, %v3267, 0.0
    %v3369 = vsel %vm3337, %v3266, 0.0
    %v3370 = vsel %vm3338, %v3265, 0.0
    %v3371 = vsel %vm3339, %v3264, 0.0
    %v3372 = vsel %vm3340, %v3263, 0.0
    %v3373 = vsel %vm3341, %v3262, 0.0
    %v3374 = vsel %vm3342, %v3261, 0.0
    %v3375 = vsel %vm3343, %v3260, 0.0
    %v3376 = vsel %vm3344, %v3259, 0.0
    %v3377 = vsel %vm3345, %v3258, 0.0
    %v3378 = vsel %vm3346, %v3257, 0.0
    %v3379 = vsel %vm3347, %v3256, 0.0
    %v3380 = vsel %vm3348, %v3255, 0.0
    %v3381 = vsel %vm3349, %v3254, 0.0
    %v3382 = vadd.f32 %v3126, %v3350
    %v3383 = vadd.f32 %v3129, %v3351
    %v3384 = vadd.f32 %v3132, %v3352
    %v3385 = vadd.f32 %v3135, %v3353
    %v3386 = vadd.f32 %v3138, %v3354
    %v3387 = vadd.f32 %v3141, %v3355
    %v3388 = vadd.f32 %v3144, %v3356
    %v3389 = vadd.f32 %v3147, %v3357
    %v3390 = vadd.f32 %v3150, %v3358
    %v3391 = vadd.f32 %v3153, %v3359
    %v3392 = vadd.f32 %v3156, %v3360
    %v3393 = vadd.f32 %v3159, %v3361
    %v3394 = vadd.f32 %v3162, %v3362
    %v3395 = vadd.f32 %v3165, %v3363
    %v3396 = vadd.f32 %v3168, %v3364
    %v3397 = vadd.f32 %v3171, %v3365
    %v3398 = vadd.f32 %v3174, %v3366
    %v3399 = vadd.f32 %v3177, %v3367
    %v3400 = vadd.f32 %v3180, %v3368
    %v3401 = vadd.f32 %v3183, %v3369
    %v3402 = vadd.f32 %v3186, %v3370
    %v3403 = vadd.f32 %v3189, %v3371
    %v3404 = vadd.f32 %v3192, %v3372
    %v3405 = vadd.f32 %v3195, %v3373
    %v3406 = vadd.f32 %v3198, %v3374
    %v3407 = vadd.f32 %v3201, %v3375
    %v3408 = vadd.f32 %v3204, %v3376
    %v3409 = vadd.f32 %v3207, %v3377
    %v3410 = vadd.f32 %v3210, %v3378
    %v3411 = vadd.f32 %v3213, %v3379
    %v3412 = vadd.f32 %v3216, %v3380
    %v3413 = vadd.f32 %v3219, %v3381
    %v3414 = vrot.slane %v3127, 1
    %v3415 = vrot.slane %v3130, 1
    %v3416 = vrot.slane %v3133, 1
    %v3417 = vrot.slane %v3136, 1
    %v3418 = vrot.slane %v3139, 1
    %v3419 = vrot.slane %v3142, 1
    %v3420 = vrot.slane %v3145, 1
    %v3421 = vrot.slane %v3148, 1
    %v3422 = vrot.slane %v3151, 1
    %v3423 = vrot.slane %v3154, 1
    %v3424 = vrot.slane %v3157, 1
    %v3425 = vrot.slane %v3160, 1
    %v3426 = vrot.slane %v3163, 1
    %v3427 = vrot.slane %v3166, 1
    %v3428 = vrot.slane %v3169, 1
    %v3429 = vrot.slane %v3172, 1
    %v3430 = vrot.slane %v3175, 1
    %v3431 = vrot.slane %v3178, 1
    %v3432 = vrot.slane %v3181, 1
    %v3433 = vrot.slane %v3184, 1
    %v3434 = vrot.slane %v3187, 1
    %v3435 = vrot.slane %v3190, 1
    %v3436 = vrot.slane %v3193, 1
    %v3437 = vrot.slane %v3196, 1
    %v3438 = vrot.slane %v3199, 1
    %v3439 = vrot.slane %v3202, 1
    %v3440 = vrot.slane %v3205, 1
    %v3441 = vrot.slane %v3208, 1
    %v3442 = vrot.slane %v3211, 1
    %v3443 = vrot.slane %v3214, 1
    %v3444 = vrot.slane %v3217, 1
    %v3445 = vrot.slane %v3220, 1
    %vm3446 = vcmp.lt.s32.totalorder %v170, 7
    %v3447 = vsel %vm3446, %v3444, %v3445
    %v3448 = vsel %vm3446, %v3443, %v3444
    %v3449 = vsel %vm3446, %v3442, %v3443
    %v3450 = vsel %vm3446, %v3441, %v3442
    %v3451 = vsel %vm3446, %v3440, %v3441
    %v3452 = vsel %vm3446, %v3439, %v3440
    %v3453 = vsel %vm3446, %v3438, %v3439
    %v3454 = vsel %vm3446, %v3437, %v3438
    %v3455 = vsel %vm3446, %v3436, %v3437
    %v3456 = vsel %vm3446, %v3435, %v3436
    %v3457 = vsel %vm3446, %v3434, %v3435
    %v3458 = vsel %vm3446, %v3433, %v3434
    %v3459 = vsel %vm3446, %v3432, %v3433
    %v3460 = vsel %vm3446, %v3431, %v3432
    %v3461 = vsel %vm3446, %v3430, %v3431
    %v3462 = vsel %vm3446, %v3429, %v3430
    %v3463 = vsel %vm3446, %v3428, %v3429
    %v3464 = vsel %vm3446, %v3427, %v3428
    %v3465 = vsel %vm3446, %v3426, %v3427
    %v3466 = vsel %vm3446, %v3425, %v3426
    %v3467 = vsel %vm3446, %v3424, %v3425
    %v3468 = vsel %vm3446, %v3423, %v3424
    %v3469 = vsel %vm3446, %v3422, %v3423
    %v3470 = vsel %vm3446, %v3421, %v3422
    %v3471 = vsel %vm3446, %v3420, %v3421
    %v3472 = vsel %vm3446, %v3419, %v3420
    %v3473 = vsel %vm3446, %v3418, %v3419
    %v3474 = vsel %vm3446, %v3417, %v3418
    %v3475 = vsel %vm3446, %v3416, %v3417
    %v3476 = vsel %vm3446, %v3415, %v3416
    %v3477 = vsel %vm3446, %v3414, %v3415
    %v3478 = vsel %vm3446, %v3445, %v3414
    %v3479 = vsel %vm618, 1, 0
    %v3480 = vsel %vm619, 1, 0
    %v3481 = vsel %vm620, 1, 0
    %v3482 = vsel %vm621, 1, 0
    %v3483 = vsel %vm622, 1, 0
    %v3484 = vsel %vm623, 1, 0
    %v3485 = vsel %vm624, 1, 0
    %v3486 = vsel %vm625, 1, 0
    %v3487 = vsel %vm626, 1, 0
    %v3488 = vsel %vm627, 1, 0
    %v3489 = vsel %vm628, 1, 0
    %v3490 = vsel %vm629, 1, 0
    %v3491 = vsel %vm630, 1, 0
    %v3492 = vsel %vm631, 1, 0
    %v3493 = vsel %vm632, 1, 0
    %v3494 = vsel %vm633, 1, 0
    %v3495 = vsel %vm634, 1, 0
    %v3496 = vsel %vm635, 1, 0
    %v3497 = vsel %vm636, 1, 0
    %v3498 = vsel %vm637, 1, 0
    %v3499 = vsel %vm638, 1, 0
    %v3500 = vsel %vm639, 1, 0
    %v3501 = vsel %vm640, 1, 0
    %v3502 = vsel %vm641, 1, 0
    %v3503 = vsel %vm642, 1, 0
    %v3504 = vsel %vm643, 1, 0
    %v3505 = vsel %vm644, 1, 0
    %v3506 = vsel %vm645, 1, 0
    %v3507 = vsel %vm646, 1, 0
    %v3508 = vsel %vm647, 1, 0
    %v3509 = vsel %vm648, 1, 0
    %v3510 = vsel %vm649, 1, 0
    %vm3511 = vcmp.eq.s32.totalorder %v3479, 1
    %vm3512 = vcmp.eq.s32.totalorder %v3480, 1
    %vm3513 = vcmp.eq.s32.totalorder %v3481, 1
    %vm3514 = vcmp.eq.s32.totalorder %v3482, 1
    %vm3515 = vcmp.eq.s32.totalorder %v3483, 1
    %vm3516 = vcmp.eq.s32.totalorder %v3484, 1
    %vm3517 = vcmp.eq.s32.totalorder %v3485, 1
    %vm3518 = vcmp.eq.s32.totalorder %v3486, 1
    %vm3519 = vcmp.eq.s32.totalorder %v3487, 1
    %vm3520 = vcmp.eq.s32.totalorder %v3488, 1
    %vm3521 = vcmp.eq.s32.totalorder %v3489, 1
    %vm3522 = vcmp.eq.s32.totalorder %v3490, 1
    %vm3523 = vcmp.eq.s32.totalorder %v3491, 1
    %vm3524 = vcmp.eq.s32.totalorder %v3492, 1
    %vm3525 = vcmp.eq.s32.totalorder %v3493, 1
    %vm3526 = vcmp.eq.s32.totalorder %v3494, 1
    %vm3527 = vcmp.eq.s32.totalorder %v3495, 1
    %vm3528 = vcmp.eq.s32.totalorder %v3496, 1
    %vm3529 = vcmp.eq.s32.totalorder %v3497, 1
    %vm3530 = vcmp.eq.s32.totalorder %v3498, 1
    %vm3531 = vcmp.eq.s32.totalorder %v3499, 1
    %vm3532 = vcmp.eq.s32.totalorder %v3500, 1
    %vm3533 = vcmp.eq.s32.totalorder %v3501, 1
    %vm3534 = vcmp.eq.s32.totalorder %v3502, 1
    %vm3535 = vcmp.eq.s32.totalorder %v3503, 1
    %vm3536 = vcmp.eq.s32.totalorder %v3504, 1
    %vm3537 = vcmp.eq.s32.totalorder %v3505, 1
    %vm3538 = vcmp.eq.s32.totalorder %v3506, 1
    %vm3539 = vcmp.eq.s32.totalorder %v3507, 1
    %vm3540 = vcmp.eq.s32.totalorder %v3508, 1
    %vm3541 = vcmp.eq.s32.totalorder %v3509, 1
    %vm3542 = vcmp.eq.s32.totalorder %v3510, 1
    %v3543 = vsel %vm3511, %v3477, 0.0
    %v3544 = vsel %vm3512, %v3476, 0.0
    %v3545 = vsel %vm3513, %v3475, 0.0
    %v3546 = vsel %vm3514, %v3474, 0.0
    %v3547 = vsel %vm3515, %v3473, 0.0
    %v3548 = vsel %vm3516, %v3472, 0.0
    %v3549 = vsel %vm3517, %v3471, 0.0
    %v3550 = vsel %vm3518, %v3470, 0.0
    %v3551 = vsel %vm3519, %v3469, 0.0
    %v3552 = vsel %vm3520, %v3468, 0.0
    %v3553 = vsel %vm3521, %v3467, 0.0
    %v3554 = vsel %vm3522, %v3466, 0.0
    %v3555 = vsel %vm3523, %v3465, 0.0
    %v3556 = vsel %vm3524, %v3464, 0.0
    %v3557 = vsel %vm3525, %v3463, 0.0
    %v3558 = vsel %vm3526, %v3462, 0.0
    %v3559 = vsel %vm3527, %v3461, 0.0
    %v3560 = vsel %vm3528, %v3460, 0.0
    %v3561 = vsel %vm3529, %v3459, 0.0
    %v3562 = vsel %vm3530, %v3458, 0.0
    %v3563 = vsel %vm3531, %v3457, 0.0
    %v3564 = vsel %vm3532, %v3456, 0.0
    %v3565 = vsel %vm3533, %v3455, 0.0
    %v3566 = vsel %vm3534, %v3454, 0.0
    %v3567 = vsel %vm3535, %v3453, 0.0
    %v3568 = vsel %vm3536, %v3452, 0.0
    %v3569 = vsel %vm3537, %v3451, 0.0
    %v3570 = vsel %vm3538, %v3450, 0.0
    %v3571 = vsel %vm3539, %v3449, 0.0
    %v3572 = vsel %vm3540, %v3448, 0.0
    %v3573 = vsel %vm3541, %v3447, 0.0
    %v3574 = vsel %vm3542, %v3478, 0.0
    %v3575 = vadd.f32 %v3382, %v3543
    %v3576 = vadd.f32 %v3383, %v3544
    %v3577 = vadd.f32 %v3384, %v3545
    %v3578 = vadd.f32 %v3385, %v3546
    %v3579 = vadd.f32 %v3386, %v3547
    %v3580 = vadd.f32 %v3387, %v3548
    %v3581 = vadd.f32 %v3388, %v3549
    %v3582 = vadd.f32 %v3389, %v3550
    %v3583 = vadd.f32 %v3390, %v3551
    %v3584 = vadd.f32 %v3391, %v3552
    %v3585 = vadd.f32 %v3392, %v3553
    %v3586 = vadd.f32 %v3393, %v3554
    %v3587 = vadd.f32 %v3394, %v3555
    %v3588 = vadd.f32 %v3395, %v3556
    %v3589 = vadd.f32 %v3396, %v3557
    %v3590 = vadd.f32 %v3397, %v3558
    %v3591 = vadd.f32 %v3398, %v3559
    %v3592 = vadd.f32 %v3399, %v3560
    %v3593 = vadd.f32 %v3400, %v3561
    %v3594 = vadd.f32 %v3401, %v3562
    %v3595 = vadd.f32 %v3402, %v3563
    %v3596 = vadd.f32 %v3403, %v3564
    %v3597 = vadd.f32 %v3404, %v3565
    %v3598 = vadd.f32 %v3405, %v3566
    %v3599 = vadd.f32 %v3406, %v3567
    %v3600 = vadd.f32 %v3407, %v3568
    %v3601 = vadd.f32 %v3408, %v3569
    %v3602 = vadd.f32 %v3409, %v3570
    %v3603 = vadd.f32 %v3410, %v3571
    %v3604 = vadd.f32 %v3411, %v3572
    %v3605 = vadd.f32 %v3412, %v3573
    %v3606 = vadd.f32 %v3413, %v3574
    %v3607 = vlaneseq
    %v3608 = vshrl.u32 %v3607, 7
    %v3609 = vsub.s32 4, %v3608
    %v3610 = vrot.slane %v72, %v3609
    %v3611 = vmul.f32 %v3575, %v3610
    %v3612 = vmul.f32 %v3576, %v3610
    %v3613 = vmul.f32 %v3577, %v3610
    %v3614 = vmul.f32 %v3578, %v3610
    %v3615 = vmul.f32 %v3579, %v3610
    %v3616 = vmul.f32 %v3580, %v3610
    %v3617 = vmul.f32 %v3581, %v3610
    %v3618 = vmul.f32 %v3582, %v3610
    %v3619 = vmul.f32 %v3583, %v3610
    %v3620 = vmul.f32 %v3584, %v3610
    %v3621 = vmul.f32 %v3585, %v3610
    %v3622 = vmul.f32 %v3586, %v3610
    %v3623 = vmul.f32 %v3587, %v3610
    %v3624 = vmul.f32 %v3588, %v3610
    %v3625 = vmul.f32 %v3589, %v3610
    %v3626 = vmul.f32 %v3590, %v3610
    %v3627 = vmul.f32 %v3591, %v3610
    %v3628 = vmul.f32 %v3592, %v3610
    %v3629 = vmul.f32 %v3593, %v3610
    %v3630 = vmul.f32 %v3594, %v3610
    %v3631 = vmul.f32 %v3595, %v3610
    %v3632 = vmul.f32 %v3596, %v3610
    %v3633 = vmul.f32 %v3597, %v3610
    %v3634 = vmul.f32 %v3598, %v3610
    %v3635 = vmul.f32 %v3599, %v3610
    %v3636 = vmul.f32 %v3600, %v3610
    %v3637 = vmul.f32 %v3601, %v3610
    %v3638 = vmul.f32 %v3602, %v3610
    %v3639 = vmul.f32 %v3603, %v3610
    %v3640 = vmul.f32 %v3604, %v3610
    %v3641 = vmul.f32 %v3605, %v3610
    %v3642 = vmul.f32 %v3606, %v3610
    %v3643 = vlaneseq
    %v3644 = vshrl.u32 %v3643, 7
    %v3645 = vsub.s32 5, %v3644
    %v3646 = vrot.slane %v72, %v3645
    %v3647 = vadd.f32 %v3611, %v3646
    %v3648 = vadd.f32 %v3612, %v3646
    %v3649 = vadd.f32 %v3613, %v3646
    %v3650 = vadd.f32 %v3614, %v3646
    %v3651 = vadd.f32 %v3615, %v3646
    %v3652 = vadd.f32 %v3616, %v3646
    %v3653 = vadd.f32 %v3617, %v3646
    %v3654 = vadd.f32 %v3618, %v3646
    %v3655 = vadd.f32 %v3619, %v3646
    %v3656 = vadd.f32 %v3620, %v3646
    %v3657 = vadd.f32 %v3621, %v3646
    %v3658 = vadd.f32 %v3622, %v3646
    %v3659 = vadd.f32 %v3623, %v3646
    %v3660 = vadd.f32 %v3624, %v3646
    %v3661 = vadd.f32 %v3625, %v3646
    %v3662 = vadd.f32 %v3626, %v3646
    %v3663 = vadd.f32 %v3627, %v3646
    %v3664 = vadd.f32 %v3628, %v3646
    %v3665 = vadd.f32 %v3629, %v3646
    %v3666 = vadd.f32 %v3630, %v3646
    %v3667 = vadd.f32 %v3631, %v3646
    %v3668 = vadd.f32 %v3632, %v3646
    %v3669 = vadd.f32 %v3633, %v3646
    %v3670 = vadd.f32 %v3634, %v3646
    %v3671 = vadd.f32 %v3635, %v3646
    %v3672 = vadd.f32 %v3636, %v3646
    %v3673 = vadd.f32 %v3637, %v3646
    %v3674 = vadd.f32 %v3638, %v3646
    %v3675 = vadd.f32 %v3639, %v3646
    %v3676 = vadd.f32 %v3640, %v3646
    %v3677 = vadd.f32 %v3641, %v3646
    %v3678 = vadd.f32 %v3642, %v3646
    %v3679 = vmax.f32 %v3647, 0.0
    %v3680 = vmax.f32 %v3648, 0.0
    %v3681 = vmax.f32 %v3649, 0.0
    %v3682 = vmax.f32 %v3650, 0.0
    %v3683 = vmax.f32 %v3651, 0.0
    %v3684 = vmax.f32 %v3652, 0.0
    %v3685 = vmax.f32 %v3653, 0.0
    %v3686 = vmax.f32 %v3654, 0.0
    %v3687 = vmax.f32 %v3655, 0.0
    %v3688 = vmax.f32 %v3656, 0.0
    %v3689 = vmax.f32 %v3657, 0.0
    %v3690 = vmax.f32 %v3658, 0.0
    %v3691 = vmax.f32 %v3659, 0.0
    %v3692 = vmax.f32 %v3660, 0.0
    %v3693 = vmax.f32 %v3661, 0.0
    %v3694 = vmax.f32 %v3662, 0.0
    %v3695 = vmax.f32 %v3663, 0.0
    %v3696 = vmax.f32 %v3664, 0.0
    %v3697 = vmax.f32 %v3665, 0.0
    %v3698 = vmax.f32 %v3666, 0.0
    %v3699 = vmax.f32 %v3667, 0.0
    %v3700 = vmax.f32 %v3668, 0.0
    %v3701 = vmax.f32 %v3669, 0.0
    %v3702 = vmax.f32 %v3670, 0.0
    %v3703 = vmax.f32 %v3671, 0.0
    %v3704 = vmax.f32 %v3672, 0.0
    %v3705 = vmax.f32 %v3673, 0.0
    %v3706 = vmax.f32 %v3674, 0.0
    %v3707 = vmax.f32 %v3675, 0.0
    %v3708 = vmax.f32 %v3676, 0.0
    %v3709 = vmax.f32 %v3677, 0.0
    %v3710 = vmax.f32 %v3678, 0.0
    %3711 = vxpose.xlu0.b32.start [1/16] %v3679, 128
    %3712 = vxpose.xlu0.b32.cont [2/16] %v3680, 128
    %3713 = vxpose.xlu0.b32.cont [3/16] %v3681, 128
    %3714 = vxpose.xlu0.b32.cont [4/16] %v3682, 128
    %3715 = vxpose.xlu0.b32.cont [5/16] %v3683, 128
    %3716 = vxpose.xlu0.b32.cont [6/16] %v3684, 128
    %3717 = vxpose.xlu0.b32.cont [7/16] %v3685, 128
    %3718 = vxpose.xlu0.b32.cont [8/16] %v3686, 128
    %3719 = vxpose.xlu0.b32.cont [9/16] %v3687, 128
    %3720 = vxpose.xlu0.b32.cont [10/16] %v3688, 128
    %3721 = vxpose.xlu0.b32.cont [11/16] %v3689, 128
    %3722 = vxpose.xlu0.b32.cont [12/16] %v3690, 128
    %3723 = vxpose.xlu0.b32.cont [13/16] %v3691, 128
    %3724 = vxpose.xlu0.b32.cont [14/16] %v3692, 128
    %3725 = vxpose.xlu0.b32.cont [15/16] %v3693, 128
    %3726 = vxpose.xlu0.b32.end [16/16] %v3694, 128
    %v3727 = vpop.trf.xlu0
    %v3728 = vpop.trf.xlu0
    %v3729 = vpop.trf.xlu0
    %v3730 = vpop.trf.xlu0
    %v3731 = vpop.trf.xlu0
    %v3732 = vpop.trf.xlu0
    %v3733 = vpop.trf.xlu0
    %v3734 = vpop.trf.xlu0
    %v3735 = vpop.trf.xlu0
    %v3736 = vpop.trf.xlu0
    %v3737 = vpop.trf.xlu0
    %v3738 = vpop.trf.xlu0
    %v3739 = vpop.trf.xlu0
    %v3740 = vpop.trf.xlu0
    %v3741 = vpop.trf.xlu0
    %v3742 = vpop.trf.xlu0
    %3743 = vxpose.xlu0.b32.start [1/16] %v3695, 128
    %3744 = vxpose.xlu0.b32.cont [2/16] %v3696, 128
    %3745 = vxpose.xlu0.b32.cont [3/16] %v3697, 128
    %3746 = vxpose.xlu0.b32.cont [4/16] %v3698, 128
    %3747 = vxpose.xlu0.b32.cont [5/16] %v3699, 128
    %3748 = vxpose.xlu0.b32.cont [6/16] %v3700, 128
    %3749 = vxpose.xlu0.b32.cont [7/16] %v3701, 128
    %3750 = vxpose.xlu0.b32.cont [8/16] %v3702, 128
    %3751 = vxpose.xlu0.b32.cont [9/16] %v3703, 128
    %3752 = vxpose.xlu0.b32.cont [10/16] %v3704, 128
    %3753 = vxpose.xlu0.b32.cont [11/16] %v3705, 128
    %3754 = vxpose.xlu0.b32.cont [12/16] %v3706, 128
    %3755 = vxpose.xlu0.b32.cont [13/16] %v3707, 128
    %3756 = vxpose.xlu0.b32.cont [14/16] %v3708, 128
    %3757 = vxpose.xlu0.b32.cont [15/16] %v3709, 128
    %3758 = vxpose.xlu0.b32.end [16/16] %v3710, 128
    %v3759 = vpop.trf.xlu0
    %v3760 = vpop.trf.xlu0
    %v3761 = vpop.trf.xlu0
    %v3762 = vpop.trf.xlu0
    %v3763 = vpop.trf.xlu0
    %v3764 = vpop.trf.xlu0
    %v3765 = vpop.trf.xlu0
    %v3766 = vpop.trf.xlu0
    %v3767 = vpop.trf.xlu0
    %v3768 = vpop.trf.xlu0
    %v3769 = vpop.trf.xlu0
    %v3770 = vpop.trf.xlu0
    %v3771 = vpop.trf.xlu0
    %v3772 = vpop.trf.xlu0
    %v3773 = vpop.trf.xlu0
    %v3774 = vpop.trf.xlu0
    %3775 = vst [vmem:[#allocation11] sm:$0xff] %v3727
    %3776 = vst [vmem:[#allocation11 + $0x8] sm:$0xff] %v3759
    %3777 = vst [vmem:[#allocation11 + $0x10] sm:$0xff] %v3728
    %3778 = vst [vmem:[#allocation11 + $0x18] sm:$0xff] %v3760
    %3779 = vst [vmem:[#allocation11 + $0x20] sm:$0xff] %v3729
    %3780 = vst [vmem:[#allocation11 + $0x28] sm:$0xff] %v3761
    %3781 = vst [vmem:[#allocation11 + $0x30] sm:$0xff] %v3730
    %3782 = vst [vmem:[#allocation11 + $0x38] sm:$0xff] %v3762
    %3783 = vst [vmem:[#allocation11 + $0x40] sm:$0xff] %v3731
    %3784 = vst [vmem:[#allocation11 + $0x48] sm:$0xff] %v3763
    %3785 = vst [vmem:[#allocation11 + $0x50] sm:$0xff] %v3732
    %3786 = vst [vmem:[#allocation11 + $0x58] sm:$0xff] %v3764
    %3787 = vst [vmem:[#allocation11 + $0x60] sm:$0xff] %v3733
    %3788 = vst [vmem:[#allocation11 + $0x68] sm:$0xff] %v3765
    %3789 = vst [vmem:[#allocation11 + $0x70] sm:$0xff] %v3734
    %3790 = vst [vmem:[#allocation11 + $0x78] sm:$0xff] %v3766
    %3791 = vst [vmem:[#allocation11 + $0x80] sm:$0xff] %v3735
    %3792 = vst [vmem:[#allocation11 + $0x88] sm:$0xff] %v3767
    %3793 = vst [vmem:[#allocation11 + $0x90] sm:$0xff] %v3736
    %3794 = vst [vmem:[#allocation11 + $0x98] sm:$0xff] %v3768
    %3795 = vst [vmem:[#allocation11 + $0xa0] sm:$0xff] %v3737
    %3796 = vst [vmem:[#allocation11 + $0xa8] sm:$0xff] %v3769
    %3797 = vst [vmem:[#allocation11 + $0xb0] sm:$0xff] %v3738
    %3798 = vst [vmem:[#allocation11 + $0xb8] sm:$0xff] %v3770
    %3799 = vst [vmem:[#allocation11 + $0xc0] sm:$0xff] %v3739
    %3800 = vst [vmem:[#allocation11 + $0xc8] sm:$0xff] %v3771
    %3801 = vst [vmem:[#allocation11 + $0xd0] sm:$0xff] %v3740
    %3802 = vst [vmem:[#allocation11 + $0xd8] sm:$0xff] %v3772
    %3803 = vst [vmem:[#allocation11 + $0xe0] sm:$0xff] %v3741
    %3804 = vst [vmem:[#allocation11 + $0xe8] sm:$0xff] %v3773
    %3805 = vst [vmem:[#allocation11 + $0xf0] sm:$0xff] %v3742
    %3806 = vst [vmem:[#allocation11 + $0xf8] sm:$0xff] %v3774
    %s3807 = scalar_lea.vmem [#allocation3], 256
    %v3808 = vld [vmem:[%s3807] sm:$0xff]
    %v3809 = vld [vmem:[%s3807 + $0x8] sm:$0xff]
    %v3810 = vld [vmem:[%s3807 + $0x10] sm:$0xff]
    %v3811 = vld [vmem:[%s3807 + $0x18] sm:$0xff]
    %v3812 = vld [vmem:[%s3807 + $0x20] sm:$0xff]
    %v3813 = vld [vmem:[%s3807 + $0x28] sm:$0xff]
    %v3814 = vld [vmem:[%s3807 + $0x30] sm:$0xff]
    %v3815 = vld [vmem:[%s3807 + $0x38] sm:$0xff]
    %v3816 = vld [vmem:[%s3807 + $0x40] sm:$0xff]
    %v3817 = vld [vmem:[%s3807 + $0x48] sm:$0xff]
    %v3818 = vld [vmem:[%s3807 + $0x50] sm:$0xff]
    %v3819 = vld [vmem:[%s3807 + $0x58] sm:$0xff]
    %v3820 = vld [vmem:[%s3807 + $0x60] sm:$0xff]
    %v3821 = vld [vmem:[%s3807 + $0x68] sm:$0xff]
    %v3822 = vld [vmem:[%s3807 + $0x70] sm:$0xff]
    %v3823 = vld [vmem:[%s3807 + $0x78] sm:$0xff]
    %v3824 = vld [vmem:[%s3807 + $0x80] sm:$0xff]
    %v3825 = vld [vmem:[%s3807 + $0x88] sm:$0xff]
    %v3826 = vld [vmem:[%s3807 + $0x90] sm:$0xff]
    %v3827 = vld [vmem:[%s3807 + $0x98] sm:$0xff]
    %v3828 = vld [vmem:[%s3807 + $0xa0] sm:$0xff]
    %v3829 = vld [vmem:[%s3807 + $0xa8] sm:$0xff]
    %v3830 = vld [vmem:[%s3807 + $0xb0] sm:$0xff]
    %v3831 = vld [vmem:[%s3807 + $0xb8] sm:$0xff]
    %v3832 = vld [vmem:[%s3807 + $0xc0] sm:$0xff]
    %v3833 = vld [vmem:[%s3807 + $0xc8] sm:$0xff]
    %v3834 = vld [vmem:[%s3807 + $0xd0] sm:$0xff]
    %v3835 = vld [vmem:[%s3807 + $0xd8] sm:$0xff]
    %v3836 = vld [vmem:[%s3807 + $0xe0] sm:$0xff]
    %v3837 = vld [vmem:[%s3807 + $0xe8] sm:$0xff]
    %v3838 = vld [vmem:[%s3807 + $0xf0] sm:$0xff]
    %v3839 = vld [vmem:[%s3807 + $0xf8] sm:$0xff]
    %3840 = vxpose.xlu0.b32.start [1/16] %v3808, 128
    %3841 = vxpose.xlu0.b32.cont [2/16] %v3810, 128
    %3842 = vxpose.xlu0.b32.cont [3/16] %v3812, 128
    %3843 = vxpose.xlu0.b32.cont [4/16] %v3814, 128
    %3844 = vxpose.xlu0.b32.cont [5/16] %v3816, 128
    %3845 = vxpose.xlu0.b32.cont [6/16] %v3818, 128
    %3846 = vxpose.xlu0.b32.cont [7/16] %v3820, 128
    %3847 = vxpose.xlu0.b32.cont [8/16] %v3822, 128
    %3848 = vxpose.xlu0.b32.cont [9/16] %v3824, 128
    %3849 = vxpose.xlu0.b32.cont [10/16] %v3826, 128
    %3850 = vxpose.xlu0.b32.cont [11/16] %v3828, 128
    %3851 = vxpose.xlu0.b32.cont [12/16] %v3830, 128
    %3852 = vxpose.xlu0.b32.cont [13/16] %v3832, 128
    %3853 = vxpose.xlu0.b32.cont [14/16] %v3834, 128
    %3854 = vxpose.xlu0.b32.cont [15/16] %v3836, 128
    %3855 = vxpose.xlu0.b32.end [16/16] %v3838, 128
    %v3856 = vpop.trf.xlu0
    %v3857 = vpop.trf.xlu0
    %v3858 = vpop.trf.xlu0
    %v3859 = vpop.trf.xlu0
    %v3860 = vpop.trf.xlu0
    %v3861 = vpop.trf.xlu0
    %v3862 = vpop.trf.xlu0
    %v3863 = vpop.trf.xlu0
    %v3864 = vpop.trf.xlu0
    %v3865 = vpop.trf.xlu0
    %v3866 = vpop.trf.xlu0
    %v3867 = vpop.trf.xlu0
    %v3868 = vpop.trf.xlu0
    %v3869 = vpop.trf.xlu0
    %v3870 = vpop.trf.xlu0
    %v3871 = vpop.trf.xlu0
    %3872 = vxpose.xlu0.b32.start [1/16] %v3809, 128
    %3873 = vxpose.xlu0.b32.cont [2/16] %v3811, 128
    %3874 = vxpose.xlu0.b32.cont [3/16] %v3813, 128
    %3875 = vxpose.xlu0.b32.cont [4/16] %v3815, 128
    %3876 = vxpose.xlu0.b32.cont [5/16] %v3817, 128
    %3877 = vxpose.xlu0.b32.cont [6/16] %v3819, 128
    %3878 = vxpose.xlu0.b32.cont [7/16] %v3821, 128
    %3879 = vxpose.xlu0.b32.cont [8/16] %v3823, 128
    %3880 = vxpose.xlu0.b32.cont [9/16] %v3825, 128
    %3881 = vxpose.xlu0.b32.cont [10/16] %v3827, 128
    %3882 = vxpose.xlu0.b32.cont [11/16] %v3829, 128
    %3883 = vxpose.xlu0.b32.cont [12/16] %v3831, 128
    %3884 = vxpose.xlu0.b32.cont [13/16] %v3833, 128
    %3885 = vxpose.xlu0.b32.cont [14/16] %v3835, 128
    %3886 = vxpose.xlu0.b32.cont [15/16] %v3837, 128
    %3887 = vxpose.xlu0.b32.end [16/16] %v3839, 128
    %v3888 = vpop.trf.xlu0
    %v3889 = vpop.trf.xlu0
    %v3890 = vpop.trf.xlu0
    %v3891 = vpop.trf.xlu0
    %v3892 = vpop.trf.xlu0
    %v3893 = vpop.trf.xlu0
    %v3894 = vpop.trf.xlu0
    %v3895 = vpop.trf.xlu0
    %v3896 = vpop.trf.xlu0
    %v3897 = vpop.trf.xlu0
    %v3898 = vpop.trf.xlu0
    %v3899 = vpop.trf.xlu0
    %v3900 = vpop.trf.xlu0
    %v3901 = vpop.trf.xlu0
    %v3902 = vpop.trf.xlu0
    %v3903 = vpop.trf.xlu0
    %v3904 = vlaneseq
    %v3905 = vshrl.u32 %v3904, 7
    %v3906 = vsub.s32 1, %v3905
    %v3907 = vrot.slane %v1492, %v3906
    %v3908 = vadd.f32 %v3856, %v3907
    %v3909 = vadd.f32 %v3857, %v3907
    %v3910 = vadd.f32 %v3858, %v3907
    %v3911 = vadd.f32 %v3859, %v3907
    %v3912 = vadd.f32 %v3860, %v3907
    %v3913 = vadd.f32 %v3861, %v3907
    %v3914 = vadd.f32 %v3862, %v3907
    %v3915 = vadd.f32 %v3863, %v3907
    %v3916 = vadd.f32 %v3864, %v3907
    %v3917 = vadd.f32 %v3865, %v3907
    %v3918 = vadd.f32 %v3866, %v3907
    %v3919 = vadd.f32 %v3867, %v3907
    %v3920 = vadd.f32 %v3868, %v3907
    %v3921 = vadd.f32 %v3869, %v3907
    %v3922 = vadd.f32 %v3870, %v3907
    %v3923 = vadd.f32 %v3871, %v3907
    %v3924 = vadd.f32 %v3888, %v3907
    %v3925 = vadd.f32 %v3889, %v3907
    %v3926 = vadd.f32 %v3890, %v3907
    %v3927 = vadd.f32 %v3891, %v3907
    %v3928 = vadd.f32 %v3892, %v3907
    %v3929 = vadd.f32 %v3893, %v3907
    %v3930 = vadd.f32 %v3894, %v3907
    %v3931 = vadd.f32 %v3895, %v3907
    %v3932 = vadd.f32 %v3896, %v3907
    %v3933 = vadd.f32 %v3897, %v3907
    %v3934 = vadd.f32 %v3898, %v3907
    %v3935 = vadd.f32 %v3899, %v3907
    %v3936 = vadd.f32 %v3900, %v3907
    %v3937 = vadd.f32 %v3901, %v3907
    %v3938 = vadd.f32 %v3902, %v3907
    %v3939 = vadd.f32 %v3903, %v3907
    %v3940 = vpack.c.bf16 %v3909, %v3908
    %v3941 = vpack.c.bf16 %v3911, %v3910
    %v3942 = vpack.c.bf16 %v3913, %v3912
    %v3943 = vpack.c.bf16 %v3915, %v3914
    %v3944 = vpack.c.bf16 %v3917, %v3916
    %v3945 = vpack.c.bf16 %v3919, %v3918
    %v3946 = vpack.c.bf16 %v3921, %v3920
    %v3947 = vpack.c.bf16 %v3923, %v3922
    %v3948 = vpack.c.bf16 %v3925, %v3924
    %v3949 = vpack.c.bf16 %v3927, %v3926
    %v3950 = vpack.c.bf16 %v3929, %v3928
    %v3951 = vpack.c.bf16 %v3931, %v3930
    %v3952 = vpack.c.bf16 %v3933, %v3932
    %v3953 = vpack.c.bf16 %v3935, %v3934
    %v3954 = vpack.c.bf16 %v3937, %v3936
    %v3955 = vpack.c.bf16 %v3939, %v3938
    %s3956 = scalar_lea.vmem [#allocation2], 144
    %3957 = vst [vmem:[%s3956 + $0x8] sm:$0xff] %v3940
    %3958 = vst [vmem:[%s3956 + $0x10] sm:$0xff] %v3941
    %3959 = vst [vmem:[%s3956 + $0x18] sm:$0xff] %v3942
    %3960 = vst [vmem:[%s3956 + $0x20] sm:$0xff] %v3943
    %3961 = vst [vmem:[%s3956 + $0x28] sm:$0xff] %v3944
    %3962 = vst [vmem:[%s3956 + $0x30] sm:$0xff] %v3945
    %3963 = vst [vmem:[%s3956 + $0x38] sm:$0xff] %v3946
    %3964 = vst [vmem:[%s3956 + $0x40] sm:$0xff] %v3947
    %3965 = vst [vmem:[%s3956 + $0x48] sm:$0xff] %v3948
    %3966 = vst [vmem:[%s3956 + $0x50] sm:$0xff] %v3949
    %3967 = vst [vmem:[%s3956 + $0x58] sm:$0xff] %v3950
    %3968 = vst [vmem:[%s3956 + $0x60] sm:$0xff] %v3951
    %3969 = vst [vmem:[%s3956 + $0x68] sm:$0xff] %v3952
    %3970 = vst [vmem:[%s3956 + $0x70] sm:$0xff] %v3953
    %3971 = vst [vmem:[%s3956 + $0x78] sm:$0xff] %v3954
    %3972 = vst [vmem:[%s3956 + $0x80] sm:$0xff] %v3955
    %v3973 = vld [vmem:[%s3956] sm:$0xff]
    %v3974 = vld [vmem:[%s3956 + $0x8] sm:$0xff]
    %v3975 = vld [vmem:[%s3956 + $0x10] sm:$0xff]
    %v3976 = vld [vmem:[%s3956 + $0x18] sm:$0xff]
    %v3977 = vld [vmem:[%s3956 + $0x20] sm:$0xff]
    %v3978 = vld [vmem:[%s3956 + $0x28] sm:$0xff]
    %v3979 = vld [vmem:[%s3956 + $0x30] sm:$0xff]
    %v3980 = vld [vmem:[%s3956 + $0x38] sm:$0xff]
    %v3981 = vld [vmem:[%s3956 + $0x40] sm:$0xff]
    %v3982 = vld [vmem:[%s3956 + $0x48] sm:$0xff]
    %v3983 = vld [vmem:[%s3956 + $0x50] sm:$0xff]
    %v3984 = vld [vmem:[%s3956 + $0x58] sm:$0xff]
    %v3985 = vld [vmem:[%s3956 + $0x60] sm:$0xff]
    %v3986 = vld [vmem:[%s3956 + $0x68] sm:$0xff]
    %v3987 = vld [vmem:[%s3956 + $0x70] sm:$0xff]
    %v3988 = vld [vmem:[%s3956 + $0x78] sm:$0xff]
    %v3989 = vld [vmem:[%s3956 + $0x80] sm:$0xff]
    %v3990 = vld [vmem:[%s3956 + $0x88] sm:$0xff]
    %3991 = vmatprep.subr.bf16.mxu0 %v1760
    %3992 = vmatpush1.bf16.msra.mxu0 %v1759
    %3993 = vmatprep.subr.bf16.mxu0 %v1763
    %3994 = vmatpush1.bf16.msra.mxu0 %v1762
    %3995 = vmatprep.subr.bf16.mxu0 %v1766
    %3996 = vmatpush1.bf16.msra.mxu0 %v1765
    %3997 = vmatprep.subr.bf16.mxu0 %v1769
    %3998 = vmatpush1.bf16.msra.mxu0 %v1768
    %3999 = vmatprep.subr.bf16.mxu0 %v1772
    %4000 = vmatpush1.bf16.msra.mxu0 %v1771
    %4001 = vmatprep.subr.bf16.mxu0 %v1775
    %4002 = vmatpush1.bf16.msra.mxu0 %v1774
    %4003 = vmatprep.subr.bf16.mxu0 %v1778
    %4004 = vmatpush1.bf16.msra.mxu0 %v1777
    %4005 = vmatprep.subr.bf16.mxu0 %v1781
    %4006 = vmatpush1.bf16.msra.mxu0 %v1780
    %4007 = vmatprep.subr.bf16.mxu0 0
    %4008 = vmatpush1.bf16.msra.mxu0 0
    %4009 = vmatprep.subr.bf16.mxu0 0
    %4010 = vmatpush1.bf16.msra.mxu0 0
    %4011 = vmatprep.subr.bf16.mxu0 0
    %4012 = vmatpush1.bf16.msra.mxu0 0
    %4013 = vmatprep.subr.bf16.mxu0 0
    %4014 = vmatpush1.bf16.msra.mxu0 0
    %4015 = vmatprep.subr.bf16.mxu0 0
    %4016 = vmatpush1.bf16.msra.mxu0 0
    %4017 = vmatprep.subr.bf16.mxu0 0
    %4018 = vmatpush1.bf16.msra.mxu0 0
    %4019 = vmatprep.subr.bf16.mxu0 0
    %4020 = vmatpush1.bf16.msra.mxu0 0
    %4021 = vmatprep.subr.bf16.mxu0 0
    %4022 = vmatpush1.bf16.msra.mxu0 0
    %4023 = vmatprep.mubr.bf16.mxu0 0
    %4024 = vmatmul.mubr.bf16.gmra.mrb[0].mxu0 %v3973
    %v4025 = vpop.f32.mrb[0].mxu0
    %v4026 = vadd.f32 0.0, %v4025
    %v4027 = vpop.f32.mrb[0].mxu0
    %v4028 = vadd.f32 0.0, %v4027
    %v4029 = vpop.f32.mrb[0].mxu0
    %v4030 = vadd.f32 0.0, %v4029
    %v4031 = vpop.f32.mrb[0].mxu0
    %v4032 = vadd.f32 0.0, %v4031
    %4033 = vmatprep.mubr.bf16.mxu0 0
    %4034 = vmatmul.mubr.bf16.gmra.mrb[0].mxu0 %v3974
    %v4035 = vpop.f32.mrb[0].mxu0
    %v4036 = vadd.f32 0.0, %v4035
    %v4037 = vpop.f32.mrb[0].mxu0
    %v4038 = vadd.f32 0.0, %v4037
    %v4039 = vpop.f32.mrb[0].mxu0
    %v4040 = vadd.f32 0.0, %v4039
    %v4041 = vpop.f32.mrb[0].mxu0
    %v4042 = vadd.f32 0.0, %v4041
    %4043 = vmatprep.mubr.bf16.mxu0 0
    %4044 = vmatmul.mubr.bf16.gmra.mrb[0].mxu0 %v3975
    %v4045 = vpop.f32.mrb[0].mxu0
    %v4046 = vadd.f32 0.0, %v4045
    %v4047 = vpop.f32.mrb[0].mxu0
    %v4048 = vadd.f32 0.0, %v4047
    %v4049 = vpop.f32.mrb[0].mxu0
    %v4050 = vadd.f32 0.0, %v4049
    %v4051 = vpop.f32.mrb[0].mxu0
    %v4052 = vadd.f32 0.0, %v4051
    %4053 = vmatprep.mubr.bf16.mxu0 0
    %4054 = vmatmul.mubr.bf16.gmra.mrb[0].mxu0 %v3976
    %v4055 = vpop.f32.mrb[0].mxu0
    %v4056 = vadd.f32 0.0, %v4055
    %v4057 = vpop.f32.mrb[0].mxu0
    %v4058 = vadd.f32 0.0, %v4057
    %v4059 = vpop.f32.mrb[0].mxu0
    %v4060 = vadd.f32 0.0, %v4059
    %v4061 = vpop.f32.mrb[0].mxu0
    %v4062 = vadd.f32 0.0, %v4061
    %4063 = vmatprep.mubr.bf16.mxu0 0
    %4064 = vmatmul.mubr.bf16.gmra.mrb[0].mxu0 %v3977
    %v4065 = vpop.f32.mrb[0].mxu0
    %v4066 = vadd.f32 0.0, %v4065
    %v4067 = vpop.f32.mrb[0].mxu0
    %v4068 = vadd.f32 0.0, %v4067
    %v4069 = vpop.f32.mrb[0].mxu0
    %v4070 = vadd.f32 0.0, %v4069
    %v4071 = vpop.f32.mrb[0].mxu0
    %v4072 = vadd.f32 0.0, %v4071
    %4073 = vmatprep.mubr.bf16.mxu0 0
    %4074 = vmatmul.mubr.bf16.gmra.mrb[0].mxu0 %v3978
    %v4075 = vpop.f32.mrb[0].mxu0
    %v4076 = vadd.f32 0.0, %v4075
    %v4077 = vpop.f32.mrb[0].mxu0
    %v4078 = vadd.f32 0.0, %v4077
    %v4079 = vpop.f32.mrb[0].mxu0
    %v4080 = vadd.f32 0.0, %v4079
    %v4081 = vpop.f32.mrb[0].mxu0
    %v4082 = vadd.f32 0.0, %v4081
    %4083 = vmatprep.mubr.bf16.mxu0 0
    %4084 = vmatmul.mubr.bf16.gmra.mrb[0].mxu0 %v3979
    %v4085 = vpop.f32.mrb[0].mxu0
    %v4086 = vadd.f32 0.0, %v4085
    %v4087 = vpop.f32.mrb[0].mxu0
    %v4088 = vadd.f32 0.0, %v4087
    %v4089 = vpop.f32.mrb[0].mxu0
    %v4090 = vadd.f32 0.0, %v4089
    %v4091 = vpop.f32.mrb[0].mxu0
    %v4092 = vadd.f32 0.0, %v4091
    %4093 = vmatprep.mubr.bf16.mxu0 0
    %4094 = vmatmul.mubr.bf16.gmra.mrb[0].mxu0 %v3980
    %v4095 = vpop.f32.mrb[0].mxu0
    %v4096 = vadd.f32 0.0, %v4095
    %v4097 = vpop.f32.mrb[0].mxu0
    %v4098 = vadd.f32 0.0, %v4097
    %v4099 = vpop.f32.mrb[0].mxu0
    %v4100 = vadd.f32 0.0, %v4099
    %v4101 = vpop.f32.mrb[0].mxu0
    %v4102 = vadd.f32 0.0, %v4101
    %4103 = vmatprep.mubr.bf16.mxu0 0
    %4104 = vmatmul.mubr.bf16.gmra.mrb[0].mxu0 %v3981
    %v4105 = vpop.f32.mrb[0].mxu0
    %v4106 = vadd.f32 0.0, %v4105
    %v4107 = vpop.f32.mrb[0].mxu0
    %v4108 = vadd.f32 0.0, %v4107
    %v4109 = vpop.f32.mrb[0].mxu0
    %v4110 = vadd.f32 0.0, %v4109
    %v4111 = vpop.f32.mrb[0].mxu0
    %v4112 = vadd.f32 0.0, %v4111
    %4113 = vmatprep.mubr.bf16.mxu0 0
    %4114 = vmatmul.mubr.bf16.gmra.mrb[0].mxu0 %v3982
    %v4115 = vpop.f32.mrb[0].mxu0
    %v4116 = vadd.f32 0.0, %v4115
    %v4117 = vpop.f32.mrb[0].mxu0
    %v4118 = vadd.f32 0.0, %v4117
    %v4119 = vpop.f32.mrb[0].mxu0
    %v4120 = vadd.f32 0.0, %v4119
    %v4121 = vpop.f32.mrb[0].mxu0
    %v4122 = vadd.f32 0.0, %v4121
    %4123 = vmatprep.mubr.bf16.mxu0 0
    %4124 = vmatmul.mubr.bf16.gmra.mrb[0].mxu0 %v3983
    %v4125 = vpop.f32.mrb[0].mxu0
    %v4126 = vadd.f32 0.0, %v4125
    %v4127 = vpop.f32.mrb[0].mxu0
    %v4128 = vadd.f32 0.0, %v4127
    %v4129 = vpop.f32.mrb[0].mxu0
    %v4130 = vadd.f32 0.0, %v4129
    %v4131 = vpop.f32.mrb[0].mxu0
    %v4132 = vadd.f32 0.0, %v4131
    %4133 = vmatprep.mubr.bf16.mxu0 0
    %4134 = vmatmul.mubr.bf16.gmra.mrb[0].mxu0 %v3984
    %v4135 = vpop.f32.mrb[0].mxu0
    %v4136 = vadd.f32 0.0, %v4135
    %v4137 = vpop.f32.mrb[0].mxu0
    %v4138 = vadd.f32 0.0, %v4137
    %v4139 = vpop.f32.mrb[0].mxu0
    %v4140 = vadd.f32 0.0, %v4139
    %v4141 = vpop.f32.mrb[0].mxu0
    %v4142 = vadd.f32 0.0, %v4141
    %4143 = vmatprep.mubr.bf16.mxu0 0
    %4144 = vmatmul.mubr.bf16.gmra.mrb[0].mxu0 %v3985
    %v4145 = vpop.f32.mrb[0].mxu0
    %v4146 = vadd.f32 0.0, %v4145
    %v4147 = vpop.f32.mrb[0].mxu0
    %v4148 = vadd.f32 0.0, %v4147
    %v4149 = vpop.f32.mrb[0].mxu0
    %v4150 = vadd.f32 0.0, %v4149
    %v4151 = vpop.f32.mrb[0].mxu0
    %v4152 = vadd.f32 0.0, %v4151
    %4153 = vmatprep.mubr.bf16.mxu0 0
    %4154 = vmatmul.mubr.bf16.gmra.mrb[0].mxu0 %v3986
    %v4155 = vpop.f32.mrb[0].mxu0
    %v4156 = vadd.f32 0.0, %v4155
    %v4157 = vpop.f32.mrb[0].mxu0
    %v4158 = vadd.f32 0.0, %v4157
    %v4159 = vpop.f32.mrb[0].mxu0
    %v4160 = vadd.f32 0.0, %v4159
    %v4161 = vpop.f32.mrb[0].mxu0
    %v4162 = vadd.f32 0.0, %v4161
    %4163 = vmatprep.mubr.bf16.mxu0 0
    %4164 = vmatmul.mubr.bf16.gmra.mrb[0].mxu0 %v3987
    %v4165 = vpop.f32.mrb[0].mxu0
    %v4166 = vadd.f32 0.0, %v4165
    %v4167 = vpop.f32.mrb[0].mxu0
    %v4168 = vadd.f32 0.0, %v4167
    %v4169 = vpop.f32.mrb[0].mxu0
    %v4170 = vadd.f32 0.0, %v4169
    %v4171 = vpop.f32.mrb[0].mxu0
    %v4172 = vadd.f32 0.0, %v4171
    %4173 = vmatprep.mubr.bf16.mxu0 0
    %4174 = vmatmul.mubr.bf16.gmra.mrb[0].mxu0 %v3988
    %v4175 = vpop.f32.mrb[0].mxu0
    %v4176 = vadd.f32 0.0, %v4175
    %v4177 = vpop.f32.mrb[0].mxu0
    %v4178 = vadd.f32 0.0, %v4177
    %v4179 = vpop.f32.mrb[0].mxu0
    %v4180 = vadd.f32 0.0, %v4179
    %v4181 = vpop.f32.mrb[0].mxu0
    %v4182 = vadd.f32 0.0, %v4181
    %4183 = vdwg.mxu0
    %4184 = vmatprep.subr.bf16.mxu0 0
    %4185 = vmatpush1.bf16.msra.mxu0 %v1761
    %4186 = vmatprep.subr.bf16.mxu0 0
    %4187 = vmatpush1.bf16.msra.mxu0 %v1764
    %4188 = vmatprep.subr.bf16.mxu0 0
    %4189 = vmatpush1.bf16.msra.mxu0 %v1767
    %4190 = vmatprep.subr.bf16.mxu0 0
    %4191 = vmatpush1.bf16.msra.mxu0 %v1770
    %4192 = vmatprep.subr.bf16.mxu0 0
    %4193 = vmatpush1.bf16.msra.mxu0 %v1773
    %4194 = vmatprep.subr.bf16.mxu0 0
    %4195 = vmatpush1.bf16.msra.mxu0 %v1776
    %4196 = vmatprep.subr.bf16.mxu0 0
    %4197 = vmatpush1.bf16.msra.mxu0 %v1779
    %4198 = vmatprep.subr.bf16.mxu0 0
    %4199 = vmatpush1.bf16.msra.mxu0 %v1782
    %4200 = vmatprep.subr.bf16.mxu0 0
    %4201 = vmatpush1.bf16.msra.mxu0 0
    %4202 = vmatprep.subr.bf16.mxu0 0
    %4203 = vmatpush1.bf16.msra.mxu0 0
    %4204 = vmatprep.subr.bf16.mxu0 0
    %4205 = vmatpush1.bf16.msra.mxu0 0
    %4206 = vmatprep.subr.bf16.mxu0 0
    %4207 = vmatpush1.bf16.msra.mxu0 0
    %4208 = vmatprep.subr.bf16.mxu0 0
    %4209 = vmatpush1.bf16.msra.mxu0 0
    %4210 = vmatprep.subr.bf16.mxu0 0
    %4211 = vmatpush1.bf16.msra.mxu0 0
    %4212 = vmatprep.subr.bf16.mxu0 0
    %4213 = vmatpush1.bf16.msra.mxu0 0
    %4214 = vmatprep.subr.bf16.mxu0 0
    %4215 = vmatpush1.bf16.msra.mxu0 0
    %4216 = vmatprep.mubr.bf16.mxu0 0
    %4217 = vmatmul.mubr.bf16.gmra.mrb[0].mxu0 %v3973
    %v4218 = vpop.f32.mrb[0].mxu0
    %v4219 = vadd.f32 0.0, %v4218
    %v4220 = vpop.f32.mrb[0].mxu0
    %v4221 = vpop.f32.mrb[0].mxu0
    %v4222 = vadd.f32 0.0, %v4221
    %v4223 = vpop.f32.mrb[0].mxu0
    %4224 = vmatprep.mubr.bf16.mxu0 0
    %4225 = vmatmul.mubr.bf16.gmra.mrb[0].mxu0 %v3974
    %v4226 = vpop.f32.mrb[0].mxu0
    %v4227 = vadd.f32 0.0, %v4226
    %v4228 = vpop.f32.mrb[0].mxu0
    %v4229 = vpop.f32.mrb[0].mxu0
    %v4230 = vadd.f32 0.0, %v4229
    %v4231 = vpop.f32.mrb[0].mxu0
    %4232 = vmatprep.mubr.bf16.mxu0 0
    %4233 = vmatmul.mubr.bf16.gmra.mrb[0].mxu0 %v3975
    %v4234 = vpop.f32.mrb[0].mxu0
    %v4235 = vadd.f32 0.0, %v4234
    %v4236 = vpop.f32.mrb[0].mxu0
    %v4237 = vpop.f32.mrb[0].mxu0
    %v4238 = vadd.f32 0.0, %v4237
    %v4239 = vpop.f32.mrb[0].mxu0
    %4240 = vmatprep.mubr.bf16.mxu0 0
    %4241 = vmatmul.mubr.bf16.gmra.mrb[0].mxu0 %v3976
    %v4242 = vpop.f32.mrb[0].mxu0
    %v4243 = vadd.f32 0.0, %v4242
    %v4244 = vpop.f32.mrb[0].mxu0
    %v4245 = vpop.f32.mrb[0].mxu0
    %v4246 = vadd.f32 0.0, %v4245
    %v4247 = vpop.f32.mrb[0].mxu0
    %4248 = vmatprep.mubr.bf16.mxu0 0
    %4249 = vmatmul.mubr.bf16.gmra.mrb[0].mxu0 %v3977
    %v4250 = vpop.f32.mrb[0].mxu0
    %v4251 = vadd.f32 0.0, %v4250
    %v4252 = vpop.f32.mrb[0].mxu0
    %v4253 = vpop.f32.mrb[0].mxu0
    %v4254 = vadd.f32 0.0, %v4253
    %v4255 = vpop.f32.mrb[0].mxu0
    %4256 = vmatprep.mubr.bf16.mxu0 0
    %4257 = vmatmul.mubr.bf16.gmra.mrb[0].mxu0 %v3978
    %v4258 = vpop.f32.mrb[0].mxu0
    %v4259 = vadd.f32 0.0, %v4258
    %v4260 = vpop.f32.mrb[0].mxu0
    %v4261 = vpop.f32.mrb[0].mxu0
    %v4262 = vadd.f32 0.0, %v4261
    %v4263 = vpop.f32.mrb[0].mxu0
    %4264 = vmatprep.mubr.bf16.mxu0 0
    %4265 = vmatmul.mubr.bf16.gmra.mrb[0].mxu0 %v3979
    %v4266 = vpop.f32.mrb[0].mxu0
    %v4267 = vadd.f32 0.0, %v4266
    %v4268 = vpop.f32.mrb[0].mxu0
    %v4269 = vpop.f32.mrb[0].mxu0
    %v4270 = vadd.f32 0.0, %v4269
    %v4271 = vpop.f32.mrb[0].mxu0
    %4272 = vmatprep.mubr.bf16.mxu0 0
    %4273 = vmatmul.mubr.bf16.gmra.mrb[0].mxu0 %v3980
    %v4274 = vpop.f32.mrb[0].mxu0
    %v4275 = vadd.f32 0.0, %v4274
    %v4276 = vpop.f32.mrb[0].mxu0
    %v4277 = vpop.f32.mrb[0].mxu0
    %v4278 = vadd.f32 0.0, %v4277
    %v4279 = vpop.f32.mrb[0].mxu0
    %4280 = vmatprep.mubr.bf16.mxu0 0
    %4281 = vmatmul.mubr.bf16.gmra.mrb[0].mxu0 %v3981
    %v4282 = vpop.f32.mrb[0].mxu0
    %v4283 = vadd.f32 0.0, %v4282
    %v4284 = vpop.f32.mrb[0].mxu0
    %v4285 = vpop.f32.mrb[0].mxu0
    %v4286 = vadd.f32 0.0, %v4285
    %v4287 = vpop.f32.mrb[0].mxu0
    %4288 = vmatprep.mubr.bf16.mxu0 0
    %4289 = vmatmul.mubr.bf16.gmra.mrb[0].mxu0 %v3982
    %v4290 = vpop.f32.mrb[0].mxu0
    %v4291 = vadd.f32 0.0, %v4290
    %v4292 = vpop.f32.mrb[0].mxu0
    %v4293 = vpop.f32.mrb[0].mxu0
    %v4294 = vadd.f32 0.0, %v4293
    %v4295 = vpop.f32.mrb[0].mxu0
    %4296 = vmatprep.mubr.bf16.mxu0 0
    %4297 = vmatmul.mubr.bf16.gmra.mrb[0].mxu0 %v3983
    %v4298 = vpop.f32.mrb[0].mxu0
    %v4299 = vadd.f32 0.0, %v4298
    %v4300 = vpop.f32.mrb[0].mxu0
    %v4301 = vpop.f32.mrb[0].mxu0
    %v4302 = vadd.f32 0.0, %v4301
    %v4303 = vpop.f32.mrb[0].mxu0
    %4304 = vmatprep.mubr.bf16.mxu0 0
    %4305 = vmatmul.mubr.bf16.gmra.mrb[0].mxu0 %v3984
    %v4306 = vpop.f32.mrb[0].mxu0
    %v4307 = vadd.f32 0.0, %v4306
    %v4308 = vpop.f32.mrb[0].mxu0
    %v4309 = vpop.f32.mrb[0].mxu0
    %v4310 = vadd.f32 0.0, %v4309
    %v4311 = vpop.f32.mrb[0].mxu0
    %4312 = vmatprep.mubr.bf16.mxu0 0
    %4313 = vmatmul.mubr.bf16.gmra.mrb[0].mxu0 %v3985
    %v4314 = vpop.f32.mrb[0].mxu0
    %v4315 = vadd.f32 0.0, %v4314
    %v4316 = vpop.f32.mrb[0].mxu0
    %v4317 = vpop.f32.mrb[0].mxu0
    %v4318 = vadd.f32 0.0, %v4317
    %v4319 = vpop.f32.mrb[0].mxu0
    %4320 = vmatprep.mubr.bf16.mxu0 0
    %4321 = vmatmul.mubr.bf16.gmra.mrb[0].mxu0 %v3986
    %v4322 = vpop.f32.mrb[0].mxu0
    %v4323 = vadd.f32 0.0, %v4322
    %v4324 = vpop.f32.mrb[0].mxu0
    %v4325 = vpop.f32.mrb[0].mxu0
    %v4326 = vadd.f32 0.0, %v4325
    %v4327 = vpop.f32.mrb[0].mxu0
    %4328 = vmatprep.mubr.bf16.mxu0 0
    %4329 = vmatmul.mubr.bf16.gmra.mrb[0].mxu0 %v3987
    %v4330 = vpop.f32.mrb[0].mxu0
    %v4331 = vadd.f32 0.0, %v4330
    %v4332 = vpop.f32.mrb[0].mxu0
    %v4333 = vpop.f32.mrb[0].mxu0
    %v4334 = vadd.f32 0.0, %v4333
    %v4335 = vpop.f32.mrb[0].mxu0
    %4336 = vmatprep.mubr.bf16.mxu0 0
    %4337 = vmatmul.mubr.bf16.gmra.mrb[0].mxu0 %v3988
    %v4338 = vpop.f32.mrb[0].mxu0
    %v4339 = vadd.f32 0.0, %v4338
    %v4340 = vpop.f32.mrb[0].mxu0
    %v4341 = vpop.f32.mrb[0].mxu0
    %v4342 = vadd.f32 0.0, %v4341
    %v4343 = vpop.f32.mrb[0].mxu0
    %4344 = vdwg.mxu0
    %4345 = vmatprep.subr.bf16.mxu0 %v2242
    %4346 = vmatpush1.bf16.msra.mxu0 %v2241
    %4347 = vmatprep.subr.bf16.mxu0 %v2245
    %4348 = vmatpush1.bf16.msra.mxu0 %v2244
    %4349 = vmatprep.subr.bf16.mxu0 %v2248
    %4350 = vmatpush1.bf16.msra.mxu0 %v2247
    %4351 = vmatprep.subr.bf16.mxu0 %v2251
    %4352 = vmatpush1.bf16.msra.mxu0 %v2250
    %4353 = vmatprep.subr.bf16.mxu0 %v2254
    %4354 = vmatpush1.bf16.msra.mxu0 %v2253
    %4355 = vmatprep.subr.bf16.mxu0 %v2257
    %4356 = vmatpush1.bf16.msra.mxu0 %v2256
    %4357 = vmatprep.subr.bf16.mxu0 %v2260
    %4358 = vmatpush1.bf16.msra.mxu0 %v2259
    %4359 = vmatprep.subr.bf16.mxu0 %v2263
    %4360 = vmatpush1.bf16.msra.mxu0 %v2262
    %4361 = vmatprep.subr.bf16.mxu0 0
    %4362 = vmatpush1.bf16.msra.mxu0 0
    %4363 = vmatprep.subr.bf16.mxu0 0
    %4364 = vmatpush1.bf16.msra.mxu0 0
    %4365 = vmatprep.subr.bf16.mxu0 0
    %4366 = vmatpush1.bf16.msra.mxu0 0
    %4367 = vmatprep.subr.bf16.mxu0 0
    %4368 = vmatpush1.bf16.msra.mxu0 0
    %4369 = vmatprep.subr.bf16.mxu0 0
    %4370 = vmatpush1.bf16.msra.mxu0 0
    %4371 = vmatprep.subr.bf16.mxu0 0
    %4372 = vmatpush1.bf16.msra.mxu0 0
    %4373 = vmatprep.subr.bf16.mxu0 0
    %4374 = vmatpush1.bf16.msra.mxu0 0
    %4375 = vmatprep.subr.bf16.mxu0 0
    %4376 = vmatpush1.bf16.msra.mxu0 0
    %4377 = vmatprep.mubr.bf16.mxu0 0
    %4378 = vmatmul.mubr.bf16.gmra.mrb[0].mxu0 %v3940
    %v4379 = vpop.f32.mrb[0].mxu0
    %v4380 = vadd.f32 %v4026, %v4379
    %v4381 = vpop.f32.mrb[0].mxu0
    %v4382 = vadd.f32 %v4028, %v4381
    %v4383 = vpop.f32.mrb[0].mxu0
    %v4384 = vadd.f32 %v4030, %v4383
    %v4385 = vpop.f32.mrb[0].mxu0
    %v4386 = vadd.f32 %v4032, %v4385
    %4387 = vmatprep.mubr.bf16.mxu0 0
    %4388 = vmatmul.mubr.bf16.gmra.mrb[0].mxu0 %v3941
    %v4389 = vpop.f32.mrb[0].mxu0
    %v4390 = vadd.f32 %v4036, %v4389
    %v4391 = vpop.f32.mrb[0].mxu0
    %v4392 = vadd.f32 %v4038, %v4391
    %v4393 = vpop.f32.mrb[0].mxu0
    %v4394 = vadd.f32 %v4040, %v4393
    %v4395 = vpop.f32.mrb[0].mxu0
    %v4396 = vadd.f32 %v4042, %v4395
    %4397 = vmatprep.mubr.bf16.mxu0 0
    %4398 = vmatmul.mubr.bf16.gmra.mrb[0].mxu0 %v3942
    %v4399 = vpop.f32.mrb[0].mxu0
    %v4400 = vadd.f32 %v4046, %v4399
    %v4401 = vpop.f32.mrb[0].mxu0
    %v4402 = vadd.f32 %v4048, %v4401
    %v4403 = vpop.f32.mrb[0].mxu0
    %v4404 = vadd.f32 %v4050, %v4403
    %v4405 = vpop.f32.mrb[0].mxu0
    %v4406 = vadd.f32 %v4052, %v4405
    %4407 = vmatprep.mubr.bf16.mxu0 0
    %4408 = vmatmul.mubr.bf16.gmra.mrb[0].mxu0 %v3943
    %v4409 = vpop.f32.mrb[0].mxu0
    %v4410 = vadd.f32 %v4056, %v4409
    %v4411 = vpop.f32.mrb[0].mxu0
    %v4412 = vadd.f32 %v4058, %v4411
    %v4413 = vpop.f32.mrb[0].mxu0
    %v4414 = vadd.f32 %v4060, %v4413
    %v4415 = vpop.f32.mrb[0].mxu0
    %v4416 = vadd.f32 %v4062, %v4415
    %4417 = vmatprep.mubr.bf16.mxu0 0
    %4418 = vmatmul.mubr.bf16.gmra.mrb[0].mxu0 %v3944
    %v4419 = vpop.f32.mrb[0].mxu0
    %v4420 = vadd.f32 %v4066, %v4419
    %v4421 = vpop.f32.mrb[0].mxu0
    %v4422 = vadd.f32 %v4068, %v4421
    %v4423 = vpop.f32.mrb[0].mxu0
    %v4424 = vadd.f32 %v4070, %v4423
    %v4425 = vpop.f32.mrb[0].mxu0
    %v4426 = vadd.f32 %v4072, %v4425
    %4427 = vmatprep.mubr.bf16.mxu0 0
    %4428 = vmatmul.mubr.bf16.gmra.mrb[0].mxu0 %v3945
    %v4429 = vpop.f32.mrb[0].mxu0
    %v4430 = vadd.f32 %v4076, %v4429
    %v4431 = vpop.f32.mrb[0].mxu0
    %v4432 = vadd.f32 %v4078, %v4431
    %v4433 = vpop.f32.mrb[0].mxu0
    %v4434 = vadd.f32 %v4080, %v4433
    %v4435 = vpop.f32.mrb[0].mxu0
    %v4436 = vadd.f32 %v4082, %v4435
    %4437 = vmatprep.mubr.bf16.mxu0 0
    %4438 = vmatmul.mubr.bf16.gmra.mrb[0].mxu0 %v3946
    %v4439 = vpop.f32.mrb[0].mxu0
    %v4440 = vadd.f32 %v4086, %v4439
    %v4441 = vpop.f32.mrb[0].mxu0
    %v4442 = vadd.f32 %v4088, %v4441
    %v4443 = vpop.f32.mrb[0].mxu0
    %v4444 = vadd.f32 %v4090, %v4443
    %v4445 = vpop.f32.mrb[0].mxu0
    %v4446 = vadd.f32 %v4092, %v4445
    %4447 = vmatprep.mubr.bf16.mxu0 0
    %4448 = vmatmul.mubr.bf16.gmra.mrb[0].mxu0 %v3947
    %v4449 = vpop.f32.mrb[0].mxu0
    %v4450 = vadd.f32 %v4096, %v4449
    %v4451 = vpop.f32.mrb[0].mxu0
    %v4452 = vadd.f32 %v4098, %v4451
    %v4453 = vpop.f32.mrb[0].mxu0
    %v4454 = vadd.f32 %v4100, %v4453
    %v4455 = vpop.f32.mrb[0].mxu0
    %v4456 = vadd.f32 %v4102, %v4455
    %4457 = vmatprep.mubr.bf16.mxu0 0
    %4458 = vmatmul.mubr.bf16.gmra.mrb[0].mxu0 %v3948
    %v4459 = vpop.f32.mrb[0].mxu0
    %v4460 = vadd.f32 %v4106, %v4459
    %v4461 = vpop.f32.mrb[0].mxu0
    %v4462 = vadd.f32 %v4108, %v4461
    %v4463 = vpop.f32.mrb[0].mxu0
    %v4464 = vadd.f32 %v4110, %v4463
    %v4465 = vpop.f32.mrb[0].mxu0
    %v4466 = vadd.f32 %v4112, %v4465
    %4467 = vmatprep.mubr.bf16.mxu0 0
    %4468 = vmatmul.mubr.bf16.gmra.mrb[0].mxu0 %v3949
    %v4469 = vpop.f32.mrb[0].mxu0
    %v4470 = vadd.f32 %v4116, %v4469
    %v4471 = vpop.f32.mrb[0].mxu0
    %v4472 = vadd.f32 %v4118, %v4471
    %v4473 = vpop.f32.mrb[0].mxu0
    %v4474 = vadd.f32 %v4120, %v4473
    %v4475 = vpop.f32.mrb[0].mxu0
    %v4476 = vadd.f32 %v4122, %v4475
    %4477 = vmatprep.mubr.bf16.mxu0 0
    %4478 = vmatmul.mubr.bf16.gmra.mrb[0].mxu0 %v3950
    %v4479 = vpop.f32.mrb[0].mxu0
    %v4480 = vadd.f32 %v4126, %v4479
    %v4481 = vpop.f32.mrb[0].mxu0
    %v4482 = vadd.f32 %v4128, %v4481
    %v4483 = vpop.f32.mrb[0].mxu0
    %v4484 = vadd.f32 %v4130, %v4483
    %v4485 = vpop.f32.mrb[0].mxu0
    %v4486 = vadd.f32 %v4132, %v4485
    %4487 = vmatprep.mubr.bf16.mxu0 0
    %4488 = vmatmul.mubr.bf16.gmra.mrb[0].mxu0 %v3951
    %v4489 = vpop.f32.mrb[0].mxu0
    %v4490 = vadd.f32 %v4136, %v4489
    %v4491 = vpop.f32.mrb[0].mxu0
    %v4492 = vadd.f32 %v4138, %v4491
    %v4493 = vpop.f32.mrb[0].mxu0
    %v4494 = vadd.f32 %v4140, %v4493
    %v4495 = vpop.f32.mrb[0].mxu0
    %v4496 = vadd.f32 %v4142, %v4495
    %4497 = vmatprep.mubr.bf16.mxu0 0
    %4498 = vmatmul.mubr.bf16.gmra.mrb[0].mxu0 %v3952
    %v4499 = vpop.f32.mrb[0].mxu0
    %v4500 = vadd.f32 %v4146, %v4499
    %v4501 = vpop.f32.mrb[0].mxu0
    %v4502 = vadd.f32 %v4148, %v4501
    %v4503 = vpop.f32.mrb[0].mxu0
    %v4504 = vadd.f32 %v4150, %v4503
    %v4505 = vpop.f32.mrb[0].mxu0
    %v4506 = vadd.f32 %v4152, %v4505
    %4507 = vmatprep.mubr.bf16.mxu0 0
    %4508 = vmatmul.mubr.bf16.gmra.mrb[0].mxu0 %v3953
    %v4509 = vpop.f32.mrb[0].mxu0
    %v4510 = vadd.f32 %v4156, %v4509
    %v4511 = vpop.f32.mrb[0].mxu0
    %v4512 = vadd.f32 %v4158, %v4511
    %v4513 = vpop.f32.mrb[0].mxu0
    %v4514 = vadd.f32 %v4160, %v4513
    %v4515 = vpop.f32.mrb[0].mxu0
    %v4516 = vadd.f32 %v4162, %v4515
    %4517 = vmatprep.mubr.bf16.mxu0 0
    %4518 = vmatmul.mubr.bf16.gmra.mrb[0].mxu0 %v3954
    %v4519 = vpop.f32.mrb[0].mxu0
    %v4520 = vadd.f32 %v4166, %v4519
    %v4521 = vpop.f32.mrb[0].mxu0
    %v4522 = vadd.f32 %v4168, %v4521
    %v4523 = vpop.f32.mrb[0].mxu0
    %v4524 = vadd.f32 %v4170, %v4523
    %v4525 = vpop.f32.mrb[0].mxu0
    %v4526 = vadd.f32 %v4172, %v4525
    %4527 = vmatprep.mubr.bf16.mxu0 0
    %4528 = vmatmul.mubr.bf16.gmra.mrb[0].mxu0 %v3955
    %v4529 = vpop.f32.mrb[0].mxu0
    %v4530 = vadd.f32 %v4176, %v4529
    %v4531 = vpop.f32.mrb[0].mxu0
    %v4532 = vadd.f32 %v4178, %v4531
    %v4533 = vpop.f32.mrb[0].mxu0
    %v4534 = vadd.f32 %v4180, %v4533
    %v4535 = vpop.f32.mrb[0].mxu0
    %v4536 = vadd.f32 %v4182, %v4535
    %4537 = vdwg.mxu0
    %4538 = vmatprep.subr.bf16.mxu0 0
    %4539 = vmatpush1.bf16.msra.mxu0 %v2243
    %4540 = vmatprep.subr.bf16.mxu0 0
    %4541 = vmatpush1.bf16.msra.mxu0 %v2246
    %4542 = vmatprep.subr.bf16.mxu0 0
    %4543 = vmatpush1.bf16.msra.mxu0 %v2249
    %4544 = vmatprep.subr.bf16.mxu0 0
    %4545 = vmatpush1.bf16.msra.mxu0 %v2252
    %4546 = vmatprep.subr.bf16.mxu0 0
    %4547 = vmatpush1.bf16.msra.mxu0 %v2255
    %4548 = vmatprep.subr.bf16.mxu0 0
    %4549 = vmatpush1.bf16.msra.mxu0 %v2258
    %4550 = vmatprep.subr.bf16.mxu0 0
    %4551 = vmatpush1.bf16.msra.mxu0 %v2261
    %4552 = vmatprep.subr.bf16.mxu0 0
    %4553 = vmatpush1.bf16.msra.mxu0 %v2264
    %4554 = vmatprep.subr.bf16.mxu0 0
    %4555 = vmatpush1.bf16.msra.mxu0 0
    %4556 = vmatprep.subr.bf16.mxu0 0
    %4557 = vmatpush1.bf16.msra.mxu0 0
    %4558 = vmatprep.subr.bf16.mxu0 0
    %4559 = vmatpush1.bf16.msra.mxu0 0
    %4560 = vmatprep.subr.bf16.mxu0 0
    %4561 = vmatpush1.bf16.msra.mxu0 0
    %4562 = vmatprep.subr.bf16.mxu0 0
    %4563 = vmatpush1.bf16.msra.mxu0 0
    %4564 = vmatprep.subr.bf16.mxu0 0
    %4565 = vmatpush1.bf16.msra.mxu0 0
    %4566 = vmatprep.subr.bf16.mxu0 0
    %4567 = vmatpush1.bf16.msra.mxu0 0
    %4568 = vmatprep.subr.bf16.mxu0 0
    %4569 = vmatpush1.bf16.msra.mxu0 0
    %4570 = vmatprep.mubr.bf16.mxu0 0
    %4571 = vmatmul.mubr.bf16.gmra.mrb[0].mxu0 %v3940
    %v4572 = vpop.f32.mrb[0].mxu0
    %v4573 = vadd.f32 %v4219, %v4572
    %v4574 = vpop.f32.mrb[0].mxu0
    %v4575 = vpop.f32.mrb[0].mxu0
    %v4576 = vadd.f32 %v4222, %v4575
    %v4577 = vpop.f32.mrb[0].mxu0
    %4578 = vmatprep.mubr.bf16.mxu0 0
    %4579 = vmatmul.mubr.bf16.gmra.mrb[0].mxu0 %v3941
    %v4580 = vpop.f32.mrb[0].mxu0
    %v4581 = vadd.f32 %v4227, %v4580
    %v4582 = vpop.f32.mrb[0].mxu0
    %v4583 = vpop.f32.mrb[0].mxu0
    %v4584 = vadd.f32 %v4230, %v4583
    %v4585 = vpop.f32.mrb[0].mxu0
    %4586 = vmatprep.mubr.bf16.mxu0 0
    %4587 = vmatmul.mubr.bf16.gmra.mrb[0].mxu0 %v3942
    %v4588 = vpop.f32.mrb[0].mxu0
    %v4589 = vadd.f32 %v4235, %v4588
    %v4590 = vpop.f32.mrb[0].mxu0
    %v4591 = vpop.f32.mrb[0].mxu0
    %v4592 = vadd.f32 %v4238, %v4591
    %v4593 = vpop.f32.mrb[0].mxu0
    %4594 = vmatprep.mubr.bf16.mxu0 0
    %4595 = vmatmul.mubr.bf16.gmra.mrb[0].mxu0 %v3943
    %v4596 = vpop.f32.mrb[0].mxu0
    %v4597 = vadd.f32 %v4243, %v4596
    %v4598 = vpop.f32.mrb[0].mxu0
    %v4599 = vpop.f32.mrb[0].mxu0
    %v4600 = vadd.f32 %v4246, %v4599
    %v4601 = vpop.f32.mrb[0].mxu0
    %4602 = vmatprep.mubr.bf16.mxu0 0
    %4603 = vmatmul.mubr.bf16.gmra.mrb[0].mxu0 %v3944
    %v4604 = vpop.f32.mrb[0].mxu0
    %v4605 = vadd.f32 %v4251, %v4604
    %v4606 = vpop.f32.mrb[0].mxu0
    %v4607 = vpop.f32.mrb[0].mxu0
    %v4608 = vadd.f32 %v4254, %v4607
    %v4609 = vpop.f32.mrb[0].mxu0
    %4610 = vmatprep.mubr.bf16.mxu0 0
    %4611 = vmatmul.mubr.bf16.gmra.mrb[0].mxu0 %v3945
    %v4612 = vpop.f32.mrb[0].mxu0
    %v4613 = vadd.f32 %v4259, %v4612
    %v4614 = vpop.f32.mrb[0].mxu0
    %v4615 = vpop.f32.mrb[0].mxu0
    %v4616 = vadd.f32 %v4262, %v4615
    %v4617 = vpop.f32.mrb[0].mxu0
    %4618 = vmatprep.mubr.bf16.mxu0 0
    %4619 = vmatmul.mubr.bf16.gmra.mrb[0].mxu0 %v3946
    %v4620 = vpop.f32.mrb[0].mxu0
    %v4621 = vadd.f32 %v4267, %v4620
    %v4622 = vpop.f32.mrb[0].mxu0
    %v4623 = vpop.f32.mrb[0].mxu0
    %v4624 = vadd.f32 %v4270, %v4623
    %v4625 = vpop.f32.mrb[0].mxu0
    %4626 = vmatprep.mubr.bf16.mxu0 0
    %4627 = vmatmul.mubr.bf16.gmra.mrb[0].mxu0 %v3947
    %v4628 = vpop.f32.mrb[0].mxu0
    %v4629 = vadd.f32 %v4275, %v4628
    %v4630 = vpop.f32.mrb[0].mxu0
    %v4631 = vpop.f32.mrb[0].mxu0
    %v4632 = vadd.f32 %v4278, %v4631
    %v4633 = vpop.f32.mrb[0].mxu0
    %4634 = vmatprep.mubr.bf16.mxu0 0
    %4635 = vmatmul.mubr.bf16.gmra.mrb[0].mxu0 %v3948
    %v4636 = vpop.f32.mrb[0].mxu0
    %v4637 = vadd.f32 %v4283, %v4636
    %v4638 = vpop.f32.mrb[0].mxu0
    %v4639 = vpop.f32.mrb[0].mxu0
    %v4640 = vadd.f32 %v4286, %v4639
    %v4641 = vpop.f32.mrb[0].mxu0
    %4642 = vmatprep.mubr.bf16.mxu0 0
    %4643 = vmatmul.mubr.bf16.gmra.mrb[0].mxu0 %v3949
    %v4644 = vpop.f32.mrb[0].mxu0
    %v4645 = vadd.f32 %v4291, %v4644
    %v4646 = vpop.f32.mrb[0].mxu0
    %v4647 = vpop.f32.mrb[0].mxu0
    %v4648 = vadd.f32 %v4294, %v4647
    %v4649 = vpop.f32.mrb[0].mxu0
    %4650 = vmatprep.mubr.bf16.mxu0 0
    %4651 = vmatmul.mubr.bf16.gmra.mrb[0].mxu0 %v3950
    %v4652 = vpop.f32.mrb[0].mxu0
    %v4653 = vadd.f32 %v4299, %v4652
    %v4654 = vpop.f32.mrb[0].mxu0
    %v4655 = vpop.f32.mrb[0].mxu0
    %v4656 = vadd.f32 %v4302, %v4655
    %v4657 = vpop.f32.mrb[0].mxu0
    %4658 = vmatprep.mubr.bf16.mxu0 0
    %4659 = vmatmul.mubr.bf16.gmra.mrb[0].mxu0 %v3951
    %v4660 = vpop.f32.mrb[0].mxu0
    %v4661 = vadd.f32 %v4307, %v4660
    %v4662 = vpop.f32.mrb[0].mxu0
    %v4663 = vpop.f32.mrb[0].mxu0
    %v4664 = vadd.f32 %v4310, %v4663
    %v4665 = vpop.f32.mrb[0].mxu0
    %4666 = vmatprep.mubr.bf16.mxu0 0
    %4667 = vmatmul.mubr.bf16.gmra.mrb[0].mxu0 %v3952
    %v4668 = vpop.f32.mrb[0].mxu0
    %v4669 = vadd.f32 %v4315, %v4668
    %v4670 = vpop.f32.mrb[0].mxu0
    %v4671 = vpop.f32.mrb[0].mxu0
    %v4672 = vadd.f32 %v4318, %v4671
    %v4673 = vpop.f32.mrb[0].mxu0
    %4674 = vmatprep.mubr.bf16.mxu0 0
    %4675 = vmatmul.mubr.bf16.gmra.mrb[0].mxu0 %v3953
    %v4676 = vpop.f32.mrb[0].mxu0
    %v4677 = vadd.f32 %v4323, %v4676
    %v4678 = vpop.f32.mrb[0].mxu0
    %v4679 = vpop.f32.mrb[0].mxu0
    %v4680 = vadd.f32 %v4326, %v4679
    %v4681 = vpop.f32.mrb[0].mxu0
    %4682 = vmatprep.mubr.bf16.mxu0 0
    %4683 = vmatmul.mubr.bf16.gmra.mrb[0].mxu0 %v3954
    %v4684 = vpop.f32.mrb[0].mxu0
    %v4685 = vadd.f32 %v4331, %v4684
    %v4686 = vpop.f32.mrb[0].mxu0
    %v4687 = vpop.f32.mrb[0].mxu0
    %v4688 = vadd.f32 %v4334, %v4687
    %v4689 = vpop.f32.mrb[0].mxu0
    %4690 = vmatprep.mubr.bf16.mxu0 0
    %4691 = vmatmul.mubr.bf16.gmra.mrb[0].mxu0 %v3955
    %v4692 = vpop.f32.mrb[0].mxu0
    %v4693 = vadd.f32 %v4339, %v4692
    %v4694 = vpop.f32.mrb[0].mxu0
    %v4695 = vpop.f32.mrb[0].mxu0
    %v4696 = vadd.f32 %v4342, %v4695
    %v4697 = vpop.f32.mrb[0].mxu0
    %4698 = vdwg.mxu0
    %4699 = vmatprep.subr.bf16.mxu0 %v2724
    %4700 = vmatpush1.bf16.msra.mxu0 %v2723
    %4701 = vmatprep.subr.bf16.mxu0 %v2727
    %4702 = vmatpush1.bf16.msra.mxu0 %v2726
    %4703 = vmatprep.subr.bf16.mxu0 %v2730
    %4704 = vmatpush1.bf16.msra.mxu0 %v2729
    %4705 = vmatprep.subr.bf16.mxu0 %v2733
    %4706 = vmatpush1.bf16.msra.mxu0 %v2732
    %4707 = vmatprep.subr.bf16.mxu0 %v2736
    %4708 = vmatpush1.bf16.msra.mxu0 %v2735
    %4709 = vmatprep.subr.bf16.mxu0 %v2739
    %4710 = vmatpush1.bf16.msra.mxu0 %v2738
    %4711 = vmatprep.subr.bf16.mxu0 %v2742
    %4712 = vmatpush1.bf16.msra.mxu0 %v2741
    %4713 = vmatprep.subr.bf16.mxu0 %v2745
    %4714 = vmatpush1.bf16.msra.mxu0 %v2744
    %4715 = vmatprep.subr.bf16.mxu0 0
    %4716 = vmatpush1.bf16.msra.mxu0 0
    %4717 = vmatprep.subr.bf16.mxu0 0
    %4718 = vmatpush1.bf16.msra.mxu0 0
    %4719 = vmatprep.subr.bf16.mxu0 0
    %4720 = vmatpush1.bf16.msra.mxu0 0
    %4721 = vmatprep.subr.bf16.mxu0 0
    %4722 = vmatpush1.bf16.msra.mxu0 0
    %4723 = vmatprep.subr.bf16.mxu0 0
    %4724 = vmatpush1.bf16.msra.mxu0 0
    %4725 = vmatprep.subr.bf16.mxu0 0
    %4726 = vmatpush1.bf16.msra.mxu0 0
    %4727 = vmatprep.subr.bf16.mxu0 0
    %4728 = vmatpush1.bf16.msra.mxu0 0
    %4729 = vmatprep.subr.bf16.mxu0 0
    %4730 = vmatpush1.bf16.msra.mxu0 0
    %4731 = vmatprep.mubr.bf16.mxu0 0
    %4732 = vmatmul.mubr.bf16.gmra.mrb[0].mxu0 %v3975
    %v4733 = vpop.f32.mrb[0].mxu0
    %v4734 = vadd.f32 0.0, %v4733
    %v4735 = vpop.f32.mrb[0].mxu0
    %v4736 = vadd.f32 0.0, %v4735
    %v4737 = vpop.f32.mrb[0].mxu0
    %v4738 = vadd.f32 0.0, %v4737
    %v4739 = vpop.f32.mrb[0].mxu0
    %v4740 = vadd.f32 0.0, %v4739
    %4741 = vmatprep.mubr.bf16.mxu0 0
    %4742 = vmatmul.mubr.bf16.gmra.mrb[0].mxu0 %v3976
    %v4743 = vpop.f32.mrb[0].mxu0
    %v4744 = vadd.f32 0.0, %v4743
    %v4745 = vpop.f32.mrb[0].mxu0
    %v4746 = vadd.f32 0.0, %v4745
    %v4747 = vpop.f32.mrb[0].mxu0
    %v4748 = vadd.f32 0.0, %v4747
    %v4749 = vpop.f32.mrb[0].mxu0
    %v4750 = vadd.f32 0.0, %v4749
    %4751 = vmatprep.mubr.bf16.mxu0 0
    %4752 = vmatmul.mubr.bf16.gmra.mrb[0].mxu0 %v3977
    %v4753 = vpop.f32.mrb[0].mxu0
    %v4754 = vadd.f32 0.0, %v4753
    %v4755 = vpop.f32.mrb[0].mxu0
    %v4756 = vadd.f32 0.0, %v4755
    %v4757 = vpop.f32.mrb[0].mxu0
    %v4758 = vadd.f32 0.0, %v4757
    %v4759 = vpop.f32.mrb[0].mxu0
    %v4760 = vadd.f32 0.0, %v4759
    %4761 = vmatprep.mubr.bf16.mxu0 0
    %4762 = vmatmul.mubr.bf16.gmra.mrb[0].mxu0 %v3978
    %v4763 = vpop.f32.mrb[0].mxu0
    %v4764 = vadd.f32 0.0, %v4763
    %v4765 = vpop.f32.mrb[0].mxu0
    %v4766 = vadd.f32 0.0, %v4765
    %v4767 = vpop.f32.mrb[0].mxu0
    %v4768 = vadd.f32 0.0, %v4767
    %v4769 = vpop.f32.mrb[0].mxu0
    %v4770 = vadd.f32 0.0, %v4769
    %4771 = vmatprep.mubr.bf16.mxu0 0
    %4772 = vmatmul.mubr.bf16.gmra.mrb[0].mxu0 %v3979
    %v4773 = vpop.f32.mrb[0].mxu0
    %v4774 = vadd.f32 0.0, %v4773
    %v4775 = vpop.f32.mrb[0].mxu0
    %v4776 = vadd.f32 0.0, %v4775
    %v4777 = vpop.f32.mrb[0].mxu0
    %v4778 = vadd.f32 0.0, %v4777
    %v4779 = vpop.f32.mrb[0].mxu0
    %v4780 = vadd.f32 0.0, %v4779
    %4781 = vmatprep.mubr.bf16.mxu0 0
    %4782 = vmatmul.mubr.bf16.gmra.mrb[0].mxu0 %v3980
    %v4783 = vpop.f32.mrb[0].mxu0
    %v4784 = vadd.f32 0.0, %v4783
    %v4785 = vpop.f32.mrb[0].mxu0
    %v4786 = vadd.f32 0.0, %v4785
    %v4787 = vpop.f32.mrb[0].mxu0
    %v4788 = vadd.f32 0.0, %v4787
    %v4789 = vpop.f32.mrb[0].mxu0
    %v4790 = vadd.f32 0.0, %v4789
    %4791 = vmatprep.mubr.bf16.mxu0 0
    %4792 = vmatmul.mubr.bf16.gmra.mrb[0].mxu0 %v3981
    %v4793 = vpop.f32.mrb[0].mxu0
    %v4794 = vadd.f32 0.0, %v4793
    %v4795 = vpop.f32.mrb[0].mxu0
    %v4796 = vadd.f32 0.0, %v4795
    %v4797 = vpop.f32.mrb[0].mxu0
    %v4798 = vadd.f32 0.0, %v4797
    %v4799 = vpop.f32.mrb[0].mxu0
    %v4800 = vadd.f32 0.0, %v4799
    %4801 = vmatprep.mubr.bf16.mxu0 0
    %4802 = vmatmul.mubr.bf16.gmra.mrb[0].mxu0 %v3982
    %v4803 = vpop.f32.mrb[0].mxu0
    %v4804 = vadd.f32 0.0, %v4803
    %v4805 = vpop.f32.mrb[0].mxu0
    %v4806 = vadd.f32 0.0, %v4805
    %v4807 = vpop.f32.mrb[0].mxu0
    %v4808 = vadd.f32 0.0, %v4807
    %v4809 = vpop.f32.mrb[0].mxu0
    %v4810 = vadd.f32 0.0, %v4809
    %4811 = vmatprep.mubr.bf16.mxu0 0
    %4812 = vmatmul.mubr.bf16.gmra.mrb[0].mxu0 %v3983
    %v4813 = vpop.f32.mrb[0].mxu0
    %v4814 = vadd.f32 0.0, %v4813
    %v4815 = vpop.f32.mrb[0].mxu0
    %v4816 = vadd.f32 0.0, %v4815
    %v4817 = vpop.f32.mrb[0].mxu0
    %v4818 = vadd.f32 0.0, %v4817
    %v4819 = vpop.f32.mrb[0].mxu0
    %v4820 = vadd.f32 0.0, %v4819
    %4821 = vmatprep.mubr.bf16.mxu0 0
    %4822 = vmatmul.mubr.bf16.gmra.mrb[0].mxu0 %v3984
    %v4823 = vpop.f32.mrb[0].mxu0
    %v4824 = vadd.f32 0.0, %v4823
    %v4825 = vpop.f32.mrb[0].mxu0
    %v4826 = vadd.f32 0.0, %v4825
    %v4827 = vpop.f32.mrb[0].mxu0
    %v4828 = vadd.f32 0.0, %v4827
    %v4829 = vpop.f32.mrb[0].mxu0
    %v4830 = vadd.f32 0.0, %v4829
    %4831 = vmatprep.mubr.bf16.mxu0 0
    %4832 = vmatmul.mubr.bf16.gmra.mrb[0].mxu0 %v3985
    %v4833 = vpop.f32.mrb[0].mxu0
    %v4834 = vadd.f32 0.0, %v4833
    %v4835 = vpop.f32.mrb[0].mxu0
    %v4836 = vadd.f32 0.0, %v4835
    %v4837 = vpop.f32.mrb[0].mxu0
    %v4838 = vadd.f32 0.0, %v4837
    %v4839 = vpop.f32.mrb[0].mxu0
    %v4840 = vadd.f32 0.0, %v4839
    %4841 = vmatprep.mubr.bf16.mxu0 0
    %4842 = vmatmul.mubr.bf16.gmra.mrb[0].mxu0 %v3986
    %v4843 = vpop.f32.mrb[0].mxu0
    %v4844 = vadd.f32 0.0, %v4843
    %v4845 = vpop.f32.mrb[0].mxu0
    %v4846 = vadd.f32 0.0, %v4845
    %v4847 = vpop.f32.mrb[0].mxu0
    %v4848 = vadd.f32 0.0, %v4847
    %v4849 = vpop.f32.mrb[0].mxu0
    %v4850 = vadd.f32 0.0, %v4849
    %4851 = vmatprep.mubr.bf16.mxu0 0
    %4852 = vmatmul.mubr.bf16.gmra.mrb[0].mxu0 %v3987
    %v4853 = vpop.f32.mrb[0].mxu0
    %v4854 = vadd.f32 0.0, %v4853
    %v4855 = vpop.f32.mrb[0].mxu0
    %v4856 = vadd.f32 0.0, %v4855
    %v4857 = vpop.f32.mrb[0].mxu0
    %v4858 = vadd.f32 0.0, %v4857
    %v4859 = vpop.f32.mrb[0].mxu0
    %v4860 = vadd.f32 0.0, %v4859
    %4861 = vmatprep.mubr.bf16.mxu0 0
    %4862 = vmatmul.mubr.bf16.gmra.mrb[0].mxu0 %v3988
    %v4863 = vpop.f32.mrb[0].mxu0
    %v4864 = vadd.f32 0.0, %v4863
    %v4865 = vpop.f32.mrb[0].mxu0
    %v4866 = vadd.f32 0.0, %v4865
    %v4867 = vpop.f32.mrb[0].mxu0
    %v4868 = vadd.f32 0.0, %v4867
    %v4869 = vpop.f32.mrb[0].mxu0
    %v4870 = vadd.f32 0.0, %v4869
    %4871 = vmatprep.mubr.bf16.mxu0 0
    %4872 = vmatmul.mubr.bf16.gmra.mrb[0].mxu0 %v3989
    %v4873 = vpop.f32.mrb[0].mxu0
    %v4874 = vadd.f32 0.0, %v4873
    %v4875 = vpop.f32.mrb[0].mxu0
    %v4876 = vadd.f32 0.0, %v4875
    %v4877 = vpop.f32.mrb[0].mxu0
    %v4878 = vadd.f32 0.0, %v4877
    %v4879 = vpop.f32.mrb[0].mxu0
    %v4880 = vadd.f32 0.0, %v4879
    %4881 = vmatprep.mubr.bf16.mxu0 0
    %4882 = vmatmul.mubr.bf16.gmra.mrb[0].mxu0 %v3990
    %v4883 = vpop.f32.mrb[0].mxu0
    %v4884 = vadd.f32 0.0, %v4883
    %v4885 = vpop.f32.mrb[0].mxu0
    %v4886 = vadd.f32 0.0, %v4885
    %v4887 = vpop.f32.mrb[0].mxu0
    %v4888 = vadd.f32 0.0, %v4887
    %v4889 = vpop.f32.mrb[0].mxu0
    %v4890 = vadd.f32 0.0, %v4889
    %4891 = vdwg.mxu0
    %4892 = vmatprep.subr.bf16.mxu0 0
    %4893 = vmatpush1.bf16.msra.mxu0 %v2725
    %4894 = vmatprep.subr.bf16.mxu0 0
    %4895 = vmatpush1.bf16.msra.mxu0 %v2728
    %4896 = vmatprep.subr.bf16.mxu0 0
    %4897 = vmatpush1.bf16.msra.mxu0 %v2731
    %4898 = vmatprep.subr.bf16.mxu0 0
    %4899 = vmatpush1.bf16.msra.mxu0 %v2734
    %4900 = vmatprep.subr.bf16.mxu0 0
    %4901 = vmatpush1.bf16.msra.mxu0 %v2737
    %4902 = vmatprep.subr.bf16.mxu0 0
    %4903 = vmatpush1.bf16.msra.mxu0 %v2740
    %4904 = vmatprep.subr.bf16.mxu0 0
    %4905 = vmatpush1.bf16.msra.mxu0 %v2743
    %4906 = vmatprep.subr.bf16.mxu0 0
    %4907 = vmatpush1.bf16.msra.mxu0 %v2746
    %4908 = vmatprep.subr.bf16.mxu0 0
    %4909 = vmatpush1.bf16.msra.mxu0 0
    %4910 = vmatprep.subr.bf16.mxu0 0
    %4911 = vmatpush1.bf16.msra.mxu0 0
    %4912 = vmatprep.subr.bf16.mxu0 0
    %4913 = vmatpush1.bf16.msra.mxu0 0
    %4914 = vmatprep.subr.bf16.mxu0 0
    %4915 = vmatpush1.bf16.msra.mxu0 0
    %4916 = vmatprep.subr.bf16.mxu0 0
    %4917 = vmatpush1.bf16.msra.mxu0 0
    %4918 = vmatprep.subr.bf16.mxu0 0
    %4919 = vmatpush1.bf16.msra.mxu0 0
    %4920 = vmatprep.subr.bf16.mxu0 0
    %4921 = vmatpush1.bf16.msra.mxu0 0
    %4922 = vmatprep.subr.bf16.mxu0 0
    %4923 = vmatpush1.bf16.msra.mxu0 0
    %4924 = vmatprep.mubr.bf16.mxu0 0
    %4925 = vmatmul.mubr.bf16.gmra.mrb[0].mxu0 %v3975
    %v4926 = vpop.f32.mrb[0].mxu0
    %v4927 = vadd.f32 0.0, %v4926
    %v4928 = vpop.f32.mrb[0].mxu0
    %v4929 = vpop.f32.mrb[0].mxu0
    %v4930 = vadd.f32 0.0, %v4929
    %v4931 = vpop.f32.mrb[0].mxu0
    %4932 = vmatprep.mubr.bf16.mxu0 0
    %4933 = vmatmul.mubr.bf16.gmra.mrb[0].mxu0 %v3976
    %v4934 = vpop.f32.mrb[0].mxu0
    %v4935 = vadd.f32 0.0, %v4934
    %v4936 = vpop.f32.mrb[0].mxu0
    %v4937 = vpop.f32.mrb[0].mxu0
    %v4938 = vadd.f32 0.0, %v4937
    %v4939 = vpop.f32.mrb[0].mxu0
    %4940 = vmatprep.mubr.bf16.mxu0 0
    %4941 = vmatmul.mubr.bf16.gmra.mrb[0].mxu0 %v3977
    %v4942 = vpop.f32.mrb[0].mxu0
    %v4943 = vadd.f32 0.0, %v4942
    %v4944 = vpop.f32.mrb[0].mxu0
    %v4945 = vpop.f32.mrb[0].mxu0
    %v4946 = vadd.f32 0.0, %v4945
    %v4947 = vpop.f32.mrb[0].mxu0
    %4948 = vmatprep.mubr.bf16.mxu0 0
    %4949 = vmatmul.mubr.bf16.gmra.mrb[0].mxu0 %v3978
    %v4950 = vpop.f32.mrb[0].mxu0
    %v4951 = vadd.f32 0.0, %v4950
    %v4952 = vpop.f32.mrb[0].mxu0
    %v4953 = vpop.f32.mrb[0].mxu0
    %v4954 = vadd.f32 0.0, %v4953
    %v4955 = vpop.f32.mrb[0].mxu0
    %4956 = vmatprep.mubr.bf16.mxu0 0
    %4957 = vmatmul.mubr.bf16.gmra.mrb[0].mxu0 %v3979
    %v4958 = vpop.f32.mrb[0].mxu0
    %v4959 = vadd.f32 0.0, %v4958
    %v4960 = vpop.f32.mrb[0].mxu0
    %v4961 = vpop.f32.mrb[0].mxu0
    %v4962 = vadd.f32 0.0, %v4961
    %v4963 = vpop.f32.mrb[0].mxu0
    %4964 = vmatprep.mubr.bf16.mxu0 0
    %4965 = vmatmul.mubr.bf16.gmra.mrb[0].mxu0 %v3980
    %v4966 = vpop.f32.mrb[0].mxu0
    %v4967 = vadd.f32 0.0, %v4966
    %v4968 = vpop.f32.mrb[0].mxu0
    %v4969 = vpop.f32.mrb[0].mxu0
    %v4970 = vadd.f32 0.0, %v4969
    %v4971 = vpop.f32.mrb[0].mxu0
    %4972 = vmatprep.mubr.bf16.mxu0 0
    %4973 = vmatmul.mubr.bf16.gmra.mrb[0].mxu0 %v3981
    %v4974 = vpop.f32.mrb[0].mxu0
    %v4975 = vadd.f32 0.0, %v4974
    %v4976 = vpop.f32.mrb[0].mxu0
    %v4977 = vpop.f32.mrb[0].mxu0
    %v4978 = vadd.f32 0.0, %v4977
    %v4979 = vpop.f32.mrb[0].mxu0
    %4980 = vmatprep.mubr.bf16.mxu0 0
    %4981 = vmatmul.mubr.bf16.gmra.mrb[0].mxu0 %v3982
    %v4982 = vpop.f32.mrb[0].mxu0
    %v4983 = vadd.f32 0.0, %v4982
    %v4984 = vpop.f32.mrb[0].mxu0
    %v4985 = vpop.f32.mrb[0].mxu0
    %v4986 = vadd.f32 0.0, %v4985
    %v4987 = vpop.f32.mrb[0].mxu0
    %4988 = vmatprep.mubr.bf16.mxu0 0
    %4989 = vmatmul.mubr.bf16.gmra.mrb[0].mxu0 %v3983
    %v4990 = vpop.f32.mrb[0].mxu0
    %v4991 = vadd.f32 0.0, %v4990
    %v4992 = vpop.f32.mrb[0].mxu0
    %v4993 = vpop.f32.mrb[0].mxu0
    %v4994 = vadd.f32 0.0, %v4993
    %v4995 = vpop.f32.mrb[0].mxu0
    %4996 = vmatprep.mubr.bf16.mxu0 0
    %4997 = vmatmul.mubr.bf16.gmra.mrb[0].mxu0 %v3984
    %v4998 = vpop.f32.mrb[0].mxu0
    %v4999 = vadd.f32 0.0, %v4998
    %v5000 = vpop.f32.mrb[0].mxu0
    %v5001 = vpop.f32.mrb[0].mxu0
    %v5002 = vadd.f32 0.0, %v5001
    %v5003 = vpop.f32.mrb[0].mxu0
    %5004 = vmatprep.mubr.bf16.mxu0 0
    %5005 = vmatmul.mubr.bf16.gmra.mrb[0].mxu0 %v3985
    %v5006 = vpop.f32.mrb[0].mxu0
    %v5007 = vadd.f32 0.0, %v5006
    %v5008 = vpop.f32.mrb[0].mxu0
    %v5009 = vpop.f32.mrb[0].mxu0
    %v5010 = vadd.f32 0.0, %v5009
    %v5011 = vpop.f32.mrb[0].mxu0
    %5012 = vmatprep.mubr.bf16.mxu0 0
    %5013 = vmatmul.mubr.bf16.gmra.mrb[0].mxu0 %v3986
    %v5014 = vpop.f32.mrb[0].mxu0
    %v5015 = vadd.f32 0.0, %v5014
    %v5016 = vpop.f32.mrb[0].mxu0
    %v5017 = vpop.f32.mrb[0].mxu0
    %v5018 = vadd.f32 0.0, %v5017
    %v5019 = vpop.f32.mrb[0].mxu0
    %5020 = vmatprep.mubr.bf16.mxu0 0
    %5021 = vmatmul.mubr.bf16.gmra.mrb[0].mxu0 %v3987
    %v5022 = vpop.f32.mrb[0].mxu0
    %v5023 = vadd.f32 0.0, %v5022
    %v5024 = vpop.f32.mrb[0].mxu0
    %v5025 = vpop.f32.mrb[0].mxu0
    %v5026 = vadd.f32 0.0, %v5025
    %v5027 = vpop.f32.mrb[0].mxu0
    %5028 = vmatprep.mubr.bf16.mxu0 0
    %5029 = vmatmul.mubr.bf16.gmra.mrb[0].mxu0 %v3988
    %v5030 = vpop.f32.mrb[0].mxu0
    %v5031 = vadd.f32 0.0, %v5030
    %v5032 = vpop.f32.mrb[0].mxu0
    %v5033 = vpop.f32.mrb[0].mxu0
    %v5034 = vadd.f32 0.0, %v5033
    %v5035 = vpop.f32.mrb[0].mxu0
    %5036 = vmatprep.mubr.bf16.mxu0 0
    %5037 = vmatmul.mubr.bf16.gmra.mrb[0].mxu0 %v3989
    %v5038 = vpop.f32.mrb[0].mxu0
    %v5039 = vadd.f32 0.0, %v5038
    %v5040 = vpop.f32.mrb[0].mxu0
    %v5041 = vpop.f32.mrb[0].mxu0
    %v5042 = vadd.f32 0.0, %v5041
    %v5043 = vpop.f32.mrb[0].mxu0
    %5044 = vmatprep.mubr.bf16.mxu0 0
    %5045 = vmatmul.mubr.bf16.gmra.mrb[0].mxu0 %v3990
    %v5046 = vpop.f32.mrb[0].mxu0
    %v5047 = vadd.f32 0.0, %v5046
    %v5048 = vpop.f32.mrb[0].mxu0
    %v5049 = vpop.f32.mrb[0].mxu0
    %v5050 = vadd.f32 0.0, %v5049
    %v5051 = vpop.f32.mrb[0].mxu0
    %5052 = vdwg.mxu0
    %v5053 = vadd.f32 %v4380, %v4734
    %v5054 = vadd.f32 %v4382, %v4736
    %v5055 = vadd.f32 %v4573, %v4927
    %v5056 = vadd.f32 %v4384, %v4738
    %v5057 = vadd.f32 %v4386, %v4740
    %v5058 = vadd.f32 %v4576, %v4930
    %v5059 = vadd.f32 %v4390, %v4744
    %v5060 = vadd.f32 %v4392, %v4746
    %v5061 = vadd.f32 %v4581, %v4935
    %v5062 = vadd.f32 %v4394, %v4748
    %v5063 = vadd.f32 %v4396, %v4750
    %v5064 = vadd.f32 %v4584, %v4938
    %v5065 = vadd.f32 %v4400, %v4754
    %v5066 = vadd.f32 %v4402, %v4756
    %v5067 = vadd.f32 %v4589, %v4943
    %v5068 = vadd.f32 %v4404, %v4758
    %v5069 = vadd.f32 %v4406, %v4760
    %v5070 = vadd.f32 %v4592, %v4946
    %v5071 = vadd.f32 %v4410, %v4764
    %v5072 = vadd.f32 %v4412, %v4766
    %v5073 = vadd.f32 %v4597, %v4951
    %v5074 = vadd.f32 %v4414, %v4768
    %v5075 = vadd.f32 %v4416, %v4770
    %v5076 = vadd.f32 %v4600, %v4954
    %v5077 = vadd.f32 %v4420, %v4774
    %v5078 = vadd.f32 %v4422, %v4776
    %v5079 = vadd.f32 %v4605, %v4959
    %v5080 = vadd.f32 %v4424, %v4778
    %v5081 = vadd.f32 %v4426, %v4780
    %v5082 = vadd.f32 %v4608, %v4962
    %v5083 = vadd.f32 %v4430, %v4784
    %v5084 = vadd.f32 %v4432, %v4786
    %v5085 = vadd.f32 %v4613, %v4967
    %v5086 = vadd.f32 %v4434, %v4788
    %v5087 = vadd.f32 %v4436, %v4790
    %v5088 = vadd.f32 %v4616, %v4970
    %v5089 = vadd.f32 %v4440, %v4794
    %v5090 = vadd.f32 %v4442, %v4796
    %v5091 = vadd.f32 %v4621, %v4975
    %v5092 = vadd.f32 %v4444, %v4798
    %v5093 = vadd.f32 %v4446, %v4800
    %v5094 = vadd.f32 %v4624, %v4978
    %v5095 = vadd.f32 %v4450, %v4804
    %v5096 = vadd.f32 %v4452, %v4806
    %v5097 = vadd.f32 %v4629, %v4983
    %v5098 = vadd.f32 %v4454, %v4808
    %v5099 = vadd.f32 %v4456, %v4810
    %v5100 = vadd.f32 %v4632, %v4986
    %v5101 = vadd.f32 %v4460, %v4814
    %v5102 = vadd.f32 %v4462, %v4816
    %v5103 = vadd.f32 %v4637, %v4991
    %v5104 = vadd.f32 %v4464, %v4818
    %v5105 = vadd.f32 %v4466, %v4820
    %v5106 = vadd.f32 %v4640, %v4994
    %v5107 = vadd.f32 %v4470, %v4824
    %v5108 = vadd.f32 %v4472, %v4826
    %v5109 = vadd.f32 %v4645, %v4999
    %v5110 = vadd.f32 %v4474, %v4828
    %v5111 = vadd.f32 %v4476, %v4830
    %v5112 = vadd.f32 %v4648, %v5002
    %v5113 = vadd.f32 %v4480, %v4834
    %v5114 = vadd.f32 %v4482, %v4836
    %v5115 = vadd.f32 %v4653, %v5007
    %v5116 = vadd.f32 %v4484, %v4838
    %v5117 = vadd.f32 %v4486, %v4840
    %v5118 = vadd.f32 %v4656, %v5010
    %v5119 = vadd.f32 %v4490, %v4844
    %v5120 = vadd.f32 %v4492, %v4846
    %v5121 = vadd.f32 %v4661, %v5015
    %v5122 = vadd.f32 %v4494, %v4848
    %v5123 = vadd.f32 %v4496, %v4850
    %v5124 = vadd.f32 %v4664, %v5018
    %v5125 = vadd.f32 %v4500, %v4854
    %v5126 = vadd.f32 %v4502, %v4856
    %v5127 = vadd.f32 %v4669, %v5023
    %v5128 = vadd.f32 %v4504, %v4858
    %v5129 = vadd.f32 %v4506, %v4860
    %v5130 = vadd.f32 %v4672, %v5026
    %v5131 = vadd.f32 %v4510, %v4864
    %v5132 = vadd.f32 %v4512, %v4866
    %v5133 = vadd.f32 %v4677, %v5031
    %v5134 = vadd.f32 %v4514, %v4868
    %v5135 = vadd.f32 %v4516, %v4870
    %v5136 = vadd.f32 %v4680, %v5034
    %v5137 = vadd.f32 %v4520, %v4874
    %v5138 = vadd.f32 %v4522, %v4876
    %v5139 = vadd.f32 %v4685, %v5039
    %v5140 = vadd.f32 %v4524, %v4878
    %v5141 = vadd.f32 %v4526, %v4880
    %v5142 = vadd.f32 %v4688, %v5042
    %v5143 = vadd.f32 %v4530, %v4884
    %v5144 = vadd.f32 %v4532, %v4886
    %v5145 = vadd.f32 %v4693, %v5047
    %v5146 = vadd.f32 %v4534, %v4888
    %v5147 = vadd.f32 %v4536, %v4890
    %v5148 = vadd.f32 %v4696, %v5050
    %v5149 = vrot.slane %v5053, 7
    %v5150 = vrot.slane %v5056, 7
    %v5151 = vrot.slane %v5059, 7
    %v5152 = vrot.slane %v5062, 7
    %v5153 = vrot.slane %v5065, 7
    %v5154 = vrot.slane %v5068, 7
    %v5155 = vrot.slane %v5071, 7
    %v5156 = vrot.slane %v5074, 7
    %v5157 = vrot.slane %v5077, 7
    %v5158 = vrot.slane %v5080, 7
    %v5159 = vrot.slane %v5083, 7
    %v5160 = vrot.slane %v5086, 7
    %v5161 = vrot.slane %v5089, 7
    %v5162 = vrot.slane %v5092, 7
    %v5163 = vrot.slane %v5095, 7
    %v5164 = vrot.slane %v5098, 7
    %v5165 = vrot.slane %v5101, 7
    %v5166 = vrot.slane %v5104, 7
    %v5167 = vrot.slane %v5107, 7
    %v5168 = vrot.slane %v5110, 7
    %v5169 = vrot.slane %v5113, 7
    %v5170 = vrot.slane %v5116, 7
    %v5171 = vrot.slane %v5119, 7
    %v5172 = vrot.slane %v5122, 7
    %v5173 = vrot.slane %v5125, 7
    %v5174 = vrot.slane %v5128, 7
    %v5175 = vrot.slane %v5131, 7
    %v5176 = vrot.slane %v5134, 7
    %v5177 = vrot.slane %v5137, 7
    %v5178 = vrot.slane %v5140, 7
    %v5179 = vrot.slane %v5143, 7
    %v5180 = vrot.slane %v5146, 7
    %v5181 = vsel %vm3253, %v5179, %v5180
    %v5182 = vsel %vm3253, %v5178, %v5179
    %v5183 = vsel %vm3253, %v5177, %v5178
    %v5184 = vsel %vm3253, %v5176, %v5177
    %v5185 = vsel %vm3253, %v5175, %v5176
    %v5186 = vsel %vm3253, %v5174, %v5175
    %v5187 = vsel %vm3253, %v5173, %v5174
    %v5188 = vsel %vm3253, %v5172, %v5173
    %v5189 = vsel %vm3253, %v5171, %v5172
    %v5190 = vsel %vm3253, %v5170, %v5171
    %v5191 = vsel %vm3253, %v5169, %v5170
    %v5192 = vsel %vm3253, %v5168, %v5169
    %v5193 = vsel %vm3253, %v5167, %v5168
    %v5194 = vsel %vm3253, %v5166, %v5167
    %v5195 = vsel %vm3253, %v5165, %v5166
    %v5196 = vsel %vm3253, %v5164, %v5165
    %v5197 = vsel %vm3253, %v5163, %v5164
    %v5198 = vsel %vm3253, %v5162, %v5163
    %v5199 = vsel %vm3253, %v5161, %v5162
    %v5200 = vsel %vm3253, %v5160, %v5161
    %v5201 = vsel %vm3253, %v5159, %v5160
    %v5202 = vsel %vm3253, %v5158, %v5159
    %v5203 = vsel %vm3253, %v5157, %v5158
    %v5204 = vsel %vm3253, %v5156, %v5157
    %v5205 = vsel %vm3253, %v5155, %v5156
    %v5206 = vsel %vm3253, %v5154, %v5155
    %v5207 = vsel %vm3253, %v5153, %v5154
    %v5208 = vsel %vm3253, %v5152, %v5153
    %v5209 = vsel %vm3253, %v5151, %v5152
    %v5210 = vsel %vm3253, %v5150, %v5151
    %v5211 = vsel %vm3253, %v5149, %v5150
    %v5212 = vsel %vm3253, %v5180, %v5149
    %v5213 = vsel %vm3318, %v5212, 0.0
    %v5214 = vsel %vm3319, %v5211, 0.0
    %v5215 = vsel %vm3320, %v5210, 0.0
    %v5216 = vsel %vm3321, %v5209, 0.0
    %v5217 = vsel %vm3322, %v5208, 0.0
    %v5218 = vsel %vm3323, %v5207, 0.0
    %v5219 = vsel %vm3324, %v5206, 0.0
    %v5220 = vsel %vm3325, %v5205, 0.0
    %v5221 = vsel %vm3326, %v5204, 0.0
    %v5222 = vsel %vm3327, %v5203, 0.0
    %v5223 = vsel %vm3328, %v5202, 0.0
    %v5224 = vsel %vm3329, %v5201, 0.0
    %v5225 = vsel %vm3330, %v5200, 0.0
    %v5226 = vsel %vm3331, %v5199, 0.0
    %v5227 = vsel %vm3332, %v5198, 0.0
    %v5228 = vsel %vm3333, %v5197, 0.0
    %v5229 = vsel %vm3334, %v5196, 0.0
    %v5230 = vsel %vm3335, %v5195, 0.0
    %v5231 = vsel %vm3336, %v5194, 0.0
    %v5232 = vsel %vm3337, %v5193, 0.0
    %v5233 = vsel %vm3338, %v5192, 0.0
    %v5234 = vsel %vm3339, %v5191, 0.0
    %v5235 = vsel %vm3340, %v5190, 0.0
    %v5236 = vsel %vm3341, %v5189, 0.0
    %v5237 = vsel %vm3342, %v5188, 0.0
    %v5238 = vsel %vm3343, %v5187, 0.0
    %v5239 = vsel %vm3344, %v5186, 0.0
    %v5240 = vsel %vm3345, %v5185, 0.0
    %v5241 = vsel %vm3346, %v5184, 0.0
    %v5242 = vsel %vm3347, %v5183, 0.0
    %v5243 = vsel %vm3348, %v5182, 0.0
    %v5244 = vsel %vm3349, %v5181, 0.0
    %v5245 = vadd.f32 %v5054, %v5213
    %v5246 = vadd.f32 %v5057, %v5214
    %v5247 = vadd.f32 %v5060, %v5215
    %v5248 = vadd.f32 %v5063, %v5216
    %v5249 = vadd.f32 %v5066, %v5217
    %v5250 = vadd.f32 %v5069, %v5218
    %v5251 = vadd.f32 %v5072, %v5219
    %v5252 = vadd.f32 %v5075, %v5220
    %v5253 = vadd.f32 %v5078, %v5221
    %v5254 = vadd.f32 %v5081, %v5222
    %v5255 = vadd.f32 %v5084, %v5223
    %v5256 = vadd.f32 %v5087, %v5224
    %v5257 = vadd.f32 %v5090, %v5225
    %v5258 = vadd.f32 %v5093, %v5226
    %v5259 = vadd.f32 %v5096, %v5227
    %v5260 = vadd.f32 %v5099, %v5228
    %v5261 = vadd.f32 %v5102, %v5229
    %v5262 = vadd.f32 %v5105, %v5230
    %v5263 = vadd.f32 %v5108, %v5231
    %v5264 = vadd.f32 %v5111, %v5232
    %v5265 = vadd.f32 %v5114, %v5233
    %v5266 = vadd.f32 %v5117, %v5234
    %v5267 = vadd.f32 %v5120, %v5235
    %v5268 = vadd.f32 %v5123, %v5236
    %v5269 = vadd.f32 %v5126, %v5237
    %v5270 = vadd.f32 %v5129, %v5238
    %v5271 = vadd.f32 %v5132, %v5239
    %v5272 = vadd.f32 %v5135, %v5240
    %v5273 = vadd.f32 %v5138, %v5241
    %v5274 = vadd.f32 %v5141, %v5242
    %v5275 = vadd.f32 %v5144, %v5243
    %v5276 = vadd.f32 %v5147, %v5244
    %v5277 = vrot.slane %v5055, 1
    %v5278 = vrot.slane %v5058, 1
    %v5279 = vrot.slane %v5061, 1
    %v5280 = vrot.slane %v5064, 1
    %v5281 = vrot.slane %v5067, 1
    %v5282 = vrot.slane %v5070, 1
    %v5283 = vrot.slane %v5073, 1
    %v5284 = vrot.slane %v5076, 1
    %v5285 = vrot.slane %v5079, 1
    %v5286 = vrot.slane %v5082, 1
    %v5287 = vrot.slane %v5085, 1
    %v5288 = vrot.slane %v5088, 1
    %v5289 = vrot.slane %v5091, 1
    %v5290 = vrot.slane %v5094, 1
    %v5291 = vrot.slane %v5097, 1
    %v5292 = vrot.slane %v5100, 1
    %v5293 = vrot.slane %v5103, 1
    %v5294 = vrot.slane %v5106, 1
    %v5295 = vrot.slane %v5109, 1
    %v5296 = vrot.slane %v5112, 1
    %v5297 = vrot.slane %v5115, 1
    %v5298 = vrot.slane %v5118, 1
    %v5299 = vrot.slane %v5121, 1
    %v5300 = vrot.slane %v5124, 1
    %v5301 = vrot.slane %v5127, 1
    %v5302 = vrot.slane %v5130, 1
    %v5303 = vrot.slane %v5133, 1
    %v5304 = vrot.slane %v5136, 1
    %v5305 = vrot.slane %v5139, 1
    %v5306 = vrot.slane %v5142, 1
    %v5307 = vrot.slane %v5145, 1
    %v5308 = vrot.slane %v5148, 1
    %v5309 = vsel %vm3446, %v5307, %v5308
    %v5310 = vsel %vm3446, %v5306, %v5307
    %v5311 = vsel %vm3446, %v5305, %v5306
    %v5312 = vsel %vm3446, %v5304, %v5305
    %v5313 = vsel %vm3446, %v5303, %v5304
    %v5314 = vsel %vm3446, %v5302, %v5303
    %v5315 = vsel %vm3446, %v5301, %v5302
    %v5316 = vsel %vm3446, %v5300, %v5301
    %v5317 = vsel %vm3446, %v5299, %v5300
    %v5318 = vsel %vm3446, %v5298, %v5299
    %v5319 = vsel %vm3446, %v5297, %v5298
    %v5320 = vsel %vm3446, %v5296, %v5297
    %v5321 = vsel %vm3446, %v5295, %v5296
    %v5322 = vsel %vm3446, %v5294, %v5295
    %v5323 = vsel %vm3446, %v5293, %v5294
    %v5324 = vsel %vm3446, %v5292, %v5293
    %v5325 = vsel %vm3446, %v5291, %v5292
    %v5326 = vsel %vm3446, %v5290, %v5291
    %v5327 = vsel %vm3446, %v5289, %v5290
    %v5328 = vsel %vm3446, %v5288, %v5289
    %v5329 = vsel %vm3446, %v5287, %v5288
    %v5330 = vsel %vm3446, %v5286, %v5287
    %v5331 = vsel %vm3446, %v5285, %v5286
    %v5332 = vsel %vm3446, %v5284, %v5285
    %v5333 = vsel %vm3446, %v5283, %v5284
    %v5334 = vsel %vm3446, %v5282, %v5283
    %v5335 = vsel %vm3446, %v5281, %v5282
    %v5336 = vsel %vm3446, %v5280, %v5281
    %v5337 = vsel %vm3446, %v5279, %v5280
    %v5338 = vsel %vm3446, %v5278, %v5279
    %v5339 = vsel %vm3446, %v5277, %v5278
    %v5340 = vsel %vm3446, %v5308, %v5277
    %v5341 = vsel %vm3511, %v5339, 0.0
    %v5342 = vsel %vm3512, %v5338, 0.0
    %v5343 = vsel %vm3513, %v5337, 0.0
    %v5344 = vsel %vm3514, %v5336, 0.0
    %v5345 = vsel %vm3515, %v5335, 0.0
    %v5346 = vsel %vm3516, %v5334, 0.0
    %v5347 = vsel %vm3517, %v5333, 0.0
    %v5348 = vsel %vm3518, %v5332, 0.0
    %v5349 = vsel %vm3519, %v5331, 0.0
    %v5350 = vsel %vm3520, %v5330, 0.0
    %v5351 = vsel %vm3521, %v5329, 0.0
    %v5352 = vsel %vm3522, %v5328, 0.0
    %v5353 = vsel %vm3523, %v5327, 0.0
    %v5354 = vsel %vm3524, %v5326, 0.0
    %v5355 = vsel %vm3525, %v5325, 0.0
    %v5356 = vsel %vm3526, %v5324, 0.0
    %v5357 = vsel %vm3527, %v5323, 0.0
    %v5358 = vsel %vm3528, %v5322, 0.0
    %v5359 = vsel %vm3529, %v5321, 0.0
    %v5360 = vsel %vm3530, %v5320, 0.0
    %v5361 = vsel %vm3531, %v5319, 0.0
    %v5362 = vsel %vm3532, %v5318, 0.0
    %v5363 = vsel %vm3533, %v5317, 0.0
    %v5364 = vsel %vm3534, %v5316, 0.0
    %v5365 = vsel %vm3535, %v5315, 0.0
    %v5366 = vsel %vm3536, %v5314, 0.0
    %v5367 = vsel %vm3537, %v5313, 0.0
    %v5368 = vsel %vm3538, %v5312, 0.0
    %v5369 = vsel %vm3539, %v5311, 0.0
    %v5370 = vsel %vm3540, %v5310, 0.0
    %v5371 = vsel %vm3541, %v5309, 0.0
    %v5372 = vsel %vm3542, %v5340, 0.0
    %v5373 = vadd.f32 %v5245, %v5341
    %v5374 = vadd.f32 %v5246, %v5342
    %v5375 = vadd.f32 %v5247, %v5343
    %v5376 = vadd.f32 %v5248, %v5344
    %v5377 = vadd.f32 %v5249, %v5345
    %v5378 = vadd.f32 %v5250, %v5346
    %v5379 = vadd.f32 %v5251, %v5347
    %v5380 = vadd.f32 %v5252, %v5348
    %v5381 = vadd.f32 %v5253, %v5349
    %v5382 = vadd.f32 %v5254, %v5350
    %v5383 = vadd.f32 %v5255, %v5351
    %v5384 = vadd.f32 %v5256, %v5352
    %v5385 = vadd.f32 %v5257, %v5353
    %v5386 = vadd.f32 %v5258, %v5354
    %v5387 = vadd.f32 %v5259, %v5355
    %v5388 = vadd.f32 %v5260, %v5356
    %v5389 = vadd.f32 %v5261, %v5357
    %v5390 = vadd.f32 %v5262, %v5358
    %v5391 = vadd.f32 %v5263, %v5359
    %v5392 = vadd.f32 %v5264, %v5360
    %v5393 = vadd.f32 %v5265, %v5361
    %v5394 = vadd.f32 %v5266, %v5362
    %v5395 = vadd.f32 %v5267, %v5363
    %v5396 = vadd.f32 %v5268, %v5364
    %v5397 = vadd.f32 %v5269, %v5365
    %v5398 = vadd.f32 %v5270, %v5366
    %v5399 = vadd.f32 %v5271, %v5367
    %v5400 = vadd.f32 %v5272, %v5368
    %v5401 = vadd.f32 %v5273, %v5369
    %v5402 = vadd.f32 %v5274, %v5370
    %v5403 = vadd.f32 %v5275, %v5371
    %v5404 = vadd.f32 %v5276, %v5372
    %v5405 = vmul.f32 %v5373, %v3610
    %v5406 = vmul.f32 %v5374, %v3610
    %v5407 = vmul.f32 %v5375, %v3610
    %v5408 = vmul.f32 %v5376, %v3610
    %v5409 = vmul.f32 %v5377, %v3610
    %v5410 = vmul.f32 %v5378, %v3610
    %v5411 = vmul.f32 %v5379, %v3610
    %v5412 = vmul.f32 %v5380, %v3610
    %v5413 = vmul.f32 %v5381, %v3610
    %v5414 = vmul.f32 %v5382, %v3610
    %v5415 = vmul.f32 %v5383, %v3610
    %v5416 = vmul.f32 %v5384, %v3610
    %v5417 = vmul.f32 %v5385, %v3610
    %v5418 = vmul.f32 %v5386, %v3610
    %v5419 = vmul.f32 %v5387, %v3610
    %v5420 = vmul.f32 %v5388, %v3610
    %v5421 = vmul.f32 %v5389, %v3610
    %v5422 = vmul.f32 %v5390, %v3610
    %v5423 = vmul.f32 %v5391, %v3610
    %v5424 = vmul.f32 %v5392, %v3610
    %v5425 = vmul.f32 %v5393, %v3610
    %v5426 = vmul.f32 %v5394, %v3610
    %v5427 = vmul.f32 %v5395, %v3610
    %v5428 = vmul.f32 %v5396, %v3610
    %v5429 = vmul.f32 %v5397, %v3610
    %v5430 = vmul.f32 %v5398, %v3610
    %v5431 = vmul.f32 %v5399, %v3610
    %v5432 = vmul.f32 %v5400, %v3610
    %v5433 = vmul.f32 %v5401, %v3610
    %v5434 = vmul.f32 %v5402, %v3610
    %v5435 = vmul.f32 %v5403, %v3610
    %v5436 = vmul.f32 %v5404, %v3610
    %v5437 = vadd.f32 %v5405, %v3646
    %v5438 = vadd.f32 %v5406, %v3646
    %v5439 = vadd.f32 %v5407, %v3646
    %v5440 = vadd.f32 %v5408, %v3646
    %v5441 = vadd.f32 %v5409, %v3646
    %v5442 = vadd.f32 %v5410, %v3646
    %v5443 = vadd.f32 %v5411, %v3646
    %v5444 = vadd.f32 %v5412, %v3646
    %v5445 = vadd.f32 %v5413, %v3646
    %v5446 = vadd.f32 %v5414, %v3646
    %v5447 = vadd.f32 %v5415, %v3646
    %v5448 = vadd.f32 %v5416, %v3646
    %v5449 = vadd.f32 %v5417, %v3646
    %v5450 = vadd.f32 %v5418, %v3646
    %v5451 = vadd.f32 %v5419, %v3646
    %v5452 = vadd.f32 %v5420, %v3646
    %v5453 = vadd.f32 %v5421, %v3646
    %v5454 = vadd.f32 %v5422, %v3646
    %v5455 = vadd.f32 %v5423, %v3646
    %v5456 = vadd.f32 %v5424, %v3646
    %v5457 = vadd.f32 %v5425, %v3646
    %v5458 = vadd.f32 %v5426, %v3646
    %v5459 = vadd.f32 %v5427, %v3646
    %v5460 = vadd.f32 %v5428, %v3646
    %v5461 = vadd.f32 %v5429, %v3646
    %v5462 = vadd.f32 %v5430, %v3646
    %v5463 = vadd.f32 %v5431, %v3646
    %v5464 = vadd.f32 %v5432, %v3646
    %v5465 = vadd.f32 %v5433, %v3646
    %v5466 = vadd.f32 %v5434, %v3646
    %v5467 = vadd.f32 %v5435, %v3646
    %v5468 = vadd.f32 %v5436, %v3646
    %v5469 = vmax.f32 %v5437, 0.0
    %v5470 = vmax.f32 %v5438, 0.0
    %v5471 = vmax.f32 %v5439, 0.0
    %v5472 = vmax.f32 %v5440, 0.0
    %v5473 = vmax.f32 %v5441, 0.0
    %v5474 = vmax.f32 %v5442, 0.0
    %v5475 = vmax.f32 %v5443, 0.0
    %v5476 = vmax.f32 %v5444, 0.0
    %v5477 = vmax.f32 %v5445, 0.0
    %v5478 = vmax.f32 %v5446, 0.0
    %v5479 = vmax.f32 %v5447, 0.0
    %v5480 = vmax.f32 %v5448, 0.0
    %v5481 = vmax.f32 %v5449, 0.0
    %v5482 = vmax.f32 %v5450, 0.0
    %v5483 = vmax.f32 %v5451, 0.0
    %v5484 = vmax.f32 %v5452, 0.0
    %v5485 = vmax.f32 %v5453, 0.0
    %v5486 = vmax.f32 %v5454, 0.0
    %v5487 = vmax.f32 %v5455, 0.0
    %v5488 = vmax.f32 %v5456, 0.0
    %v5489 = vmax.f32 %v5457, 0.0
    %v5490 = vmax.f32 %v5458, 0.0
    %v5491 = vmax.f32 %v5459, 0.0
    %v5492 = vmax.f32 %v5460, 0.0
    %v5493 = vmax.f32 %v5461, 0.0
    %v5494 = vmax.f32 %v5462, 0.0
    %v5495 = vmax.f32 %v5463, 0.0
    %v5496 = vmax.f32 %v5464, 0.0
    %v5497 = vmax.f32 %v5465, 0.0
    %v5498 = vmax.f32 %v5466, 0.0
    %v5499 = vmax.f32 %v5467, 0.0
    %v5500 = vmax.f32 %v5468, 0.0
    %5501 = vxpose.xlu0.b32.start [1/16] %v5469, 128
    %5502 = vxpose.xlu0.b32.cont [2/16] %v5470, 128
    %5503 = vxpose.xlu0.b32.cont [3/16] %v5471, 128
    %5504 = vxpose.xlu0.b32.cont [4/16] %v5472, 128
    %5505 = vxpose.xlu0.b32.cont [5/16] %v5473, 128
    %5506 = vxpose.xlu0.b32.cont [6/16] %v5474, 128
    %5507 = vxpose.xlu0.b32.cont [7/16] %v5475, 128
    %5508 = vxpose.xlu0.b32.cont [8/16] %v5476, 128
    %5509 = vxpose.xlu0.b32.cont [9/16] %v5477, 128
    %5510 = vxpose.xlu0.b32.cont [10/16] %v5478, 128
    %5511 = vxpose.xlu0.b32.cont [11/16] %v5479, 128
    %5512 = vxpose.xlu0.b32.cont [12/16] %v5480, 128
    %5513 = vxpose.xlu0.b32.cont [13/16] %v5481, 128
    %5514 = vxpose.xlu0.b32.cont [14/16] %v5482, 128
    %5515 = vxpose.xlu0.b32.cont [15/16] %v5483, 128
    %5516 = vxpose.xlu0.b32.end [16/16] %v5484, 128
    %v5517 = vpop.trf.xlu0
    %v5518 = vpop.trf.xlu0
    %v5519 = vpop.trf.xlu0
    %v5520 = vpop.trf.xlu0
    %v5521 = vpop.trf.xlu0
    %v5522 = vpop.trf.xlu0
    %v5523 = vpop.trf.xlu0
    %v5524 = vpop.trf.xlu0
    %v5525 = vpop.trf.xlu0
    %v5526 = vpop.trf.xlu0
    %v5527 = vpop.trf.xlu0
    %v5528 = vpop.trf.xlu0
    %v5529 = vpop.trf.xlu0
    %v5530 = vpop.trf.xlu0
    %v5531 = vpop.trf.xlu0
    %v5532 = vpop.trf.xlu0
    %5533 = vxpose.xlu0.b32.start [1/16] %v5485, 128
    %5534 = vxpose.xlu0.b32.cont [2/16] %v5486, 128
    %5535 = vxpose.xlu0.b32.cont [3/16] %v5487, 128
    %5536 = vxpose.xlu0.b32.cont [4/16] %v5488, 128
    %5537 = vxpose.xlu0.b32.cont [5/16] %v5489, 128
    %5538 = vxpose.xlu0.b32.cont [6/16] %v5490, 128
    %5539 = vxpose.xlu0.b32.cont [7/16] %v5491, 128
    %5540 = vxpose.xlu0.b32.cont [8/16] %v5492, 128
    %5541 = vxpose.xlu0.b32.cont [9/16] %v5493, 128
    %5542 = vxpose.xlu0.b32.cont [10/16] %v5494, 128
    %5543 = vxpose.xlu0.b32.cont [11/16] %v5495, 128
    %5544 = vxpose.xlu0.b32.cont [12/16] %v5496, 128
    %5545 = vxpose.xlu0.b32.cont [13/16] %v5497, 128
    %5546 = vxpose.xlu0.b32.cont [14/16] %v5498, 128
    %5547 = vxpose.xlu0.b32.cont [15/16] %v5499, 128
    %5548 = vxpose.xlu0.b32.end [16/16] %v5500, 128
    %v5549 = vpop.trf.xlu0
    %v5550 = vpop.trf.xlu0
    %v5551 = vpop.trf.xlu0
    %v5552 = vpop.trf.xlu0
    %v5553 = vpop.trf.xlu0
    %v5554 = vpop.trf.xlu0
    %v5555 = vpop.trf.xlu0
    %v5556 = vpop.trf.xlu0
    %v5557 = vpop.trf.xlu0
    %v5558 = vpop.trf.xlu0
    %v5559 = vpop.trf.xlu0
    %v5560 = vpop.trf.xlu0
    %v5561 = vpop.trf.xlu0
    %v5562 = vpop.trf.xlu0
    %v5563 = vpop.trf.xlu0
    %v5564 = vpop.trf.xlu0
    %s5565 = scalar_lea.vmem [#allocation11], 256
    %5566 = vst [vmem:[%s5565] sm:$0xff] %v5517
    %5567 = vst [vmem:[%s5565 + $0x8] sm:$0xff] %v5549
    %5568 = vst [vmem:[%s5565 + $0x10] sm:$0xff] %v5518
    %5569 = vst [vmem:[%s5565 + $0x18] sm:$0xff] %v5550
    %5570 = vst [vmem:[%s5565 + $0x20] sm:$0xff] %v5519
    %5571 = vst [vmem:[%s5565 + $0x28] sm:$0xff] %v5551
    %5572 = vst [vmem:[%s5565 + $0x30] sm:$0xff] %v5520
    %5573 = vst [vmem:[%s5565 + $0x38] sm:$0xff] %v5552
    %5574 = vst [vmem:[%s5565 + $0x40] sm:$0xff] %v5521
    %5575 = vst [vmem:[%s5565 + $0x48] sm:$0xff] %v5553
    %5576 = vst [vmem:[%s5565 + $0x50] sm:$0xff] %v5522
    %5577 = vst [vmem:[%s5565 + $0x58] sm:$0xff] %v5554
    %5578 = vst [vmem:[%s5565 + $0x60] sm:$0xff] %v5523
    %5579 = vst [vmem:[%s5565 + $0x68] sm:$0xff] %v5555
    %5580 = vst [vmem:[%s5565 + $0x70] sm:$0xff] %v5524
    %5581 = vst [vmem:[%s5565 + $0x78] sm:$0xff] %v5556
    %5582 = vst [vmem:[%s5565 + $0x80] sm:$0xff] %v5525
    %5583 = vst [vmem:[%s5565 + $0x88] sm:$0xff] %v5557
    %5584 = vst [vmem:[%s5565 + $0x90] sm:$0xff] %v5526
    %5585 = vst [vmem:[%s5565 + $0x98] sm:$0xff] %v5558
    %5586 = vst [vmem:[%s5565 + $0xa0] sm:$0xff] %v5527
    %5587 = vst [vmem:[%s5565 + $0xa8] sm:$0xff] %v5559
    %5588 = vst [vmem:[%s5565 + $0xb0] sm:$0xff] %v5528
    %5589 = vst [vmem:[%s5565 + $0xb8] sm:$0xff] %v5560
    %5590 = vst [vmem:[%s5565 + $0xc0] sm:$0xff] %v5529
    %5591 = vst [vmem:[%s5565 + $0xc8] sm:$0xff] %v5561
    %5592 = vst [vmem:[%s5565 + $0xd0] sm:$0xff] %v5530
    %5593 = vst [vmem:[%s5565 + $0xd8] sm:$0xff] %v5562
    %5594 = vst [vmem:[%s5565 + $0xe0] sm:$0xff] %v5531
    %5595 = vst [vmem:[%s5565 + $0xe8] sm:$0xff] %v5563
    %5596 = vst [vmem:[%s5565 + $0xf0] sm:$0xff] %v5532
    %5597 = vst [vmem:[%s5565 + $0xf8] sm:$0xff] %v5564
    // Predicated region
    $region34: #{tpu_custom_call.1} parent=1 // pred_check
      _
    $region35: #{tpu_custom_call.1} parent=1 // pred_check_branch
      %5599 = sbr.rel (0) target = $region37
    $region36: #{tpu_custom_call.1} parent=1 // pred_region
      %s5601 = ssub.s32 8192, 8192
      %5602 = vsyncadd [#allocation5], %s5601
      %s5603 = sshll.u32 [#allocation11], 4
      %s5604 = int_to_ptr.vmem [resolvable:$true] %s5603
      %5609 = dma.vmem_to_hbm [thread:$0]  %s5604, 8192, %s4, [#allocation5], 256, 256, 16
    $region37: #{tpu_custom_call.1} parent=1 // pred_fallthru
      _
    // Predicated region
    $region38: #{tpu_custom_call.1} parent=1 // pred_check
      _
    $region39: #{tpu_custom_call.1} parent=1 // pred_check_branch
      %5611 = sbr.rel (0) target = $region41
    $region40: #{tpu_custom_call.1} parent=1 // pred_region
      %5612 = dma.done [#allocation5], 8192
    $region41: #{tpu_custom_call.1} parent=1 // pred_fallthru
      _
    %5613 = vsyncpa [#allocation4], 1
    %5614 = vsyncpa [#allocation7], 1
    %5615 = vsyncpa [#allocation10], 1
    %5616 = vsyncpa [#allocation5], 1

</llo_original>
